<compile_context>
chip_gen: v7x
topology: tpu7x:2x2x1
jax: 0.10.0
libtpu: 0.0.40
codegen_flags: <defaults>
</compile_context>

<pallas_src>
import functools

import jax
import jax.numpy as jnp
from jax.experimental import pallas as pl
from jax.experimental.pallas import tpu as pltpu


def _tst_kernel(x_ref, w_ref, shift_ref, out_ref, *, H, W, C2, Cout, ksize):
    """Fused dual-direction conv + folded-BN + ReLU + AB*BA product, one batch elem.

    x_ref     : (1, H+2p, W+2p, C2)  halo-padded [fa | fb] channels (bf16 stream)
    w_ref     : (k*k, C2, 2*Cout)    per-tap merged weights, BN scale folded in
    shift_ref : (1, 2*Cout)          folded BN shift, duplicated [shift | shift]
    out_ref   : (1, H*W, Cout)       ReLU(BN(y_ab)) * ReLU(BN(y_ba))
    """
    # Upcast once; all in-kernel slices/reshapes then stay in clean f32 layout.
    x = x_ref[0].astype(jnp.float32)          # (H+2p, W+2p, C2)
    w = w_ref[...].astype(jnp.float32)        # (k*k, C2, 2*Cout)

    acc = jnp.zeros((H * W, 2 * Cout), jnp.float32)
    t = 0
    for di in range(ksize):
        for dj in range(ksize):
            # 3x3 conv as shifted slices of the halo tile; each tap is one
            # (H*W, C2) x (C2, 2*Cout) matmul computing BOTH directions at once.
            tap = x[di:di + H, dj:dj + W, :].reshape(H * W, C2)
            acc = acc + jnp.dot(tap, w[t], preferred_element_type=jnp.float32)
            t += 1

    # Folded BatchNorm shift + ReLU for both directions, then the AB*BA product.
    z = jnp.maximum(acc + shift_ref[...], 0.0)            # (H*W, 2*Cout)
    out_ref[0] = (z[:, :Cout] * z[:, Cout:]).astype(out_ref.dtype)


def tst_block_fused(fa, fb, w3d, bn_scale, bn_shift, *, stream_dtype=jnp.bfloat16):
    """One TSTBlock applied to both orderings, fused with the AB*BA product.

    fa, fb : (N, H, W, Cin)  NHWC feature maps
    w3d    : (2, k, k, Cin, Cout)  conv3d weight (time-major taps)
    bn_scale, bn_shift : (Cout,)   folded inference BatchNorm affine
    returns: (N, H, W, Cout) float32
    """
    N, H, W, Cin = fa.shape
    k = w3d.shape[1]
    Cout = w3d.shape[-1]
    C2 = 2 * Cin
    p = k // 2
    Hp, Wp = H + 2 * p, W + 2 * p

    # Merge AB/BA: x = [fa | fb] channels, per-tap weight [[W0 | W1], [W1 | W0]]
    # so that  x_tap @ W_tap = [ fa@W0 + fb@W1 | fa@W1 + fb@W0 ] = [ y_ab | y_ba ].
    x = jnp.concatenate([fa, fb], axis=-1)
    x = jnp.pad(x, ((0, 0), (p, p), (p, p), (0, 0)))      # spatial halo only
    x = x.astype(stream_dtype)                            # halve HBM stream bytes

    w0, w1 = w3d[0], w3d[1]                               # (k, k, Cin, Cout)
    w_big = jnp.concatenate(
        [jnp.concatenate([w0, w1], axis=-1),              # rows for fa channels
         jnp.concatenate([w1, w0], axis=-1)],             # rows for fb channels
        axis=2)                                           # (k, k, C2, 2*Cout)
    scale2 = jnp.concatenate([bn_scale, bn_scale]).astype(jnp.float32)
    shift2 = jnp.concatenate([bn_shift, bn_shift]).astype(jnp.float32)
    # Fold BN scale into the conv weights (inference conv+BN fusion).
    w_big = (w_big.astype(jnp.float32) * scale2).reshape(k * k, C2, 2 * Cout)
    w_big = w_big.astype(stream_dtype)
    shift2 = shift2.reshape(1, 2 * Cout)

    kernel = functools.partial(_tst_kernel, H=H, W=W, C2=C2, Cout=Cout, ksize=k)

    out = pl.pallas_call(
        kernel,
        out_shape=jax.ShapeDtypeStruct((N, H * W, Cout), jnp.float32),
        grid_spec=pltpu.PrefetchScalarGridSpec(
            num_scalar_prefetch=0,
            grid=(N,),                                    # >=2 steps -> both v7x TCs busy
            in_specs=[
                pl.BlockSpec((1, Hp, Wp, C2), lambda n: (n, 0, 0, 0)),     # halo tile
                pl.BlockSpec((k * k, C2, 2 * Cout), lambda n: (0, 0, 0)),  # resident W
                pl.BlockSpec((1, 2 * Cout), lambda n: (0, 0)),             # resident shift
            ],
            out_specs=pl.BlockSpec((1, H * W, Cout), lambda n: (n, 0, 0)),
        ),
        compiler_params=pltpu.CompilerParams(
            dimension_semantics=("parallel",)),
    )(x, w_big, shift2)

    return out.reshape(N, H, W, Cout)


def make_tst_params(in_channels, out_channels, key):
    """Deterministic per-level parameters: conv weight + folded BN scale/shift."""
    params = []
    for cin, cout in zip(in_channels, out_channels):
        key, k0, k1, k2, k3, k4 = jax.random.split(key, 6)
        fan_in = 2 * 3 * 3 * cin
        w = jax.random.normal(k0, (2, 3, 3, cin, cout), jnp.float32) / jnp.sqrt(fan_in)
        gamma = 1.0 + 0.1 * jax.random.normal(k1, (cout,), jnp.float32)
        beta = 0.1 * jax.random.normal(k2, (cout,), jnp.float32)
        running_mean = 0.1 * jax.random.normal(k3, (cout,), jnp.float32)
        running_var = 1.0 + 0.1 * jax.random.uniform(k4, (cout,), jnp.float32)
        eps = 1e-5
        scale = gamma / jnp.sqrt(running_var + eps)
        shift = beta - running_mean * scale
        params.append((w, scale, shift))
    return params


def tst_forward(params, features_A, features_B):
    """TST.forward: list of ReLU(BN(conv(fa,fb))) * ReLU(BN(conv(fb,fa)))."""
    return [tst_block_fused(fa, fb, w, s, sh)
            for (w, s, sh), fa, fb in zip(params, features_A, features_B)]


def _tst_reference(fa, fb, w3d, bn_scale, bn_shift, stream_dtype=jnp.bfloat16):
    """Pure-JAX reference using the same streaming quantization as the kernel."""
    faq = fa.astype(stream_dtype).astype(jnp.float32)
    fbq = fb.astype(stream_dtype).astype(jnp.float32)
    w_eff = (w3d.astype(jnp.float32) * bn_scale).astype(stream_dtype).astype(jnp.float32)

    def conv2d(xq, w):                       # zero-padded kxk conv, NHWC
        N, H, W, _ = xq.shape
        kk = w.shape[0]
        pp = kk // 2
        xp = jnp.pad(xq, ((0, 0), (pp, pp), (pp, pp), (0, 0)))
        return sum(jnp.einsum('nhwc,cd->nhwd', xp[:, i:i + H, j:j + W, :], w[i, j])
                   for i in range(kk) for j in range(kk))

    y_ab = conv2d(faq, w_eff[0]) + conv2d(fbq, w_eff[1])
    y_ba = conv2d(fbq, w_eff[0]) + conv2d(faq, w_eff[1])
    return jnp.maximum(y_ab + bn_shift, 0.0) * jnp.maximum(y_ba + bn_shift, 0.0)


if __name__ == "__main__":
    key = jax.random.PRNGKey(0)
    in_channels = [4, 8]
    out_channels = [8, 16]

    # Pyramid features, NHWC (PyTorch NCHW equivalents: [2,4,16,16], [2,8,8,8]).
    key, ka0, kb0, ka1, kb1, kp = jax.random.split(key, 6)
    features_A = [
        jax.random.normal(ka0, (2, 16, 16, 4), jnp.float32),
        jax.random.normal(ka1, (2, 8, 8, 8), jnp.float32),
    ]
    features_B = [
        jax.random.normal(kb0, (2, 16, 16, 4), jnp.float32),
        jax.random.normal(kb1, (2, 8, 8, 8), jnp.float32),
    ]

    params = make_tst_params(in_channels, out_channels, kp)
    outs = tst_forward(params, features_A, features_B)
    for o in outs:
        jax.block_until_ready(o)

    assert outs[0].shape == (2, 16, 16, 8)
    assert outs[1].shape == (2, 8, 8, 16)

    # Numerical check vs. pure-JAX reference (same bf16 stream quantization).
    for (w, s, sh), fa, fb, o in zip(params, features_A, features_B, outs):
        ref = _tst_reference(fa, fb, w, s, sh)
        assert jnp.allclose(o, ref, atol=2e-2, rtol=2e-2), float(jnp.max(jnp.abs(o - ref)))

    print("KERNEL_OK")
</pallas_src>

<mosaic_0001>
module attributes {stable_mosaic.version = 11 : i64} {
  func.func @_tst_kernel(%arg0: i32, %arg1: memref<1x18x18x8xbf16, #tpu.memory_space<vmem>>, %arg2: memref<9x8x16xbf16, #tpu.memory_space<vmem>>, %arg3: memref<1x16xf32, #tpu.memory_space<vmem>>, %arg4: memref<1x256x8xf32, #tpu.memory_space<vmem>>) attributes {dimension_semantics = [#tpu.dimension_semantics<parallel>], iteration_bounds = array<i64: 2>, scalar_prefetch = 0 : i64, scratch_operands = 0 : i64, tpu.core_type = #tpu.core_type<tc>, window_params = [{transform_indices = @transform_0, window_bounds = array<i64: 1, 18, 18, 8>}, {pipeline_mode = #tpu.pipeline_mode<synchronous>, transform_indices = @transform_1, window_bounds = array<i64: 9, 8, 16>}, {pipeline_mode = #tpu.pipeline_mode<synchronous>, transform_indices = @transform_2, window_bounds = array<i64: 1, 16>}, {transform_indices = @transform_3, window_bounds = array<i64: 1, 256, 8>}]} {
    %c0 = arith.constant 0 : index
    %c0_0 = arith.constant 0 : index
    %c0_1 = arith.constant 0 : index
    %c0_2 = arith.constant 0 : index
    %0 = vector.load %arg1[%c0, %c0_0, %c0_1, %c0_2] : memref<1x18x18x8xbf16, #tpu.memory_space<vmem>>, vector<1x18x18x8xbf16>
    %1 = vector.shape_cast %0 : vector<1x18x18x8xbf16> to vector<18x18x8xbf16>
    %2 = arith.extf %1 : vector<18x18x8xbf16> to vector<18x18x8xf32>
    %c0_3 = arith.constant 0 : index
    %c0_4 = arith.constant 0 : index
    %c0_5 = arith.constant 0 : index
    %3 = vector.load %arg2[%c0_3, %c0_4, %c0_5] : memref<9x8x16xbf16, #tpu.memory_space<vmem>>, vector<9x8x16xbf16>
    %4 = arith.extf %3 : vector<9x8x16xbf16> to vector<9x8x16xf32>
    %cst = arith.constant 0.000000e+00 : f32
    %5 = vector.broadcast %cst : f32 to vector<256x16xf32>
    %6 = vector.extract_strided_slice %2 {offsets = [0, 0, 0], sizes = [16, 16, 8], strides = [1, 1, 1]} : vector<18x18x8xf32> to vector<16x16x8xf32>
    %7 = vector.shape_cast %6 : vector<16x16x8xf32> to vector<256x8xf32>
    %8 = vector.extract_strided_slice %4 {offsets = [0, 0, 0], sizes = [1, 8, 16], strides = [1, 1, 1]} : vector<9x8x16xf32> to vector<1x8x16xf32>
    %9 = vector.shape_cast %8 : vector<1x8x16xf32> to vector<8x16xf32>
    %cst_6 = arith.constant dense<0.000000e+00> : vector<256x16xf32>
    %10 = tpu.matmul %7, %9, %cst_6 {dimension_numbers = #tpu.dot_dimension_numbers<[1], [0], [0], [1], [0, 0, 1, 1], [], []>} : vector<256x8xf32>, vector<8x16xf32>, vector<256x16xf32> -> vector<256x16xf32>
    %11 = arith.addf %5, %10 : vector<256x16xf32>
    %12 = vector.extract_strided_slice %2 {offsets = [0, 1, 0], sizes = [16, 16, 8], strides = [1, 1, 1]} : vector<18x18x8xf32> to vector<16x16x8xf32>
    %13 = vector.shape_cast %12 : vector<16x16x8xf32> to vector<256x8xf32>
    %14 = vector.extract_strided_slice %4 {offsets = [1, 0, 0], sizes = [1, 8, 16], strides = [1, 1, 1]} : vector<9x8x16xf32> to vector<1x8x16xf32>
    %15 = vector.shape_cast %14 : vector<1x8x16xf32> to vector<8x16xf32>
    %cst_7 = arith.constant dense<0.000000e+00> : vector<256x16xf32>
    %16 = tpu.matmul %13, %15, %cst_7 {dimension_numbers = #tpu.dot_dimension_numbers<[1], [0], [0], [1], [0, 0, 1, 1], [], []>} : vector<256x8xf32>, vector<8x16xf32>, vector<256x16xf32> -> vector<256x16xf32>
    %17 = arith.addf %11, %16 : vector<256x16xf32>
    %18 = vector.extract_strided_slice %2 {offsets = [0, 2, 0], sizes = [16, 16, 8], strides = [1, 1, 1]} : vector<18x18x8xf32> to vector<16x16x8xf32>
    %19 = vector.shape_cast %18 : vector<16x16x8xf32> to vector<256x8xf32>
    %20 = vector.extract_strided_slice %4 {offsets = [2, 0, 0], sizes = [1, 8, 16], strides = [1, 1, 1]} : vector<9x8x16xf32> to vector<1x8x16xf32>
    %21 = vector.shape_cast %20 : vector<1x8x16xf32> to vector<8x16xf32>
    %cst_8 = arith.constant dense<0.000000e+00> : vector<256x16xf32>
    %22 = tpu.matmul %19, %21, %cst_8 {dimension_numbers = #tpu.dot_dimension_numbers<[1], [0], [0], [1], [0, 0, 1, 1], [], []>} : vector<256x8xf32>, vector<8x16xf32>, vector<256x16xf32> -> vector<256x16xf32>
    %23 = arith.addf %17, %22 : vector<256x16xf32>
    %24 = vector.extract_strided_slice %2 {offsets = [1, 0, 0], sizes = [16, 16, 8], strides = [1, 1, 1]} : vector<18x18x8xf32> to vector<16x16x8xf32>
    %25 = vector.shape_cast %24 : vector<16x16x8xf32> to vector<256x8xf32>
    %26 = vector.extract_strided_slice %4 {offsets = [3, 0, 0], sizes = [1, 8, 16], strides = [1, 1, 1]} : vector<9x8x16xf32> to vector<1x8x16xf32>
    %27 = vector.shape_cast %26 : vector<1x8x16xf32> to vector<8x16xf32>
    %cst_9 = arith.constant dense<0.000000e+00> : vector<256x16xf32>
    %28 = tpu.matmul %25, %27, %cst_9 {dimension_numbers = #tpu.dot_dimension_numbers<[1], [0], [0], [1], [0, 0, 1, 1], [], []>} : vector<256x8xf32>, vector<8x16xf32>, vector<256x16xf32> -> vector<256x16xf32>
    %29 = arith.addf %23, %28 : vector<256x16xf32>
    %30 = vector.extract_strided_slice %2 {offsets = [1, 1, 0], sizes = [16, 16, 8], strides = [1, 1, 1]} : vector<18x18x8xf32> to vector<16x16x8xf32>
    %31 = vector.shape_cast %30 : vector<16x16x8xf32> to vector<256x8xf32>
    %32 = vector.extract_strided_slice %4 {offsets = [4, 0, 0], sizes = [1, 8, 16], strides = [1, 1, 1]} : vector<9x8x16xf32> to vector<1x8x16xf32>
    %33 = vector.shape_cast %32 : vector<1x8x16xf32> to vector<8x16xf32>
    %cst_10 = arith.constant dense<0.000000e+00> : vector<256x16xf32>
    %34 = tpu.matmul %31, %33, %cst_10 {dimension_numbers = #tpu.dot_dimension_numbers<[1], [0], [0], [1], [0, 0, 1, 1], [], []>} : vector<256x8xf32>, vector<8x16xf32>, vector<256x16xf32> -> vector<256x16xf32>
    %35 = arith.addf %29, %34 : vector<256x16xf32>
    %36 = vector.extract_strided_slice %2 {offsets = [1, 2, 0], sizes = [16, 16, 8], strides = [1, 1, 1]} : vector<18x18x8xf32> to vector<16x16x8xf32>
    %37 = vector.shape_cast %36 : vector<16x16x8xf32> to vector<256x8xf32>
    %38 = vector.extract_strided_slice %4 {offsets = [5, 0, 0], sizes = [1, 8, 16], strides = [1, 1, 1]} : vector<9x8x16xf32> to vector<1x8x16xf32>
    %39 = vector.shape_cast %38 : vector<1x8x16xf32> to vector<8x16xf32>
    %cst_11 = arith.constant dense<0.000000e+00> : vector<256x16xf32>
    %40 = tpu.matmul %37, %39, %cst_11 {dimension_numbers = #tpu.dot_dimension_numbers<[1], [0], [0], [1], [0, 0, 1, 1], [], []>} : vector<256x8xf32>, vector<8x16xf32>, vector<256x16xf32> -> vector<256x16xf32>
    %41 = arith.addf %35, %40 : vector<256x16xf32>
    %42 = vector.extract_strided_slice %2 {offsets = [2, 0, 0], sizes = [16, 16, 8], strides = [1, 1, 1]} : vector<18x18x8xf32> to vector<16x16x8xf32>
    %43 = vector.shape_cast %42 : vector<16x16x8xf32> to vector<256x8xf32>
    %44 = vector.extract_strided_slice %4 {offsets = [6, 0, 0], sizes = [1, 8, 16], strides = [1, 1, 1]} : vector<9x8x16xf32> to vector<1x8x16xf32>
    %45 = vector.shape_cast %44 : vector<1x8x16xf32> to vector<8x16xf32>
    %cst_12 = arith.constant dense<0.000000e+00> : vector<256x16xf32>
    %46 = tpu.matmul %43, %45, %cst_12 {dimension_numbers = #tpu.dot_dimension_numbers<[1], [0], [0], [1], [0, 0, 1, 1], [], []>} : vector<256x8xf32>, vector<8x16xf32>, vector<256x16xf32> -> vector<256x16xf32>
    %47 = arith.addf %41, %46 : vector<256x16xf32>
    %48 = vector.extract_strided_slice %2 {offsets = [2, 1, 0], sizes = [16, 16, 8], strides = [1, 1, 1]} : vector<18x18x8xf32> to vector<16x16x8xf32>
    %49 = vector.shape_cast %48 : vector<16x16x8xf32> to vector<256x8xf32>
    %50 = vector.extract_strided_slice %4 {offsets = [7, 0, 0], sizes = [1, 8, 16], strides = [1, 1, 1]} : vector<9x8x16xf32> to vector<1x8x16xf32>
    %51 = vector.shape_cast %50 : vector<1x8x16xf32> to vector<8x16xf32>
    %cst_13 = arith.constant dense<0.000000e+00> : vector<256x16xf32>
    %52 = tpu.matmul %49, %51, %cst_13 {dimension_numbers = #tpu.dot_dimension_numbers<[1], [0], [0], [1], [0, 0, 1, 1], [], []>} : vector<256x8xf32>, vector<8x16xf32>, vector<256x16xf32> -> vector<256x16xf32>
    %53 = arith.addf %47, %52 : vector<256x16xf32>
    %54 = vector.extract_strided_slice %2 {offsets = [2, 2, 0], sizes = [16, 16, 8], strides = [1, 1, 1]} : vector<18x18x8xf32> to vector<16x16x8xf32>
    %55 = vector.shape_cast %54 : vector<16x16x8xf32> to vector<256x8xf32>
    %56 = vector.extract_strided_slice %4 {offsets = [8, 0, 0], sizes = [1, 8, 16], strides = [1, 1, 1]} : vector<9x8x16xf32> to vector<1x8x16xf32>
    %57 = vector.shape_cast %56 : vector<1x8x16xf32> to vector<8x16xf32>
    %cst_14 = arith.constant dense<0.000000e+00> : vector<256x16xf32>
    %58 = tpu.matmul %55, %57, %cst_14 {dimension_numbers = #tpu.dot_dimension_numbers<[1], [0], [0], [1], [0, 0, 1, 1], [], []>} : vector<256x8xf32>, vector<8x16xf32>, vector<256x16xf32> -> vector<256x16xf32>
    %59 = arith.addf %53, %58 : vector<256x16xf32>
    %c0_15 = arith.constant 0 : index
    %c0_16 = arith.constant 0 : index
    %60 = vector.load %arg3[%c0_15, %c0_16] : memref<1x16xf32, #tpu.memory_space<vmem>>, vector<1x16xf32>
    %61 = vector.broadcast %60 : vector<1x16xf32> to vector<256x16xf32>
    %62 = arith.addf %59, %61 : vector<256x16xf32>
    %cst_17 = arith.constant 0.000000e+00 : f32
    %63 = vector.broadcast %cst_17 : f32 to vector<256x16xf32>
    %64 = arith.maximumf %62, %63 : vector<256x16xf32>
    %65 = vector.extract_strided_slice %64 {offsets = [0, 0], sizes = [256, 8], strides = [1, 1]} : vector<256x16xf32> to vector<256x8xf32>
    %66 = vector.extract_strided_slice %64 {offsets = [0, 8], sizes = [256, 8], strides = [1, 1]} : vector<256x16xf32> to vector<256x8xf32>
    %67 = arith.mulf %65, %66 : vector<256x8xf32>
    %c0_18 = arith.constant 0 : index
    %c0_19 = arith.constant 0 : index
    %c0_20 = arith.constant 0 : index
    %68 = vector.load %arg4[%c0_18, %c0_19, %c0_20] : memref<1x256x8xf32, #tpu.memory_space<vmem>>, vector<1x256x8xf32>
    %69 = vector.shape_cast %68 : vector<1x256x8xf32> to vector<256x8xf32>
    %70 = vector.shape_cast %67 : vector<256x8xf32> to vector<1x256x8xf32>
    tpu.vector_store %arg4[%c0_18, %c0_19, %c0_20], %70 {strides = array<i32>} : memref<1x256x8xf32, #tpu.memory_space<vmem>>, vector<1x256x8xf32>,
    return
  }
  func.func @transform_0(%arg0: i32) -> (i32, i32, i32, i32) {
    %c0_i32 = arith.constant 0 : i32
    %c0_i32_0 = arith.constant 0 : i32
    %c0_i32_1 = arith.constant 0 : i32
    %c0_i32_2 = arith.constant 0 : i32
    return %arg0, %c0_i32, %c0_i32_0, %c0_i32_1 : i32, i32, i32, i32
  }
  func.func @transform_1(%arg0: i32) -> (i32, i32, i32) {
    %c0_i32 = arith.constant 0 : i32
    %c0_i32_0 = arith.constant 0 : i32
    %c0_i32_1 = arith.constant 0 : i32
    %c0_i32_2 = arith.constant 0 : i32
    return %c0_i32, %c0_i32_0, %c0_i32_1 : i32, i32, i32
  }
  func.func @transform_2(%arg0: i32) -> (i32, i32) {
    %c0_i32 = arith.constant 0 : i32
    %c0_i32_0 = arith.constant 0 : i32
    %c0_i32_1 = arith.constant 0 : i32
    return %c0_i32, %c0_i32_0 : i32, i32
  }
  func.func @transform_3(%arg0: i32) -> (i32, i32, i32) {
    %c0_i32 = arith.constant 0 : i32
    %c0_i32_0 = arith.constant 0 : i32
    %c0_i32_1 = arith.constant 0 : i32
    return %arg0, %c0_i32, %c0_i32_0 : i32, i32, i32
  }
}

</mosaic_0001>

<llo_original>
// kernel: tpu_custom_call.1
$region0: #{tpu_custom_call.1}
  #allocation0 [shape = 'u32[]', space=smem, size = 0x4, offset = 0x4, fixed_abs, tag = 'smem constant byte address 0x4 - core index']
  #allocation1 [shape = 'u32[144,128]{1,0:T(1,128)}', space=vmem, size = 0x12000, scoped, tag = 'internal scratch']
  %s0 = inlined_call_operand.vmem [shape: bf16[2,18,18,8], index: 0, kind: input, shape index: {}]
  %s1 = inlined_call_operand.vmem [shape: bf16[9,8,16], index: 1, kind: input, shape index: {}]
  %s2 = inlined_call_operand.vmem [shape: f32[1,16], index: 2, kind: input, shape index: {}]
  %s3 = inlined_call_operand.vmem [shape: f32[2,256,8], index: 3, kind: output, shape index: {}]
  %s4 = sld [smem:[#allocation0]]
  $region45: #{tpu_custom_call.1} parent=0
    _
  %s6 = ssub.s32 1, %s4
  %s7 = scalar_select 0, %s6, %s4
  loop: start=0, step=1, limit=4
  $region2: #{tpu_custom_call.1} parent=0 // loop_pre_header
    _
  $region3: #{tpu_custom_call.1} parent=0 // loop_header
    %s9 = sphi 0, %s13
    %p10 = scmp.ge.s32.totalorder %s9, 4
    %s19 = sphi 0, %s21
    %s22 = sphi 0, %s19
    %s23 = sphi 0, %s22
    %s39 = sphi 0, %s23
    %s43 = sphi 0, %s43
    %s45 = sphi 0, %s43
    %s46 = sphi 0, %s45
    %s60 = sphi 0, %s46
    %s64 = sphi 0, %s64
    %s66 = sphi 0, %s64
    %s67 = sphi 0, %s66
    %s81 = sphi 0, %s67
    %s87 = sphi 0, %s89
    %s90 = sphi 0, %s87
    %s91 = sphi 0, %s90
    %s107 = sphi 0, %s91
  $region4: #{tpu_custom_call.1} parent=0 // loop_header_branch
    %12 = sbr.rel (%p10) target = $region8
  $region5: #{tpu_custom_call.1} parent=0 // loop_body
    %s14 = ssub.s32 %s9, 1
    %s15 = ssub.s32 %s9, 2
    %s16 = sadd.s32 %s9, 1
    %s17 = ssub.s32 %s9, %s16
    %p18 = scmp.eq.s32.totalorder %s17, 0
    %s20 = sadd.s32 %s19, 1
    %s21 = scalar_select %p18, %s19, %s20
    %p24 = pneg %p18
    %p25 = scmp.eq.s32.totalorder %s9, 1
    %p26 = por %p24, %p25
    %p27 = scmp.ne.s32.totalorder %s19, %s22
    %p28 = scmp.eq.s32.totalorder %s9, 0
    %p29 = por %p27, %p28
    %p30 = scmp.ne.s32.totalorder %s19, %s22
    %p31 = scmp.eq.s32.totalorder %s14, 1
    %p32 = por %p30, %p31
    %p33 = scmp.ne.s32.totalorder %s22, %s23
    %p34 = scmp.eq.s32.totalorder %s14, 0
    %p35 = por %p33, %p34
    %p36 = scmp.ne.s32.totalorder %s22, %s23
    %p37 = scmp.eq.s32.totalorder %s15, 1
    %p38 = por %p36, %p37
    %p40 = scmp.ne.s32.totalorder %s23, %s39
    %p41 = scmp.eq.s32.totalorder %s15, 0
    %p42 = por %p40, %p41
    %s44 = sadd.s32 %s43, 1
    %p47 = scmp.eq.s32.totalorder %s9, 1
    %p48 = scmp.ne.s32.totalorder %s43, %s45
    %p49 = scmp.eq.s32.totalorder %s9, 0
    %p50 = por %p48, %p49
    %p51 = scmp.ne.s32.totalorder %s43, %s45
    %p52 = scmp.eq.s32.totalorder %s14, 1
    %p53 = por %p51, %p52
    %p54 = scmp.ne.s32.totalorder %s45, %s46
    %p55 = scmp.eq.s32.totalorder %s14, 0
    %p56 = por %p54, %p55
    %p57 = scmp.ne.s32.totalorder %s45, %s46
    %p58 = scmp.eq.s32.totalorder %s15, 1
    %p59 = por %p57, %p58
    %p61 = scmp.ne.s32.totalorder %s46, %s60
    %p62 = scmp.eq.s32.totalorder %s15, 0
    %p63 = por %p61, %p62
    %s65 = sadd.s32 %s64, 1
    %p68 = scmp.eq.s32.totalorder %s9, 1
    %p69 = scmp.ne.s32.totalorder %s64, %s66
    %p70 = scmp.eq.s32.totalorder %s9, 0
    %p71 = por %p69, %p70
    %p72 = scmp.ne.s32.totalorder %s64, %s66
    %p73 = scmp.eq.s32.totalorder %s14, 1
    %p74 = por %p72, %p73
    %p75 = scmp.ne.s32.totalorder %s66, %s67
    %p76 = scmp.eq.s32.totalorder %s14, 0
    %p77 = por %p75, %p76
    %p78 = scmp.ne.s32.totalorder %s66, %s67
    %p79 = scmp.eq.s32.totalorder %s15, 1
    %p80 = por %p78, %p79
    %p82 = scmp.ne.s32.totalorder %s67, %s81
    %p83 = scmp.eq.s32.totalorder %s15, 0
    %p84 = por %p82, %p83
    %s85 = ssub.s32 %s9, %s16
    %p86 = scmp.eq.s32.totalorder %s85, 0
    %s88 = sadd.s32 %s87, 1
    %s89 = scalar_select %p86, %s87, %s88
    %p92 = pneg %p86
    %p93 = scmp.eq.s32.totalorder %s9, 1
    %p94 = por %p92, %p93
    %p95 = scmp.ne.s32.totalorder %s87, %s90
    %p96 = scmp.eq.s32.totalorder %s9, 0
    %p97 = por %p95, %p96
    %p98 = scmp.ne.s32.totalorder %s87, %s90
    %p99 = scmp.eq.s32.totalorder %s14, 1
    %p100 = por %p98, %p99
    %p101 = scmp.ne.s32.totalorder %s90, %s91
    %p102 = scmp.eq.s32.totalorder %s14, 0
    %p103 = por %p101, %p102
    %p104 = scmp.ne.s32.totalorder %s90, %s91
    %p105 = scmp.eq.s32.totalorder %s15, 1
    %p106 = por %p104, %p105
    %p108 = scmp.ne.s32.totalorder %s91, %s107
    %p109 = scmp.eq.s32.totalorder %s15, 0
    %p110 = por %p108, %p109
    %p111 = scmp.le.s32.totalorder 1, %s9
    %p112 = scmp.lt.s32.totalorder %s9, 3
    %p113 = pnand %p111, %p112
    %p114 = pneg %p113
    // Predicated region
    $region9: #{tpu_custom_call.1} parent=5 // pred_check
      _
    $region10: #{tpu_custom_call.1} parent=5 // pred_check_branch
      %116 = sbr.rel (%p113) target = $region12
    $region11: #{tpu_custom_call.1} parent=5 // pred_region
      %s117 = ssub.s32 %s9, 1
      // Predicated region
      $region13: #{tpu_custom_call.1} parent=11 // pred_check
        %p118 = pneg %p56
      $region14: #{tpu_custom_call.1} parent=11 // pred_check_branch
        %120 = sbr.rel (%p118) target = $region16
      $region15: #{tpu_custom_call.1} parent=11 // pred_region
        _
      $region16: #{tpu_custom_call.1} parent=11 // pred_fallthru
        _
      // Predicated region
      $region17: #{tpu_custom_call.1} parent=11 // pred_check
        %p121 = pneg %p77
      $region18: #{tpu_custom_call.1} parent=11 // pred_check_branch
        %123 = sbr.rel (%p121) target = $region20
      $region19: #{tpu_custom_call.1} parent=11 // pred_region
        _
      $region20: #{tpu_custom_call.1} parent=11 // pred_fallthru
        _
    $region12: #{tpu_custom_call.1} parent=5 // pred_fallthru
      _
    %p124 = scmp.lt.s32.totalorder %s9, 2
    // Predicated region
    $region21: #{tpu_custom_call.1} parent=5 // pred_check
      %p125 = pneg %p124
    $region22: #{tpu_custom_call.1} parent=5 // pred_check_branch
      %127 = sbr.rel (%p125) target = $region24
    $region23: #{tpu_custom_call.1} parent=5 // pred_region
      // Predicated region
      $region25: #{tpu_custom_call.1} parent=23 // pred_check
        %p128 = pneg %p29
      $region26: #{tpu_custom_call.1} parent=23 // pred_check_branch
        %130 = sbr.rel (%p128) target = $region28
      $region27: #{tpu_custom_call.1} parent=23 // pred_region
        %p131 = scmp.lt.s32.totalorder %s9, 1
        %s132 = scalar_select %p131, %s9, 1
        %s133 = smul.addr %s132, 54
        %s134 = smul.addr %s133, 4
        %s135 = scalar_lea.vmem %s0, %s134
      $region28: #{tpu_custom_call.1} parent=23 // pred_fallthru
        _
    $region24: #{tpu_custom_call.1} parent=5 // pred_fallthru
      _
    %p136 = scmp.le.s32.totalorder 1, %s9
    %p137 = scmp.lt.s32.totalorder %s9, 3
    %p138 = pnand %p136, %p137
    %p139 = pneg %p138
    // Predicated region
    $region29: #{tpu_custom_call.1} parent=5 // pred_check
      _
    $region30: #{tpu_custom_call.1} parent=5 // pred_check_branch
      %141 = sbr.rel (%p138) target = $region32
    $region31: #{tpu_custom_call.1} parent=5 // pred_region
      %s142 = ssub.s32 %s9, 1
      %p143 = scmp.lt.s32.totalorder %s14, 1
      %s144 = scalar_select %p143, %s14, 1
      %s145 = smul.addr %s144, 54
      %s146 = smul.addr %s145, 4
      %s147 = scalar_lea.vmem %s0, %s146
      %p148 = pneg %p35
      %p149 = pneg %p32
      %p150 = pneg %p56
      %p151 = pneg %p53
      %p152 = pneg %p77
      %p153 = pneg %p74
      %p154 = pneg %p103
      %p155 = pneg %p100
      %p156 = scmp.lt.s32.totalorder %s14, 1
      %s157 = scalar_select %p156, %s14, 1
      %s158 = smul.addr %s157, 32
      %s159 = smul.addr %s158, 8
      %s160 = scalar_lea.vmem %s3, %s159
      %p161 = scmp.lt.s32.totalorder %s14, 1
      %s162 = scalar_select %p161, %s14, 1
      %s163 = smul.addr %s162, 54
      %s164 = smul.addr %s163, 4
      %s165 = scalar_lea.vmem %s0, %s164
      %p166 = scmp.lt.s32.totalorder %s14, 1
      %s167 = scalar_select %p166, %s14, 1
      %s168 = smul.addr %s167, 32
      %s169 = smul.addr %s168, 8
      %s170 = scalar_lea.vmem %s3, %s169
      %v171 = vld [vmem:[%s165] sm:$0xf]
      %v172 = vld [vmem:[%s165 + $0x4] sm:$0xf]
      %v173 = vld [vmem:[%s165 + $0x8] sm:$0x1]
      %v174 = vld [vmem:[%s165 + $0xc] sm:$0xf]
      %v175 = vld [vmem:[%s165 + $0x10] sm:$0xf]
      %v176 = vld [vmem:[%s165 + $0x14] sm:$0x1]
      %v177 = vld [vmem:[%s165 + $0x18] sm:$0xf]
      %v178 = vld [vmem:[%s165 + $0x1c] sm:$0xf]
      %v179 = vld [vmem:[%s165 + $0x20] sm:$0x1]
      %v180 = vld [vmem:[%s165 + $0x24] sm:$0xf]
      %v181 = vld [vmem:[%s165 + $0x28] sm:$0xf]
      %v182 = vld [vmem:[%s165 + $0x2c] sm:$0x1]
      %v183 = vld [vmem:[%s165 + $0x30] sm:$0xf]
      %v184 = vld [vmem:[%s165 + $0x34] sm:$0xf]
      %v185 = vld [vmem:[%s165 + $0x38] sm:$0x1]
      %v186 = vld [vmem:[%s165 + $0x3c] sm:$0xf]
      %v187 = vld [vmem:[%s165 + $0x40] sm:$0xf]
      %v188 = vld [vmem:[%s165 + $0x44] sm:$0x1]
      %v189 = vld [vmem:[%s165 + $0x48] sm:$0xf]
      %v190 = vld [vmem:[%s165 + $0x4c] sm:$0xf]
      %v191 = vld [vmem:[%s165 + $0x50] sm:$0x1]
      %v192 = vld [vmem:[%s165 + $0x54] sm:$0xf]
      %v193 = vld [vmem:[%s165 + $0x58] sm:$0xf]
      %v194 = vld [vmem:[%s165 + $0x5c] sm:$0x1]
      %v195 = vld [vmem:[%s165 + $0x60] sm:$0xf]
      %v196 = vld [vmem:[%s165 + $0x64] sm:$0xf]
      %v197 = vld [vmem:[%s165 + $0x68] sm:$0x1]
      %v198 = vld [vmem:[%s165 + $0x6c] sm:$0xf]
      %v199 = vld [vmem:[%s165 + $0x70] sm:$0xf]
      %v200 = vld [vmem:[%s165 + $0x74] sm:$0x1]
      %v201 = vld [vmem:[%s165 + $0x78] sm:$0xf]
      %v202 = vld [vmem:[%s165 + $0x7c] sm:$0xf]
      %v203 = vld [vmem:[%s165 + $0x80] sm:$0x1]
      %v204 = vld [vmem:[%s165 + $0x84] sm:$0xf]
      %v205 = vld [vmem:[%s165 + $0x88] sm:$0xf]
      %v206 = vld [vmem:[%s165 + $0x8c] sm:$0x1]
      %v207 = vld [vmem:[%s165 + $0x90] sm:$0xf]
      %v208 = vld [vmem:[%s165 + $0x94] sm:$0xf]
      %v209 = vld [vmem:[%s165 + $0x98] sm:$0x1]
      %v210 = vld [vmem:[%s165 + $0x9c] sm:$0xf]
      %v211 = vld [vmem:[%s165 + $0xa0] sm:$0xf]
      %v212 = vld [vmem:[%s165 + $0xa4] sm:$0x1]
      %v213 = vld [vmem:[%s165 + $0xa8] sm:$0xf]
      %v214 = vld [vmem:[%s165 + $0xac] sm:$0xf]
      %v215 = vld [vmem:[%s165 + $0xb0] sm:$0x1]
      %v216 = vld [vmem:[%s165 + $0xb4] sm:$0xf]
      %v217 = vld [vmem:[%s165 + $0xb8] sm:$0xf]
      %v218 = vld [vmem:[%s165 + $0xbc] sm:$0x1]
      %v219 = vld [vmem:[%s165 + $0xc0] sm:$0xf]
      %v220 = vld [vmem:[%s165 + $0xc4] sm:$0xf]
      %v221 = vld [vmem:[%s165 + $0xc8] sm:$0x1]
      %v222 = vld [vmem:[%s165 + $0xcc] sm:$0xf]
      %v223 = vld [vmem:[%s165 + $0xd0] sm:$0xf]
      %v224 = vld [vmem:[%s165 + $0xd4] sm:$0x1]
      %v225 = vunpack.c.l.bf16 %v171
      %v226 = vunpack.c.l.bf16 %v172
      %v227 = vunpack.c.l.bf16 %v173
      %v228 = vunpack.c.l.bf16 %v174
      %v229 = vunpack.c.l.bf16 %v175
      %v230 = vunpack.c.l.bf16 %v176
      %v231 = vunpack.c.l.bf16 %v177
      %v232 = vunpack.c.l.bf16 %v178
      %v233 = vunpack.c.l.bf16 %v179
      %v234 = vunpack.c.l.bf16 %v180
      %v235 = vunpack.c.l.bf16 %v181
      %v236 = vunpack.c.l.bf16 %v182
      %v237 = vunpack.c.l.bf16 %v183
      %v238 = vunpack.c.l.bf16 %v184
      %v239 = vunpack.c.l.bf16 %v185
      %v240 = vunpack.c.l.bf16 %v186
      %v241 = vunpack.c.l.bf16 %v187
      %v242 = vunpack.c.l.bf16 %v188
      %v243 = vunpack.c.l.bf16 %v189
      %v244 = vunpack.c.l.bf16 %v190
      %v245 = vunpack.c.l.bf16 %v191
      %v246 = vunpack.c.l.bf16 %v192
      %v247 = vunpack.c.l.bf16 %v193
      %v248 = vunpack.c.l.bf16 %v194
      %v249 = vunpack.c.l.bf16 %v195
      %v250 = vunpack.c.l.bf16 %v196
      %v251 = vunpack.c.l.bf16 %v197
      %v252 = vunpack.c.l.bf16 %v198
      %v253 = vunpack.c.l.bf16 %v199
      %v254 = vunpack.c.l.bf16 %v200
      %v255 = vunpack.c.l.bf16 %v201
      %v256 = vunpack.c.l.bf16 %v202
      %v257 = vunpack.c.l.bf16 %v203
      %v258 = vunpack.c.l.bf16 %v204
      %v259 = vunpack.c.l.bf16 %v205
      %v260 = vunpack.c.l.bf16 %v206
      %v261 = vunpack.c.l.bf16 %v207
      %v262 = vunpack.c.l.bf16 %v208
      %v263 = vunpack.c.l.bf16 %v209
      %v264 = vunpack.c.l.bf16 %v210
      %v265 = vunpack.c.l.bf16 %v211
      %v266 = vunpack.c.l.bf16 %v212
      %v267 = vunpack.c.l.bf16 %v213
      %v268 = vunpack.c.l.bf16 %v214
      %v269 = vunpack.c.l.bf16 %v215
      %v270 = vunpack.c.l.bf16 %v216
      %v271 = vunpack.c.l.bf16 %v217
      %v272 = vunpack.c.l.bf16 %v218
      %v273 = vunpack.c.l.bf16 %v219
      %v274 = vunpack.c.l.bf16 %v220
      %v275 = vunpack.c.l.bf16 %v221
      %v276 = vunpack.c.l.bf16 %v222
      %v277 = vunpack.c.l.bf16 %v223
      %v278 = vunpack.c.l.bf16 %v224
      %v279 = vld [vmem:[%s1] sm:$0xf]
      %v280 = vld [vmem:[%s1 + $0x4] sm:$0xf]
      %v281 = vld [vmem:[%s1 + $0x8] sm:$0xf]
      %v282 = vld [vmem:[%s1 + $0xc] sm:$0xf]
      %v283 = vld [vmem:[%s1 + $0x10] sm:$0xf]
      %v284 = vld [vmem:[%s1 + $0x14] sm:$0xf]
      %v285 = vld [vmem:[%s1 + $0x18] sm:$0xf]
      %v286 = vld [vmem:[%s1 + $0x1c] sm:$0xf]
      %v287 = vld [vmem:[%s1 + $0x20] sm:$0xf]
      %v288 = vunpack.c.l.bf16 %v279
      %v289 = vunpack.c.l.bf16 %v280
      %v290 = vunpack.c.l.bf16 %v281
      %v291 = vunpack.c.l.bf16 %v282
      %v292 = vunpack.c.l.bf16 %v283
      %v293 = vunpack.c.l.bf16 %v284
      %v294 = vunpack.c.l.bf16 %v285
      %v295 = vunpack.c.l.bf16 %v286
      %v296 = vunpack.c.l.bf16 %v287
      %vm345 = vcmask 1046528
      %v346 = vrot.slane %v225, 1
      %v347 = vrot.slane %v226, 1
      %v348 = vsel %vm345, %v346, %v347
      %v349 = vrot.slane %v227, 1
      %v350 = vsel %vm345, %v347, %v349
      %v351 = vrot.slane %v228, 1
      %v352 = vrot.slane %v229, 1
      %v353 = vsel %vm345, %v351, %v352
      %v354 = vrot.slane %v230, 1
      %v355 = vsel %vm345, %v352, %v354
      %v356 = vrot.slane %v231, 1
      %v357 = vrot.slane %v232, 1
      %v358 = vsel %vm345, %v356, %v357
      %v359 = vrot.slane %v233, 1
      %v360 = vsel %vm345, %v357, %v359
      %v361 = vrot.slane %v234, 1
      %v362 = vrot.slane %v235, 1
      %v363 = vsel %vm345, %v361, %v362
      %v364 = vrot.slane %v236, 1
      %v365 = vsel %vm345, %v362, %v364
      %v366 = vrot.slane %v237, 1
      %v367 = vrot.slane %v238, 1
      %v368 = vsel %vm345, %v366, %v367
      %v369 = vrot.slane %v239, 1
      %v370 = vsel %vm345, %v367, %v369
      %v371 = vrot.slane %v240, 1
      %v372 = vrot.slane %v241, 1
      %v373 = vsel %vm345, %v371, %v372
      %v374 = vrot.slane %v242, 1
      %v375 = vsel %vm345, %v372, %v374
      %v376 = vrot.slane %v243, 1
      %v377 = vrot.slane %v244, 1
      %v378 = vsel %vm345, %v376, %v377
      %v379 = vrot.slane %v245, 1
      %v380 = vsel %vm345, %v377, %v379
      %v381 = vrot.slane %v246, 1
      %v382 = vrot.slane %v247, 1
      %v383 = vsel %vm345, %v381, %v382
      %v384 = vrot.slane %v248, 1
      %v385 = vsel %vm345, %v382, %v384
      %v386 = vrot.slane %v249, 1
      %v387 = vrot.slane %v250, 1
      %v388 = vsel %vm345, %v386, %v387
      %v389 = vrot.slane %v251, 1
      %v390 = vsel %vm345, %v387, %v389
      %v391 = vrot.slane %v252, 1
      %v392 = vrot.slane %v253, 1
      %v393 = vsel %vm345, %v391, %v392
      %v394 = vrot.slane %v254, 1
      %v395 = vsel %vm345, %v392, %v394
      %v396 = vrot.slane %v255, 1
      %v397 = vrot.slane %v256, 1
      %v398 = vsel %vm345, %v396, %v397
      %v399 = vrot.slane %v257, 1
      %v400 = vsel %vm345, %v397, %v399
      %v401 = vrot.slane %v258, 1
      %v402 = vrot.slane %v259, 1
      %v403 = vsel %vm345, %v401, %v402
      %v404 = vrot.slane %v260, 1
      %v405 = vsel %vm345, %v402, %v404
      %v406 = vrot.slane %v261, 1
      %v407 = vrot.slane %v262, 1
      %v408 = vsel %vm345, %v406, %v407
      %v409 = vrot.slane %v263, 1
      %v410 = vsel %vm345, %v407, %v409
      %v411 = vrot.slane %v264, 1
      %v412 = vrot.slane %v265, 1
      %v413 = vsel %vm345, %v411, %v412
      %v414 = vrot.slane %v266, 1
      %v415 = vsel %vm345, %v412, %v414
      %v416 = vrot.slane %v267, 1
      %v417 = vrot.slane %v268, 1
      %v418 = vsel %vm345, %v416, %v417
      %v419 = vrot.slane %v269, 1
      %v420 = vsel %vm345, %v417, %v419
      %v421 = vrot.slane %v270, 1
      %v422 = vrot.slane %v271, 1
      %v423 = vsel %vm345, %v421, %v422
      %v424 = vrot.slane %v272, 1
      %v425 = vsel %vm345, %v422, %v424
      %vm426 = vcmask 64512
      %v427 = vsel %vm426, %v348, 0
      %v429 = vsel %vm426, %v350, 0
      %v431 = vsel %vm426, %v353, 0
      %v433 = vsel %vm426, %v355, 0
      %v435 = vsel %vm426, %v358, 0
      %v437 = vsel %vm426, %v360, 0
      %v439 = vsel %vm426, %v363, 0
      %v441 = vsel %vm426, %v365, 0
      %v443 = vsel %vm426, %v368, 0
      %v445 = vsel %vm426, %v370, 0
      %v447 = vsel %vm426, %v373, 0
      %v449 = vsel %vm426, %v375, 0
      %v451 = vsel %vm426, %v378, 0
      %v453 = vsel %vm426, %v380, 0
      %v455 = vsel %vm426, %v383, 0
      %v457 = vsel %vm426, %v385, 0
      %v459 = vsel %vm426, %v388, 0
      %v461 = vsel %vm426, %v390, 0
      %v463 = vsel %vm426, %v393, 0
      %v465 = vsel %vm426, %v395, 0
      %v467 = vsel %vm426, %v398, 0
      %v469 = vsel %vm426, %v400, 0
      %v471 = vsel %vm426, %v403, 0
      %v473 = vsel %vm426, %v405, 0
      %v475 = vsel %vm426, %v408, 0
      %v477 = vsel %vm426, %v410, 0
      %v479 = vsel %vm426, %v413, 0
      %v481 = vsel %vm426, %v415, 0
      %v483 = vsel %vm426, %v418, 0
      %v485 = vsel %vm426, %v420, 0
      %v487 = vsel %vm426, %v423, 0
      %v489 = vsel %vm426, %v425, 0
      %491 = vmatprep.subr.mxu0 0.0
      %492 = vmatpush1.msra.mxu0 %v289
      %493 = vmatprep.subr.mxu0 0.0
      %494 = vmatpush1.msra.mxu0 0.0
      %495 = vmatprep.subr.mxu0 0.0
      %496 = vmatpush1.msra.mxu0 0.0
      %497 = vmatprep.subr.mxu0 0.0
      %498 = vmatpush1.msra.mxu0 0.0
      %499 = vmatprep.subr.mxu0 0.0
      %500 = vmatpush1.msra.mxu0 0.0
      %501 = vmatprep.subr.mxu0 0.0
      %502 = vmatpush1.msra.mxu0 0.0
      %503 = vmatprep.subr.mxu0 0.0
      %504 = vmatpush1.msra.mxu0 0.0
      %505 = vmatprep.subr.mxu0 0.0
      %506 = vmatpush1.msra.mxu0 0.0
      %507 = vmatprep.subr.mxu0 0.0
      %508 = vmatpush1.msra.mxu0 0.0
      %509 = vmatprep.subr.mxu0 0.0
      %510 = vmatpush1.msra.mxu0 0.0
      %511 = vmatprep.subr.mxu0 0.0
      %512 = vmatpush1.msra.mxu0 0.0
      %513 = vmatprep.subr.mxu0 0.0
      %514 = vmatpush1.msra.mxu0 0.0
      %515 = vmatprep.subr.mxu0 0.0
      %516 = vmatpush1.msra.mxu0 0.0
      %517 = vmatprep.subr.mxu0 0.0
      %518 = vmatpush1.msra.mxu0 0.0
      %519 = vmatprep.subr.mxu0 0.0
      %520 = vmatpush1.msra.mxu0 0.0
      %521 = vmatprep.subr.mxu0 0.0
      %522 = vmatpush1.msra.mxu0 0.0
      %523 = vmatprep.subr.mxu0 0.0
      %524 = vmatpush1.msra.mxu0 0.0
      %525 = vmatprep.subr.mxu0 0.0
      %526 = vmatpush1.msra.mxu0 0.0
      %527 = vmatprep.subr.mxu0 0.0
      %528 = vmatpush1.msra.mxu0 0.0
      %529 = vmatprep.subr.mxu0 0.0
      %530 = vmatpush1.msra.mxu0 0.0
      %531 = vmatprep.subr.mxu0 0.0
      %532 = vmatpush1.msra.mxu0 0.0
      %533 = vmatprep.subr.mxu0 0.0
      %534 = vmatpush1.msra.mxu0 0.0
      %535 = vmatprep.subr.mxu0 0.0
      %536 = vmatpush1.msra.mxu0 0.0
      %537 = vmatprep.subr.mxu0 0.0
      %538 = vmatpush1.msra.mxu0 0.0
      %539 = vmatprep.subr.mxu0 0.0
      %540 = vmatpush1.msra.mxu0 0.0
      %541 = vmatprep.subr.mxu0 0.0
      %542 = vmatpush1.msra.mxu0 0.0
      %543 = vmatprep.subr.mxu0 0.0
      %544 = vmatpush1.msra.mxu0 0.0
      %545 = vmatprep.subr.mxu0 0.0
      %546 = vmatpush1.msra.mxu0 0.0
      %547 = vmatprep.subr.mxu0 0.0
      %548 = vmatpush1.msra.mxu0 0.0
      %549 = vmatprep.subr.mxu0 0.0
      %550 = vmatpush1.msra.mxu0 0.0
      %551 = vmatprep.subr.mxu0 0.0
      %552 = vmatpush1.msra.mxu0 0.0
      %553 = vmatprep.subr.mxu0 0.0
      %554 = vmatpush1.msra.mxu0 0.0
      %555 = vmatprep.mubr.f32.mxu0 0.0
      %556 = vmatmul.mubr.f32.gmra.mrb[0].mxu0 %v427
      %v557 = vpop.f32.mrb[0].mxu0
      %v558 = vadd.f32 0.0, %v557
      %v559 = vpop.f32.mrb[0].mxu0
      %560 = vmatprep.mubr.f32.mxu0 0.0
      %561 = vmatmul.mubr.f32.gmra.mrb[0].mxu0 %v429
      %v562 = vpop.f32.mrb[0].mxu0
      %v563 = vadd.f32 0.0, %v562
      %v564 = vpop.f32.mrb[0].mxu0
      %565 = vmatprep.mubr.f32.mxu0 0.0
      %566 = vmatmul.mubr.f32.gmra.mrb[0].mxu0 %v431
      %v567 = vpop.f32.mrb[0].mxu0
      %v568 = vadd.f32 0.0, %v567
      %v569 = vpop.f32.mrb[0].mxu0
      %570 = vmatprep.mubr.f32.mxu0 0.0
      %571 = vmatmul.mubr.f32.gmra.mrb[0].mxu0 %v433
      %v572 = vpop.f32.mrb[0].mxu0
      %v573 = vadd.f32 0.0, %v572
      %v574 = vpop.f32.mrb[0].mxu0
      %575 = vmatprep.mubr.f32.mxu0 0.0
      %576 = vmatmul.mubr.f32.gmra.mrb[0].mxu0 %v435
      %v577 = vpop.f32.mrb[0].mxu0
      %v578 = vadd.f32 0.0, %v577
      %v579 = vpop.f32.mrb[0].mxu0
      %580 = vmatprep.mubr.f32.mxu0 0.0
      %581 = vmatmul.mubr.f32.gmra.mrb[0].mxu0 %v437
      %v582 = vpop.f32.mrb[0].mxu0
      %v583 = vadd.f32 0.0, %v582
      %v584 = vpop.f32.mrb[0].mxu0
      %585 = vmatprep.mubr.f32.mxu0 0.0
      %586 = vmatmul.mubr.f32.gmra.mrb[0].mxu0 %v439
      %v587 = vpop.f32.mrb[0].mxu0
      %v588 = vadd.f32 0.0, %v587
      %v589 = vpop.f32.mrb[0].mxu0
      %590 = vmatprep.mubr.f32.mxu0 0.0
      %591 = vmatmul.mubr.f32.gmra.mrb[0].mxu0 %v441
      %v592 = vpop.f32.mrb[0].mxu0
      %v593 = vadd.f32 0.0, %v592
      %v594 = vpop.f32.mrb[0].mxu0
      %595 = vmatprep.mubr.f32.mxu0 0.0
      %596 = vmatmul.mubr.f32.gmra.mrb[0].mxu0 %v443
      %v597 = vpop.f32.mrb[0].mxu0
      %v598 = vadd.f32 0.0, %v597
      %v599 = vpop.f32.mrb[0].mxu0
      %600 = vmatprep.mubr.f32.mxu0 0.0
      %601 = vmatmul.mubr.f32.gmra.mrb[0].mxu0 %v445
      %v602 = vpop.f32.mrb[0].mxu0
      %v603 = vadd.f32 0.0, %v602
      %v604 = vpop.f32.mrb[0].mxu0
      %605 = vmatprep.mubr.f32.mxu0 0.0
      %606 = vmatmul.mubr.f32.gmra.mrb[0].mxu0 %v447
      %v607 = vpop.f32.mrb[0].mxu0
      %v608 = vadd.f32 0.0, %v607
      %v609 = vpop.f32.mrb[0].mxu0
      %610 = vmatprep.mubr.f32.mxu0 0.0
      %611 = vmatmul.mubr.f32.gmra.mrb[0].mxu0 %v449
      %v612 = vpop.f32.mrb[0].mxu0
      %v613 = vadd.f32 0.0, %v612
      %v614 = vpop.f32.mrb[0].mxu0
      %615 = vmatprep.mubr.f32.mxu0 0.0
      %616 = vmatmul.mubr.f32.gmra.mrb[0].mxu0 %v451
      %v617 = vpop.f32.mrb[0].mxu0
      %v618 = vadd.f32 0.0, %v617
      %v619 = vpop.f32.mrb[0].mxu0
      %620 = vmatprep.mubr.f32.mxu0 0.0
      %621 = vmatmul.mubr.f32.gmra.mrb[0].mxu0 %v453
      %v622 = vpop.f32.mrb[0].mxu0
      %v623 = vadd.f32 0.0, %v622
      %v624 = vpop.f32.mrb[0].mxu0
      %625 = vmatprep.mubr.f32.mxu0 0.0
      %626 = vmatmul.mubr.f32.gmra.mrb[0].mxu0 %v455
      %v627 = vpop.f32.mrb[0].mxu0
      %v628 = vadd.f32 0.0, %v627
      %v629 = vpop.f32.mrb[0].mxu0
      %630 = vmatprep.mubr.f32.mxu0 0.0
      %631 = vmatmul.mubr.f32.gmra.mrb[0].mxu0 %v457
      %v632 = vpop.f32.mrb[0].mxu0
      %v633 = vadd.f32 0.0, %v632
      %v634 = vpop.f32.mrb[0].mxu0
      %635 = vmatprep.mubr.f32.mxu0 0.0
      %636 = vmatmul.mubr.f32.gmra.mrb[0].mxu0 %v459
      %v637 = vpop.f32.mrb[0].mxu0
      %v638 = vadd.f32 0.0, %v637
      %v639 = vpop.f32.mrb[0].mxu0
      %640 = vmatprep.mubr.f32.mxu0 0.0
      %641 = vmatmul.mubr.f32.gmra.mrb[0].mxu0 %v461
      %v642 = vpop.f32.mrb[0].mxu0
      %v643 = vadd.f32 0.0, %v642
      %v644 = vpop.f32.mrb[0].mxu0
      %645 = vmatprep.mubr.f32.mxu0 0.0
      %646 = vmatmul.mubr.f32.gmra.mrb[0].mxu0 %v463
      %v647 = vpop.f32.mrb[0].mxu0
      %v648 = vadd.f32 0.0, %v647
      %v649 = vpop.f32.mrb[0].mxu0
      %650 = vmatprep.mubr.f32.mxu0 0.0
      %651 = vmatmul.mubr.f32.gmra.mrb[0].mxu0 %v465
      %v652 = vpop.f32.mrb[0].mxu0
      %v653 = vadd.f32 0.0, %v652
      %v654 = vpop.f32.mrb[0].mxu0
      %655 = vmatprep.mubr.f32.mxu0 0.0
      %656 = vmatmul.mubr.f32.gmra.mrb[0].mxu0 %v467
      %v657 = vpop.f32.mrb[0].mxu0
      %v658 = vadd.f32 0.0, %v657
      %v659 = vpop.f32.mrb[0].mxu0
      %660 = vmatprep.mubr.f32.mxu0 0.0
      %661 = vmatmul.mubr.f32.gmra.mrb[0].mxu0 %v469
      %v662 = vpop.f32.mrb[0].mxu0
      %v663 = vadd.f32 0.0, %v662
      %v664 = vpop.f32.mrb[0].mxu0
      %665 = vmatprep.mubr.f32.mxu0 0.0
      %666 = vmatmul.mubr.f32.gmra.mrb[0].mxu0 %v471
      %v667 = vpop.f32.mrb[0].mxu0
      %v668 = vadd.f32 0.0, %v667
      %v669 = vpop.f32.mrb[0].mxu0
      %670 = vmatprep.mubr.f32.mxu0 0.0
      %671 = vmatmul.mubr.f32.gmra.mrb[0].mxu0 %v473
      %v672 = vpop.f32.mrb[0].mxu0
      %v673 = vadd.f32 0.0, %v672
      %v674 = vpop.f32.mrb[0].mxu0
      %675 = vmatprep.mubr.f32.mxu0 0.0
      %676 = vmatmul.mubr.f32.gmra.mrb[0].mxu0 %v475
      %v677 = vpop.f32.mrb[0].mxu0
      %v678 = vadd.f32 0.0, %v677
      %v679 = vpop.f32.mrb[0].mxu0
      %680 = vmatprep.mubr.f32.mxu0 0.0
      %681 = vmatmul.mubr.f32.gmra.mrb[0].mxu0 %v477
      %v682 = vpop.f32.mrb[0].mxu0
      %v683 = vadd.f32 0.0, %v682
      %v684 = vpop.f32.mrb[0].mxu0
      %685 = vmatprep.mubr.f32.mxu0 0.0
      %686 = vmatmul.mubr.f32.gmra.mrb[0].mxu0 %v479
      %v687 = vpop.f32.mrb[0].mxu0
      %v688 = vadd.f32 0.0, %v687
      %v689 = vpop.f32.mrb[0].mxu0
      %690 = vmatprep.mubr.f32.mxu0 0.0
      %691 = vmatmul.mubr.f32.gmra.mrb[0].mxu0 %v481
      %v692 = vpop.f32.mrb[0].mxu0
      %v693 = vadd.f32 0.0, %v692
      %v694 = vpop.f32.mrb[0].mxu0
      %695 = vmatprep.mubr.f32.mxu0 0.0
      %696 = vmatmul.mubr.f32.gmra.mrb[0].mxu0 %v483
      %v697 = vpop.f32.mrb[0].mxu0
      %v698 = vadd.f32 0.0, %v697
      %v699 = vpop.f32.mrb[0].mxu0
      %700 = vmatprep.mubr.f32.mxu0 0.0
      %701 = vmatmul.mubr.f32.gmra.mrb[0].mxu0 %v485
      %v702 = vpop.f32.mrb[0].mxu0
      %v703 = vadd.f32 0.0, %v702
      %v704 = vpop.f32.mrb[0].mxu0
      %705 = vmatprep.mubr.f32.mxu0 0.0
      %706 = vmatmul.mubr.f32.gmra.mrb[0].mxu0 %v487
      %v707 = vpop.f32.mrb[0].mxu0
      %v708 = vadd.f32 0.0, %v707
      %v709 = vpop.f32.mrb[0].mxu0
      %710 = vmatprep.mubr.f32.mxu0 0.0
      %711 = vmatmul.mubr.f32.gmra.mrb[0].mxu0 %v489
      %v712 = vpop.f32.mrb[0].mxu0
      %v713 = vadd.f32 0.0, %v712
      %v714 = vpop.f32.mrb[0].mxu0
      %715 = vdwg.mxu0
      %v716 = vsel %vm426, %v225, 0
      %v718 = vsel %vm426, %v226, 0
      %v720 = vsel %vm426, %v228, 0
      %v722 = vsel %vm426, %v229, 0
      %v724 = vsel %vm426, %v231, 0
      %v726 = vsel %vm426, %v232, 0
      %v728 = vsel %vm426, %v234, 0
      %v730 = vsel %vm426, %v235, 0
      %v732 = vsel %vm426, %v237, 0
      %v734 = vsel %vm426, %v238, 0
      %v736 = vsel %vm426, %v240, 0
      %v738 = vsel %vm426, %v241, 0
      %v740 = vsel %vm426, %v243, 0
      %v742 = vsel %vm426, %v244, 0
      %v744 = vsel %vm426, %v246, 0
      %v746 = vsel %vm426, %v247, 0
      %v748 = vsel %vm426, %v249, 0
      %v750 = vsel %vm426, %v250, 0
      %v752 = vsel %vm426, %v252, 0
      %v754 = vsel %vm426, %v253, 0
      %v756 = vsel %vm426, %v255, 0
      %v758 = vsel %vm426, %v256, 0
      %v760 = vsel %vm426, %v258, 0
      %v762 = vsel %vm426, %v259, 0
      %v764 = vsel %vm426, %v261, 0
      %v766 = vsel %vm426, %v262, 0
      %v768 = vsel %vm426, %v264, 0
      %v770 = vsel %vm426, %v265, 0
      %v772 = vsel %vm426, %v267, 0
      %v774 = vsel %vm426, %v268, 0
      %v776 = vsel %vm426, %v270, 0
      %v778 = vsel %vm426, %v271, 0
      %780 = vmatprep.subr.mxu0 0.0
      %781 = vmatpush1.msra.mxu0 %v288
      %782 = vmatprep.subr.mxu0 0.0
      %783 = vmatpush1.msra.mxu0 0.0
      %784 = vmatprep.subr.mxu0 0.0
      %785 = vmatpush1.msra.mxu0 0.0
      %786 = vmatprep.subr.mxu0 0.0
      %787 = vmatpush1.msra.mxu0 0.0
      %788 = vmatprep.subr.mxu0 0.0
      %789 = vmatpush1.msra.mxu0 0.0
      %790 = vmatprep.subr.mxu0 0.0
      %791 = vmatpush1.msra.mxu0 0.0
      %792 = vmatprep.subr.mxu0 0.0
      %793 = vmatpush1.msra.mxu0 0.0
      %794 = vmatprep.subr.mxu0 0.0
      %795 = vmatpush1.msra.mxu0 0.0
      %796 = vmatprep.subr.mxu0 0.0
      %797 = vmatpush1.msra.mxu0 0.0
      %798 = vmatprep.subr.mxu0 0.0
      %799 = vmatpush1.msra.mxu0 0.0
      %800 = vmatprep.subr.mxu0 0.0
      %801 = vmatpush1.msra.mxu0 0.0
      %802 = vmatprep.subr.mxu0 0.0
      %803 = vmatpush1.msra.mxu0 0.0
      %804 = vmatprep.subr.mxu0 0.0
      %805 = vmatpush1.msra.mxu0 0.0
      %806 = vmatprep.subr.mxu0 0.0
      %807 = vmatpush1.msra.mxu0 0.0
      %808 = vmatprep.subr.mxu0 0.0
      %809 = vmatpush1.msra.mxu0 0.0
      %810 = vmatprep.subr.mxu0 0.0
      %811 = vmatpush1.msra.mxu0 0.0
      %812 = vmatprep.subr.mxu0 0.0
      %813 = vmatpush1.msra.mxu0 0.0
      %814 = vmatprep.subr.mxu0 0.0
      %815 = vmatpush1.msra.mxu0 0.0
      %816 = vmatprep.subr.mxu0 0.0
      %817 = vmatpush1.msra.mxu0 0.0
      %818 = vmatprep.subr.mxu0 0.0
      %819 = vmatpush1.msra.mxu0 0.0
      %820 = vmatprep.subr.mxu0 0.0
      %821 = vmatpush1.msra.mxu0 0.0
      %822 = vmatprep.subr.mxu0 0.0
      %823 = vmatpush1.msra.mxu0 0.0
      %824 = vmatprep.subr.mxu0 0.0
      %825 = vmatpush1.msra.mxu0 0.0
      %826 = vmatprep.subr.mxu0 0.0
      %827 = vmatpush1.msra.mxu0 0.0
      %828 = vmatprep.subr.mxu0 0.0
      %829 = vmatpush1.msra.mxu0 0.0
      %830 = vmatprep.subr.mxu0 0.0
      %831 = vmatpush1.msra.mxu0 0.0
      %832 = vmatprep.subr.mxu0 0.0
      %833 = vmatpush1.msra.mxu0 0.0
      %834 = vmatprep.subr.mxu0 0.0
      %835 = vmatpush1.msra.mxu0 0.0
      %836 = vmatprep.subr.mxu0 0.0
      %837 = vmatpush1.msra.mxu0 0.0
      %838 = vmatprep.subr.mxu0 0.0
      %839 = vmatpush1.msra.mxu0 0.0
      %840 = vmatprep.subr.mxu0 0.0
      %841 = vmatpush1.msra.mxu0 0.0
      %842 = vmatprep.subr.mxu0 0.0
      %843 = vmatpush1.msra.mxu0 0.0
      %844 = vmatprep.mubr.f32.mxu0 0.0
      %845 = vmatmul.mubr.f32.gmra.mrb[0].mxu0 %v716
      %v846 = vpop.f32.mrb[0].mxu0
      %v847 = vadd.f32 %v558, %v846
      %v848 = vpop.f32.mrb[0].mxu0
      %849 = vmatprep.mubr.f32.mxu0 0.0
      %850 = vmatmul.mubr.f32.gmra.mrb[0].mxu0 %v718
      %v851 = vpop.f32.mrb[0].mxu0
      %v852 = vadd.f32 %v563, %v851
      %v853 = vpop.f32.mrb[0].mxu0
      %854 = vmatprep.mubr.f32.mxu0 0.0
      %855 = vmatmul.mubr.f32.gmra.mrb[0].mxu0 %v720
      %v856 = vpop.f32.mrb[0].mxu0
      %v857 = vadd.f32 %v568, %v856
      %v858 = vpop.f32.mrb[0].mxu0
      %859 = vmatprep.mubr.f32.mxu0 0.0
      %860 = vmatmul.mubr.f32.gmra.mrb[0].mxu0 %v722
      %v861 = vpop.f32.mrb[0].mxu0
      %v862 = vadd.f32 %v573, %v861
      %v863 = vpop.f32.mrb[0].mxu0
      %864 = vmatprep.mubr.f32.mxu0 0.0
      %865 = vmatmul.mubr.f32.gmra.mrb[0].mxu0 %v724
      %v866 = vpop.f32.mrb[0].mxu0
      %v867 = vadd.f32 %v578, %v866
      %v868 = vpop.f32.mrb[0].mxu0
      %869 = vmatprep.mubr.f32.mxu0 0.0
      %870 = vmatmul.mubr.f32.gmra.mrb[0].mxu0 %v726
      %v871 = vpop.f32.mrb[0].mxu0
      %v872 = vadd.f32 %v583, %v871
      %v873 = vpop.f32.mrb[0].mxu0
      %874 = vmatprep.mubr.f32.mxu0 0.0
      %875 = vmatmul.mubr.f32.gmra.mrb[0].mxu0 %v728
      %v876 = vpop.f32.mrb[0].mxu0
      %v877 = vadd.f32 %v588, %v876
      %v878 = vpop.f32.mrb[0].mxu0
      %879 = vmatprep.mubr.f32.mxu0 0.0
      %880 = vmatmul.mubr.f32.gmra.mrb[0].mxu0 %v730
      %v881 = vpop.f32.mrb[0].mxu0
      %v882 = vadd.f32 %v593, %v881
      %v883 = vpop.f32.mrb[0].mxu0
      %884 = vmatprep.mubr.f32.mxu0 0.0
      %885 = vmatmul.mubr.f32.gmra.mrb[0].mxu0 %v732
      %v886 = vpop.f32.mrb[0].mxu0
      %v887 = vadd.f32 %v598, %v886
      %v888 = vpop.f32.mrb[0].mxu0
      %889 = vmatprep.mubr.f32.mxu0 0.0
      %890 = vmatmul.mubr.f32.gmra.mrb[0].mxu0 %v734
      %v891 = vpop.f32.mrb[0].mxu0
      %v892 = vadd.f32 %v603, %v891
      %v893 = vpop.f32.mrb[0].mxu0
      %894 = vmatprep.mubr.f32.mxu0 0.0
      %895 = vmatmul.mubr.f32.gmra.mrb[0].mxu0 %v736
      %v896 = vpop.f32.mrb[0].mxu0
      %v897 = vadd.f32 %v608, %v896
      %v898 = vpop.f32.mrb[0].mxu0
      %899 = vmatprep.mubr.f32.mxu0 0.0
      %900 = vmatmul.mubr.f32.gmra.mrb[0].mxu0 %v738
      %v901 = vpop.f32.mrb[0].mxu0
      %v902 = vadd.f32 %v613, %v901
      %v903 = vpop.f32.mrb[0].mxu0
      %904 = vmatprep.mubr.f32.mxu0 0.0
      %905 = vmatmul.mubr.f32.gmra.mrb[0].mxu0 %v740
      %v906 = vpop.f32.mrb[0].mxu0
      %v907 = vadd.f32 %v618, %v906
      %v908 = vpop.f32.mrb[0].mxu0
      %909 = vmatprep.mubr.f32.mxu0 0.0
      %910 = vmatmul.mubr.f32.gmra.mrb[0].mxu0 %v742
      %v911 = vpop.f32.mrb[0].mxu0
      %v912 = vadd.f32 %v623, %v911
      %v913 = vpop.f32.mrb[0].mxu0
      %914 = vmatprep.mubr.f32.mxu0 0.0
      %915 = vmatmul.mubr.f32.gmra.mrb[0].mxu0 %v744
      %v916 = vpop.f32.mrb[0].mxu0
      %v917 = vadd.f32 %v628, %v916
      %v918 = vpop.f32.mrb[0].mxu0
      %919 = vmatprep.mubr.f32.mxu0 0.0
      %920 = vmatmul.mubr.f32.gmra.mrb[0].mxu0 %v746
      %v921 = vpop.f32.mrb[0].mxu0
      %v922 = vadd.f32 %v633, %v921
      %v923 = vpop.f32.mrb[0].mxu0
      %924 = vmatprep.mubr.f32.mxu0 0.0
      %925 = vmatmul.mubr.f32.gmra.mrb[0].mxu0 %v748
      %v926 = vpop.f32.mrb[0].mxu0
      %v927 = vadd.f32 %v638, %v926
      %v928 = vpop.f32.mrb[0].mxu0
      %929 = vmatprep.mubr.f32.mxu0 0.0
      %930 = vmatmul.mubr.f32.gmra.mrb[0].mxu0 %v750
      %v931 = vpop.f32.mrb[0].mxu0
      %v932 = vadd.f32 %v643, %v931
      %v933 = vpop.f32.mrb[0].mxu0
      %934 = vmatprep.mubr.f32.mxu0 0.0
      %935 = vmatmul.mubr.f32.gmra.mrb[0].mxu0 %v752
      %v936 = vpop.f32.mrb[0].mxu0
      %v937 = vadd.f32 %v648, %v936
      %v938 = vpop.f32.mrb[0].mxu0
      %939 = vmatprep.mubr.f32.mxu0 0.0
      %940 = vmatmul.mubr.f32.gmra.mrb[0].mxu0 %v754
      %v941 = vpop.f32.mrb[0].mxu0
      %v942 = vadd.f32 %v653, %v941
      %v943 = vpop.f32.mrb[0].mxu0
      %944 = vmatprep.mubr.f32.mxu0 0.0
      %945 = vmatmul.mubr.f32.gmra.mrb[0].mxu0 %v756
      %v946 = vpop.f32.mrb[0].mxu0
      %v947 = vadd.f32 %v658, %v946
      %v948 = vpop.f32.mrb[0].mxu0
      %949 = vmatprep.mubr.f32.mxu0 0.0
      %950 = vmatmul.mubr.f32.gmra.mrb[0].mxu0 %v758
      %v951 = vpop.f32.mrb[0].mxu0
      %v952 = vadd.f32 %v663, %v951
      %v953 = vpop.f32.mrb[0].mxu0
      %954 = vmatprep.mubr.f32.mxu0 0.0
      %955 = vmatmul.mubr.f32.gmra.mrb[0].mxu0 %v760
      %v956 = vpop.f32.mrb[0].mxu0
      %v957 = vadd.f32 %v668, %v956
      %v958 = vpop.f32.mrb[0].mxu0
      %959 = vmatprep.mubr.f32.mxu0 0.0
      %960 = vmatmul.mubr.f32.gmra.mrb[0].mxu0 %v762
      %v961 = vpop.f32.mrb[0].mxu0
      %v962 = vadd.f32 %v673, %v961
      %v963 = vpop.f32.mrb[0].mxu0
      %964 = vmatprep.mubr.f32.mxu0 0.0
      %965 = vmatmul.mubr.f32.gmra.mrb[0].mxu0 %v764
      %v966 = vpop.f32.mrb[0].mxu0
      %v967 = vadd.f32 %v678, %v966
      %v968 = vpop.f32.mrb[0].mxu0
      %969 = vmatprep.mubr.f32.mxu0 0.0
      %970 = vmatmul.mubr.f32.gmra.mrb[0].mxu0 %v766
      %v971 = vpop.f32.mrb[0].mxu0
      %v972 = vadd.f32 %v683, %v971
      %v973 = vpop.f32.mrb[0].mxu0
      %974 = vmatprep.mubr.f32.mxu0 0.0
      %975 = vmatmul.mubr.f32.gmra.mrb[0].mxu0 %v768
      %v976 = vpop.f32.mrb[0].mxu0
      %v977 = vadd.f32 %v688, %v976
      %v978 = vpop.f32.mrb[0].mxu0
      %979 = vmatprep.mubr.f32.mxu0 0.0
      %980 = vmatmul.mubr.f32.gmra.mrb[0].mxu0 %v770
      %v981 = vpop.f32.mrb[0].mxu0
      %v982 = vadd.f32 %v693, %v981
      %v983 = vpop.f32.mrb[0].mxu0
      %984 = vmatprep.mubr.f32.mxu0 0.0
      %985 = vmatmul.mubr.f32.gmra.mrb[0].mxu0 %v772
      %v986 = vpop.f32.mrb[0].mxu0
      %v987 = vadd.f32 %v698, %v986
      %v988 = vpop.f32.mrb[0].mxu0
      %989 = vmatprep.mubr.f32.mxu0 0.0
      %990 = vmatmul.mubr.f32.gmra.mrb[0].mxu0 %v774
      %v991 = vpop.f32.mrb[0].mxu0
      %v992 = vadd.f32 %v703, %v991
      %v993 = vpop.f32.mrb[0].mxu0
      %994 = vmatprep.mubr.f32.mxu0 0.0
      %995 = vmatmul.mubr.f32.gmra.mrb[0].mxu0 %v776
      %v996 = vpop.f32.mrb[0].mxu0
      %v997 = vadd.f32 %v708, %v996
      %v998 = vpop.f32.mrb[0].mxu0
      %999 = vmatprep.mubr.f32.mxu0 0.0
      %1000 = vmatmul.mubr.f32.gmra.mrb[0].mxu0 %v778
      %v1001 = vpop.f32.mrb[0].mxu0
      %v1002 = vadd.f32 %v713, %v1001
      %v1003 = vpop.f32.mrb[0].mxu0
      %1004 = vdwg.mxu0
      %vm1005 = vcmask 1045504
      %v1006 = vrot.slane %v225, 2
      %v1007 = vrot.slane %v226, 2
      %v1008 = vsel %vm1005, %v1006, %v1007
      %v1009 = vrot.slane %v227, 2
      %v1010 = vsel %vm1005, %v1007, %v1009
      %v1011 = vrot.slane %v228, 2
      %v1012 = vrot.slane %v229, 2
      %v1013 = vsel %vm1005, %v1011, %v1012
      %v1014 = vrot.slane %v230, 2
      %v1015 = vsel %vm1005, %v1012, %v1014
      %v1016 = vrot.slane %v231, 2
      %v1017 = vrot.slane %v232, 2
      %v1018 = vsel %vm1005, %v1016, %v1017
      %v1019 = vrot.slane %v233, 2
      %v1020 = vsel %vm1005, %v1017, %v1019
      %v1021 = vrot.slane %v234, 2
      %v1022 = vrot.slane %v235, 2
      %v1023 = vsel %vm1005, %v1021, %v1022
      %v1024 = vrot.slane %v236, 2
      %v1025 = vsel %vm1005, %v1022, %v1024
      %v1026 = vrot.slane %v237, 2
      %v1027 = vrot.slane %v238, 2
      %v1028 = vsel %vm1005, %v1026, %v1027
      %v1029 = vrot.slane %v239, 2
      %v1030 = vsel %vm1005, %v1027, %v1029
      %v1031 = vrot.slane %v240, 2
      %v1032 = vrot.slane %v241, 2
      %v1033 = vsel %vm1005, %v1031, %v1032
      %v1034 = vrot.slane %v242, 2
      %v1035 = vsel %vm1005, %v1032, %v1034
      %v1036 = vrot.slane %v243, 2
      %v1037 = vrot.slane %v244, 2
      %v1038 = vsel %vm1005, %v1036, %v1037
      %v1039 = vrot.slane %v245, 2
      %v1040 = vsel %vm1005, %v1037, %v1039
      %v1041 = vrot.slane %v246, 2
      %v1042 = vrot.slane %v247, 2
      %v1043 = vsel %vm1005, %v1041, %v1042
      %v1044 = vrot.slane %v248, 2
      %v1045 = vsel %vm1005, %v1042, %v1044
      %v1046 = vrot.slane %v249, 2
      %v1047 = vrot.slane %v250, 2
      %v1048 = vsel %vm1005, %v1046, %v1047
      %v1049 = vrot.slane %v251, 2
      %v1050 = vsel %vm1005, %v1047, %v1049
      %v1051 = vrot.slane %v252, 2
      %v1052 = vrot.slane %v253, 2
      %v1053 = vsel %vm1005, %v1051, %v1052
      %v1054 = vrot.slane %v254, 2
      %v1055 = vsel %vm1005, %v1052, %v1054
      %v1056 = vrot.slane %v255, 2
      %v1057 = vrot.slane %v256, 2
      %v1058 = vsel %vm1005, %v1056, %v1057
      %v1059 = vrot.slane %v257, 2
      %v1060 = vsel %vm1005, %v1057, %v1059
      %v1061 = vrot.slane %v258, 2
      %v1062 = vrot.slane %v259, 2
      %v1063 = vsel %vm1005, %v1061, %v1062
      %v1064 = vrot.slane %v260, 2
      %v1065 = vsel %vm1005, %v1062, %v1064
      %v1066 = vrot.slane %v261, 2
      %v1067 = vrot.slane %v262, 2
      %v1068 = vsel %vm1005, %v1066, %v1067
      %v1069 = vrot.slane %v263, 2
      %v1070 = vsel %vm1005, %v1067, %v1069
      %v1071 = vrot.slane %v264, 2
      %v1072 = vrot.slane %v265, 2
      %v1073 = vsel %vm1005, %v1071, %v1072
      %v1074 = vrot.slane %v266, 2
      %v1075 = vsel %vm1005, %v1072, %v1074
      %v1076 = vrot.slane %v267, 2
      %v1077 = vrot.slane %v268, 2
      %v1078 = vsel %vm1005, %v1076, %v1077
      %v1079 = vrot.slane %v269, 2
      %v1080 = vsel %vm1005, %v1077, %v1079
      %v1081 = vrot.slane %v270, 2
      %v1082 = vrot.slane %v271, 2
      %v1083 = vsel %vm1005, %v1081, %v1082
      %v1084 = vrot.slane %v272, 2
      %v1085 = vsel %vm1005, %v1082, %v1084
      %v1086 = vsel %vm426, %v1008, 0
      %v1088 = vsel %vm426, %v1010, 0
      %v1090 = vsel %vm426, %v1013, 0
      %v1092 = vsel %vm426, %v1015, 0
      %v1094 = vsel %vm426, %v1018, 0
      %v1096 = vsel %vm426, %v1020, 0
      %v1098 = vsel %vm426, %v1023, 0
      %v1100 = vsel %vm426, %v1025, 0
      %v1102 = vsel %vm426, %v1028, 0
      %v1104 = vsel %vm426, %v1030, 0
      %v1106 = vsel %vm426, %v1033, 0
      %v1108 = vsel %vm426, %v1035, 0
      %v1110 = vsel %vm426, %v1038, 0
      %v1112 = vsel %vm426, %v1040, 0
      %v1114 = vsel %vm426, %v1043, 0
      %v1116 = vsel %vm426, %v1045, 0
      %v1118 = vsel %vm426, %v1048, 0
      %v1120 = vsel %vm426, %v1050, 0
      %v1122 = vsel %vm426, %v1053, 0
      %v1124 = vsel %vm426, %v1055, 0
      %v1126 = vsel %vm426, %v1058, 0
      %v1128 = vsel %vm426, %v1060, 0
      %v1130 = vsel %vm426, %v1063, 0
      %v1132 = vsel %vm426, %v1065, 0
      %v1134 = vsel %vm426, %v1068, 0
      %v1136 = vsel %vm426, %v1070, 0
      %v1138 = vsel %vm426, %v1073, 0
      %v1140 = vsel %vm426, %v1075, 0
      %v1142 = vsel %vm426, %v1078, 0
      %v1144 = vsel %vm426, %v1080, 0
      %v1146 = vsel %vm426, %v1083, 0
      %v1148 = vsel %vm426, %v1085, 0
      %1150 = vmatprep.subr.mxu0 0.0
      %1151 = vmatpush1.msra.mxu0 %v290
      %1152 = vmatprep.subr.mxu0 0.0
      %1153 = vmatpush1.msra.mxu0 0.0
      %1154 = vmatprep.subr.mxu0 0.0
      %1155 = vmatpush1.msra.mxu0 0.0
      %1156 = vmatprep.subr.mxu0 0.0
      %1157 = vmatpush1.msra.mxu0 0.0
      %1158 = vmatprep.subr.mxu0 0.0
      %1159 = vmatpush1.msra.mxu0 0.0
      %1160 = vmatprep.subr.mxu0 0.0
      %1161 = vmatpush1.msra.mxu0 0.0
      %1162 = vmatprep.subr.mxu0 0.0
      %1163 = vmatpush1.msra.mxu0 0.0
      %1164 = vmatprep.subr.mxu0 0.0
      %1165 = vmatpush1.msra.mxu0 0.0
      %1166 = vmatprep.subr.mxu0 0.0
      %1167 = vmatpush1.msra.mxu0 0.0
      %1168 = vmatprep.subr.mxu0 0.0
      %1169 = vmatpush1.msra.mxu0 0.0
      %1170 = vmatprep.subr.mxu0 0.0
      %1171 = vmatpush1.msra.mxu0 0.0
      %1172 = vmatprep.subr.mxu0 0.0
      %1173 = vmatpush1.msra.mxu0 0.0
      %1174 = vmatprep.subr.mxu0 0.0
      %1175 = vmatpush1.msra.mxu0 0.0
      %1176 = vmatprep.subr.mxu0 0.0
      %1177 = vmatpush1.msra.mxu0 0.0
      %1178 = vmatprep.subr.mxu0 0.0
      %1179 = vmatpush1.msra.mxu0 0.0
      %1180 = vmatprep.subr.mxu0 0.0
      %1181 = vmatpush1.msra.mxu0 0.0
      %1182 = vmatprep.subr.mxu0 0.0
      %1183 = vmatpush1.msra.mxu0 0.0
      %1184 = vmatprep.subr.mxu0 0.0
      %1185 = vmatpush1.msra.mxu0 0.0
      %1186 = vmatprep.subr.mxu0 0.0
      %1187 = vmatpush1.msra.mxu0 0.0
      %1188 = vmatprep.subr.mxu0 0.0
      %1189 = vmatpush1.msra.mxu0 0.0
      %1190 = vmatprep.subr.mxu0 0.0
      %1191 = vmatpush1.msra.mxu0 0.0
      %1192 = vmatprep.subr.mxu0 0.0
      %1193 = vmatpush1.msra.mxu0 0.0
      %1194 = vmatprep.subr.mxu0 0.0
      %1195 = vmatpush1.msra.mxu0 0.0
      %1196 = vmatprep.subr.mxu0 0.0
      %1197 = vmatpush1.msra.mxu0 0.0
      %1198 = vmatprep.subr.mxu0 0.0
      %1199 = vmatpush1.msra.mxu0 0.0
      %1200 = vmatprep.subr.mxu0 0.0
      %1201 = vmatpush1.msra.mxu0 0.0
      %1202 = vmatprep.subr.mxu0 0.0
      %1203 = vmatpush1.msra.mxu0 0.0
      %1204 = vmatprep.subr.mxu0 0.0
      %1205 = vmatpush1.msra.mxu0 0.0
      %1206 = vmatprep.subr.mxu0 0.0
      %1207 = vmatpush1.msra.mxu0 0.0
      %1208 = vmatprep.subr.mxu0 0.0
      %1209 = vmatpush1.msra.mxu0 0.0
      %1210 = vmatprep.subr.mxu0 0.0
      %1211 = vmatpush1.msra.mxu0 0.0
      %1212 = vmatprep.subr.mxu0 0.0
      %1213 = vmatpush1.msra.mxu0 0.0
      %1214 = vmatprep.mubr.f32.mxu0 0.0
      %1215 = vmatmul.mubr.f32.gmra.mrb[0].mxu0 %v1086
      %v1216 = vpop.f32.mrb[0].mxu0
      %v1217 = vadd.f32 0.0, %v1216
      %v1218 = vpop.f32.mrb[0].mxu0
      %1219 = vmatprep.mubr.f32.mxu0 0.0
      %1220 = vmatmul.mubr.f32.gmra.mrb[0].mxu0 %v1088
      %v1221 = vpop.f32.mrb[0].mxu0
      %v1222 = vadd.f32 0.0, %v1221
      %v1223 = vpop.f32.mrb[0].mxu0
      %1224 = vmatprep.mubr.f32.mxu0 0.0
      %1225 = vmatmul.mubr.f32.gmra.mrb[0].mxu0 %v1090
      %v1226 = vpop.f32.mrb[0].mxu0
      %v1227 = vadd.f32 0.0, %v1226
      %v1228 = vpop.f32.mrb[0].mxu0
      %1229 = vmatprep.mubr.f32.mxu0 0.0
      %1230 = vmatmul.mubr.f32.gmra.mrb[0].mxu0 %v1092
      %v1231 = vpop.f32.mrb[0].mxu0
      %v1232 = vadd.f32 0.0, %v1231
      %v1233 = vpop.f32.mrb[0].mxu0
      %1234 = vmatprep.mubr.f32.mxu0 0.0
      %1235 = vmatmul.mubr.f32.gmra.mrb[0].mxu0 %v1094
      %v1236 = vpop.f32.mrb[0].mxu0
      %v1237 = vadd.f32 0.0, %v1236
      %v1238 = vpop.f32.mrb[0].mxu0
      %1239 = vmatprep.mubr.f32.mxu0 0.0
      %1240 = vmatmul.mubr.f32.gmra.mrb[0].mxu0 %v1096
      %v1241 = vpop.f32.mrb[0].mxu0
      %v1242 = vadd.f32 0.0, %v1241
      %v1243 = vpop.f32.mrb[0].mxu0
      %1244 = vmatprep.mubr.f32.mxu0 0.0
      %1245 = vmatmul.mubr.f32.gmra.mrb[0].mxu0 %v1098
      %v1246 = vpop.f32.mrb[0].mxu0
      %v1247 = vadd.f32 0.0, %v1246
      %v1248 = vpop.f32.mrb[0].mxu0
      %1249 = vmatprep.mubr.f32.mxu0 0.0
      %1250 = vmatmul.mubr.f32.gmra.mrb[0].mxu0 %v1100
      %v1251 = vpop.f32.mrb[0].mxu0
      %v1252 = vadd.f32 0.0, %v1251
      %v1253 = vpop.f32.mrb[0].mxu0
      %1254 = vmatprep.mubr.f32.mxu0 0.0
      %1255 = vmatmul.mubr.f32.gmra.mrb[0].mxu0 %v1102
      %v1256 = vpop.f32.mrb[0].mxu0
      %v1257 = vadd.f32 0.0, %v1256
      %v1258 = vpop.f32.mrb[0].mxu0
      %1259 = vmatprep.mubr.f32.mxu0 0.0
      %1260 = vmatmul.mubr.f32.gmra.mrb[0].mxu0 %v1104
      %v1261 = vpop.f32.mrb[0].mxu0
      %v1262 = vadd.f32 0.0, %v1261
      %v1263 = vpop.f32.mrb[0].mxu0
      %1264 = vmatprep.mubr.f32.mxu0 0.0
      %1265 = vmatmul.mubr.f32.gmra.mrb[0].mxu0 %v1106
      %v1266 = vpop.f32.mrb[0].mxu0
      %v1267 = vadd.f32 0.0, %v1266
      %v1268 = vpop.f32.mrb[0].mxu0
      %1269 = vmatprep.mubr.f32.mxu0 0.0
      %1270 = vmatmul.mubr.f32.gmra.mrb[0].mxu0 %v1108
      %v1271 = vpop.f32.mrb[0].mxu0
      %v1272 = vadd.f32 0.0, %v1271
      %v1273 = vpop.f32.mrb[0].mxu0
      %1274 = vmatprep.mubr.f32.mxu0 0.0
      %1275 = vmatmul.mubr.f32.gmra.mrb[0].mxu0 %v1110
      %v1276 = vpop.f32.mrb[0].mxu0
      %v1277 = vadd.f32 0.0, %v1276
      %v1278 = vpop.f32.mrb[0].mxu0
      %1279 = vmatprep.mubr.f32.mxu0 0.0
      %1280 = vmatmul.mubr.f32.gmra.mrb[0].mxu0 %v1112
      %v1281 = vpop.f32.mrb[0].mxu0
      %v1282 = vadd.f32 0.0, %v1281
      %v1283 = vpop.f32.mrb[0].mxu0
      %1284 = vmatprep.mubr.f32.mxu0 0.0
      %1285 = vmatmul.mubr.f32.gmra.mrb[0].mxu0 %v1114
      %v1286 = vpop.f32.mrb[0].mxu0
      %v1287 = vadd.f32 0.0, %v1286
      %v1288 = vpop.f32.mrb[0].mxu0
      %1289 = vmatprep.mubr.f32.mxu0 0.0
      %1290 = vmatmul.mubr.f32.gmra.mrb[0].mxu0 %v1116
      %v1291 = vpop.f32.mrb[0].mxu0
      %v1292 = vadd.f32 0.0, %v1291
      %v1293 = vpop.f32.mrb[0].mxu0
      %1294 = vmatprep.mubr.f32.mxu0 0.0
      %1295 = vmatmul.mubr.f32.gmra.mrb[0].mxu0 %v1118
      %v1296 = vpop.f32.mrb[0].mxu0
      %v1297 = vadd.f32 0.0, %v1296
      %v1298 = vpop.f32.mrb[0].mxu0
      %1299 = vmatprep.mubr.f32.mxu0 0.0
      %1300 = vmatmul.mubr.f32.gmra.mrb[0].mxu0 %v1120
      %v1301 = vpop.f32.mrb[0].mxu0
      %v1302 = vadd.f32 0.0, %v1301
      %v1303 = vpop.f32.mrb[0].mxu0
      %1304 = vmatprep.mubr.f32.mxu0 0.0
      %1305 = vmatmul.mubr.f32.gmra.mrb[0].mxu0 %v1122
      %v1306 = vpop.f32.mrb[0].mxu0
      %v1307 = vadd.f32 0.0, %v1306
      %v1308 = vpop.f32.mrb[0].mxu0
      %1309 = vmatprep.mubr.f32.mxu0 0.0
      %1310 = vmatmul.mubr.f32.gmra.mrb[0].mxu0 %v1124
      %v1311 = vpop.f32.mrb[0].mxu0
      %v1312 = vadd.f32 0.0, %v1311
      %v1313 = vpop.f32.mrb[0].mxu0
      %1314 = vmatprep.mubr.f32.mxu0 0.0
      %1315 = vmatmul.mubr.f32.gmra.mrb[0].mxu0 %v1126
      %v1316 = vpop.f32.mrb[0].mxu0
      %v1317 = vadd.f32 0.0, %v1316
      %v1318 = vpop.f32.mrb[0].mxu0
      %1319 = vmatprep.mubr.f32.mxu0 0.0
      %1320 = vmatmul.mubr.f32.gmra.mrb[0].mxu0 %v1128
      %v1321 = vpop.f32.mrb[0].mxu0
      %v1322 = vadd.f32 0.0, %v1321
      %v1323 = vpop.f32.mrb[0].mxu0
      %1324 = vmatprep.mubr.f32.mxu0 0.0
      %1325 = vmatmul.mubr.f32.gmra.mrb[0].mxu0 %v1130
      %v1326 = vpop.f32.mrb[0].mxu0
      %v1327 = vadd.f32 0.0, %v1326
      %v1328 = vpop.f32.mrb[0].mxu0
      %1329 = vmatprep.mubr.f32.mxu0 0.0
      %1330 = vmatmul.mubr.f32.gmra.mrb[0].mxu0 %v1132
      %v1331 = vpop.f32.mrb[0].mxu0
      %v1332 = vadd.f32 0.0, %v1331
      %v1333 = vpop.f32.mrb[0].mxu0
      %1334 = vmatprep.mubr.f32.mxu0 0.0
      %1335 = vmatmul.mubr.f32.gmra.mrb[0].mxu0 %v1134
      %v1336 = vpop.f32.mrb[0].mxu0
      %v1337 = vadd.f32 0.0, %v1336
      %v1338 = vpop.f32.mrb[0].mxu0
      %1339 = vmatprep.mubr.f32.mxu0 0.0
      %1340 = vmatmul.mubr.f32.gmra.mrb[0].mxu0 %v1136
      %v1341 = vpop.f32.mrb[0].mxu0
      %v1342 = vadd.f32 0.0, %v1341
      %v1343 = vpop.f32.mrb[0].mxu0
      %1344 = vmatprep.mubr.f32.mxu0 0.0
      %1345 = vmatmul.mubr.f32.gmra.mrb[0].mxu0 %v1138
      %v1346 = vpop.f32.mrb[0].mxu0
      %v1347 = vadd.f32 0.0, %v1346
      %v1348 = vpop.f32.mrb[0].mxu0
      %1349 = vmatprep.mubr.f32.mxu0 0.0
      %1350 = vmatmul.mubr.f32.gmra.mrb[0].mxu0 %v1140
      %v1351 = vpop.f32.mrb[0].mxu0
      %v1352 = vadd.f32 0.0, %v1351
      %v1353 = vpop.f32.mrb[0].mxu0
      %1354 = vmatprep.mubr.f32.mxu0 0.0
      %1355 = vmatmul.mubr.f32.gmra.mrb[0].mxu0 %v1142
      %v1356 = vpop.f32.mrb[0].mxu0
      %v1357 = vadd.f32 0.0, %v1356
      %v1358 = vpop.f32.mrb[0].mxu0
      %1359 = vmatprep.mubr.f32.mxu0 0.0
      %1360 = vmatmul.mubr.f32.gmra.mrb[0].mxu0 %v1144
      %v1361 = vpop.f32.mrb[0].mxu0
      %v1362 = vadd.f32 0.0, %v1361
      %v1363 = vpop.f32.mrb[0].mxu0
      %1364 = vmatprep.mubr.f32.mxu0 0.0
      %1365 = vmatmul.mubr.f32.gmra.mrb[0].mxu0 %v1146
      %v1366 = vpop.f32.mrb[0].mxu0
      %v1367 = vadd.f32 0.0, %v1366
      %v1368 = vpop.f32.mrb[0].mxu0
      %1369 = vmatprep.mubr.f32.mxu0 0.0
      %1370 = vmatmul.mubr.f32.gmra.mrb[0].mxu0 %v1148
      %v1371 = vpop.f32.mrb[0].mxu0
      %v1372 = vadd.f32 0.0, %v1371
      %v1373 = vpop.f32.mrb[0].mxu0
      %1374 = vdwg.mxu0
      %v1375 = vadd.f32 %v847, %v1217
      %v1376 = vadd.f32 %v852, %v1222
      %v1377 = vadd.f32 %v857, %v1227
      %v1378 = vadd.f32 %v862, %v1232
      %v1379 = vadd.f32 %v867, %v1237
      %v1380 = vadd.f32 %v872, %v1242
      %v1381 = vadd.f32 %v877, %v1247
      %v1382 = vadd.f32 %v882, %v1252
      %v1383 = vadd.f32 %v887, %v1257
      %v1384 = vadd.f32 %v892, %v1262
      %v1385 = vadd.f32 %v897, %v1267
      %v1386 = vadd.f32 %v902, %v1272
      %v1387 = vadd.f32 %v907, %v1277
      %v1388 = vadd.f32 %v912, %v1282
      %v1389 = vadd.f32 %v917, %v1287
      %v1390 = vadd.f32 %v922, %v1292
      %v1391 = vadd.f32 %v927, %v1297
      %v1392 = vadd.f32 %v932, %v1302
      %v1393 = vadd.f32 %v937, %v1307
      %v1394 = vadd.f32 %v942, %v1312
      %v1395 = vadd.f32 %v947, %v1317
      %v1396 = vadd.f32 %v952, %v1322
      %v1397 = vadd.f32 %v957, %v1327
      %v1398 = vadd.f32 %v962, %v1332
      %v1399 = vadd.f32 %v967, %v1337
      %v1400 = vadd.f32 %v972, %v1342
      %v1401 = vadd.f32 %v977, %v1347
      %v1402 = vadd.f32 %v982, %v1352
      %v1403 = vadd.f32 %v987, %v1357
      %v1404 = vadd.f32 %v992, %v1362
      %v1405 = vadd.f32 %v997, %v1367
      %v1406 = vadd.f32 %v1002, %v1372
      %v1408 = vsel %vm426, %v273, 0
      %v1411 = vsel %vm426, %v274, 0
      %1413 = vmatprep.subr.mxu0 0.0
      %1414 = vmatpush1.msra.mxu0 %v291
      %1415 = vmatprep.subr.mxu0 0.0
      %1416 = vmatpush1.msra.mxu0 0.0
      %1417 = vmatprep.subr.mxu0 0.0
      %1418 = vmatpush1.msra.mxu0 0.0
      %1419 = vmatprep.subr.mxu0 0.0
      %1420 = vmatpush1.msra.mxu0 0.0
      %1421 = vmatprep.subr.mxu0 0.0
      %1422 = vmatpush1.msra.mxu0 0.0
      %1423 = vmatprep.subr.mxu0 0.0
      %1424 = vmatpush1.msra.mxu0 0.0
      %1425 = vmatprep.subr.mxu0 0.0
      %1426 = vmatpush1.msra.mxu0 0.0
      %1427 = vmatprep.subr.mxu0 0.0
      %1428 = vmatpush1.msra.mxu0 0.0
      %1429 = vmatprep.subr.mxu0 0.0
      %1430 = vmatpush1.msra.mxu0 0.0
      %1431 = vmatprep.subr.mxu0 0.0
      %1432 = vmatpush1.msra.mxu0 0.0
      %1433 = vmatprep.subr.mxu0 0.0
      %1434 = vmatpush1.msra.mxu0 0.0
      %1435 = vmatprep.subr.mxu0 0.0
      %1436 = vmatpush1.msra.mxu0 0.0
      %1437 = vmatprep.subr.mxu0 0.0
      %1438 = vmatpush1.msra.mxu0 0.0
      %1439 = vmatprep.subr.mxu0 0.0
      %1440 = vmatpush1.msra.mxu0 0.0
      %1441 = vmatprep.subr.mxu0 0.0
      %1442 = vmatpush1.msra.mxu0 0.0
      %1443 = vmatprep.subr.mxu0 0.0
      %1444 = vmatpush1.msra.mxu0 0.0
      %1445 = vmatprep.subr.mxu0 0.0
      %1446 = vmatpush1.msra.mxu0 0.0
      %1447 = vmatprep.subr.mxu0 0.0
      %1448 = vmatpush1.msra.mxu0 0.0
      %1449 = vmatprep.subr.mxu0 0.0
      %1450 = vmatpush1.msra.mxu0 0.0
      %1451 = vmatprep.subr.mxu0 0.0
      %1452 = vmatpush1.msra.mxu0 0.0
      %1453 = vmatprep.subr.mxu0 0.0
      %1454 = vmatpush1.msra.mxu0 0.0
      %1455 = vmatprep.subr.mxu0 0.0
      %1456 = vmatpush1.msra.mxu0 0.0
      %1457 = vmatprep.subr.mxu0 0.0
      %1458 = vmatpush1.msra.mxu0 0.0
      %1459 = vmatprep.subr.mxu0 0.0
      %1460 = vmatpush1.msra.mxu0 0.0
      %1461 = vmatprep.subr.mxu0 0.0
      %1462 = vmatpush1.msra.mxu0 0.0
      %1463 = vmatprep.subr.mxu0 0.0
      %1464 = vmatpush1.msra.mxu0 0.0
      %1465 = vmatprep.subr.mxu0 0.0
      %1466 = vmatpush1.msra.mxu0 0.0
      %1467 = vmatprep.subr.mxu0 0.0
      %1468 = vmatpush1.msra.mxu0 0.0
      %1469 = vmatprep.subr.mxu0 0.0
      %1470 = vmatpush1.msra.mxu0 0.0
      %1471 = vmatprep.subr.mxu0 0.0
      %1472 = vmatpush1.msra.mxu0 0.0
      %1473 = vmatprep.subr.mxu0 0.0
      %1474 = vmatpush1.msra.mxu0 0.0
      %1475 = vmatprep.subr.mxu0 0.0
      %1476 = vmatpush1.msra.mxu0 0.0
      %1477 = vmatprep.mubr.f32.mxu0 0.0
      %1478 = vmatmul.mubr.f32.gmra.mrb[0].mxu0 %v720
      %v1479 = vpop.f32.mrb[0].mxu0
      %v1480 = vadd.f32 0.0, %v1479
      %v1481 = vpop.f32.mrb[0].mxu0
      %1482 = vmatprep.mubr.f32.mxu0 0.0
      %1483 = vmatmul.mubr.f32.gmra.mrb[0].mxu0 %v722
      %v1484 = vpop.f32.mrb[0].mxu0
      %v1485 = vadd.f32 0.0, %v1484
      %v1486 = vpop.f32.mrb[0].mxu0
      %1487 = vmatprep.mubr.f32.mxu0 0.0
      %1488 = vmatmul.mubr.f32.gmra.mrb[0].mxu0 %v724
      %v1489 = vpop.f32.mrb[0].mxu0
      %v1490 = vadd.f32 0.0, %v1489
      %v1491 = vpop.f32.mrb[0].mxu0
      %1492 = vmatprep.mubr.f32.mxu0 0.0
      %1493 = vmatmul.mubr.f32.gmra.mrb[0].mxu0 %v726
      %v1494 = vpop.f32.mrb[0].mxu0
      %v1495 = vadd.f32 0.0, %v1494
      %v1496 = vpop.f32.mrb[0].mxu0
      %1497 = vmatprep.mubr.f32.mxu0 0.0
      %1498 = vmatmul.mubr.f32.gmra.mrb[0].mxu0 %v728
      %v1499 = vpop.f32.mrb[0].mxu0
      %v1500 = vadd.f32 0.0, %v1499
      %v1501 = vpop.f32.mrb[0].mxu0
      %1502 = vmatprep.mubr.f32.mxu0 0.0
      %1503 = vmatmul.mubr.f32.gmra.mrb[0].mxu0 %v730
      %v1504 = vpop.f32.mrb[0].mxu0
      %v1505 = vadd.f32 0.0, %v1504
      %v1506 = vpop.f32.mrb[0].mxu0
      %1507 = vmatprep.mubr.f32.mxu0 0.0
      %1508 = vmatmul.mubr.f32.gmra.mrb[0].mxu0 %v732
      %v1509 = vpop.f32.mrb[0].mxu0
      %v1510 = vadd.f32 0.0, %v1509
      %v1511 = vpop.f32.mrb[0].mxu0
      %1512 = vmatprep.mubr.f32.mxu0 0.0
      %1513 = vmatmul.mubr.f32.gmra.mrb[0].mxu0 %v734
      %v1514 = vpop.f32.mrb[0].mxu0
      %v1515 = vadd.f32 0.0, %v1514
      %v1516 = vpop.f32.mrb[0].mxu0
      %1517 = vmatprep.mubr.f32.mxu0 0.0
      %1518 = vmatmul.mubr.f32.gmra.mrb[0].mxu0 %v736
      %v1519 = vpop.f32.mrb[0].mxu0
      %v1520 = vadd.f32 0.0, %v1519
      %v1521 = vpop.f32.mrb[0].mxu0
      %1522 = vmatprep.mubr.f32.mxu0 0.0
      %1523 = vmatmul.mubr.f32.gmra.mrb[0].mxu0 %v738
      %v1524 = vpop.f32.mrb[0].mxu0
      %v1525 = vadd.f32 0.0, %v1524
      %v1526 = vpop.f32.mrb[0].mxu0
      %1527 = vmatprep.mubr.f32.mxu0 0.0
      %1528 = vmatmul.mubr.f32.gmra.mrb[0].mxu0 %v740
      %v1529 = vpop.f32.mrb[0].mxu0
      %v1530 = vadd.f32 0.0, %v1529
      %v1531 = vpop.f32.mrb[0].mxu0
      %1532 = vmatprep.mubr.f32.mxu0 0.0
      %1533 = vmatmul.mubr.f32.gmra.mrb[0].mxu0 %v742
      %v1534 = vpop.f32.mrb[0].mxu0
      %v1535 = vadd.f32 0.0, %v1534
      %v1536 = vpop.f32.mrb[0].mxu0
      %1537 = vmatprep.mubr.f32.mxu0 0.0
      %1538 = vmatmul.mubr.f32.gmra.mrb[0].mxu0 %v744
      %v1539 = vpop.f32.mrb[0].mxu0
      %v1540 = vadd.f32 0.0, %v1539
      %v1541 = vpop.f32.mrb[0].mxu0
      %1542 = vmatprep.mubr.f32.mxu0 0.0
      %1543 = vmatmul.mubr.f32.gmra.mrb[0].mxu0 %v746
      %v1544 = vpop.f32.mrb[0].mxu0
      %v1545 = vadd.f32 0.0, %v1544
      %v1546 = vpop.f32.mrb[0].mxu0
      %1547 = vmatprep.mubr.f32.mxu0 0.0
      %1548 = vmatmul.mubr.f32.gmra.mrb[0].mxu0 %v748
      %v1549 = vpop.f32.mrb[0].mxu0
      %v1550 = vadd.f32 0.0, %v1549
      %v1551 = vpop.f32.mrb[0].mxu0
      %1552 = vmatprep.mubr.f32.mxu0 0.0
      %1553 = vmatmul.mubr.f32.gmra.mrb[0].mxu0 %v750
      %v1554 = vpop.f32.mrb[0].mxu0
      %v1555 = vadd.f32 0.0, %v1554
      %v1556 = vpop.f32.mrb[0].mxu0
      %1557 = vmatprep.mubr.f32.mxu0 0.0
      %1558 = vmatmul.mubr.f32.gmra.mrb[0].mxu0 %v752
      %v1559 = vpop.f32.mrb[0].mxu0
      %v1560 = vadd.f32 0.0, %v1559
      %v1561 = vpop.f32.mrb[0].mxu0
      %1562 = vmatprep.mubr.f32.mxu0 0.0
      %1563 = vmatmul.mubr.f32.gmra.mrb[0].mxu0 %v754
      %v1564 = vpop.f32.mrb[0].mxu0
      %v1565 = vadd.f32 0.0, %v1564
      %v1566 = vpop.f32.mrb[0].mxu0
      %1567 = vmatprep.mubr.f32.mxu0 0.0
      %1568 = vmatmul.mubr.f32.gmra.mrb[0].mxu0 %v756
      %v1569 = vpop.f32.mrb[0].mxu0
      %v1570 = vadd.f32 0.0, %v1569
      %v1571 = vpop.f32.mrb[0].mxu0
      %1572 = vmatprep.mubr.f32.mxu0 0.0
      %1573 = vmatmul.mubr.f32.gmra.mrb[0].mxu0 %v758
      %v1574 = vpop.f32.mrb[0].mxu0
      %v1575 = vadd.f32 0.0, %v1574
      %v1576 = vpop.f32.mrb[0].mxu0
      %1577 = vmatprep.mubr.f32.mxu0 0.0
      %1578 = vmatmul.mubr.f32.gmra.mrb[0].mxu0 %v760
      %v1579 = vpop.f32.mrb[0].mxu0
      %v1580 = vadd.f32 0.0, %v1579
      %v1581 = vpop.f32.mrb[0].mxu0
      %1582 = vmatprep.mubr.f32.mxu0 0.0
      %1583 = vmatmul.mubr.f32.gmra.mrb[0].mxu0 %v762
      %v1584 = vpop.f32.mrb[0].mxu0
      %v1585 = vadd.f32 0.0, %v1584
      %v1586 = vpop.f32.mrb[0].mxu0
      %1587 = vmatprep.mubr.f32.mxu0 0.0
      %1588 = vmatmul.mubr.f32.gmra.mrb[0].mxu0 %v764
      %v1589 = vpop.f32.mrb[0].mxu0
      %v1590 = vadd.f32 0.0, %v1589
      %v1591 = vpop.f32.mrb[0].mxu0
      %1592 = vmatprep.mubr.f32.mxu0 0.0
      %1593 = vmatmul.mubr.f32.gmra.mrb[0].mxu0 %v766
      %v1594 = vpop.f32.mrb[0].mxu0
      %v1595 = vadd.f32 0.0, %v1594
      %v1596 = vpop.f32.mrb[0].mxu0
      %1597 = vmatprep.mubr.f32.mxu0 0.0
      %1598 = vmatmul.mubr.f32.gmra.mrb[0].mxu0 %v768
      %v1599 = vpop.f32.mrb[0].mxu0
      %v1600 = vadd.f32 0.0, %v1599
      %v1601 = vpop.f32.mrb[0].mxu0
      %1602 = vmatprep.mubr.f32.mxu0 0.0
      %1603 = vmatmul.mubr.f32.gmra.mrb[0].mxu0 %v770
      %v1604 = vpop.f32.mrb[0].mxu0
      %v1605 = vadd.f32 0.0, %v1604
      %v1606 = vpop.f32.mrb[0].mxu0
      %1607 = vmatprep.mubr.f32.mxu0 0.0
      %1608 = vmatmul.mubr.f32.gmra.mrb[0].mxu0 %v772
      %v1609 = vpop.f32.mrb[0].mxu0
      %v1610 = vadd.f32 0.0, %v1609
      %v1611 = vpop.f32.mrb[0].mxu0
      %1612 = vmatprep.mubr.f32.mxu0 0.0
      %1613 = vmatmul.mubr.f32.gmra.mrb[0].mxu0 %v774
      %v1614 = vpop.f32.mrb[0].mxu0
      %v1615 = vadd.f32 0.0, %v1614
      %v1616 = vpop.f32.mrb[0].mxu0
      %1617 = vmatprep.mubr.f32.mxu0 0.0
      %1618 = vmatmul.mubr.f32.gmra.mrb[0].mxu0 %v776
      %v1619 = vpop.f32.mrb[0].mxu0
      %v1620 = vadd.f32 0.0, %v1619
      %v1621 = vpop.f32.mrb[0].mxu0
      %1622 = vmatprep.mubr.f32.mxu0 0.0
      %1623 = vmatmul.mubr.f32.gmra.mrb[0].mxu0 %v778
      %v1624 = vpop.f32.mrb[0].mxu0
      %v1625 = vadd.f32 0.0, %v1624
      %v1626 = vpop.f32.mrb[0].mxu0
      %1627 = vmatprep.mubr.f32.mxu0 0.0
      %1628 = vmatmul.mubr.f32.gmra.mrb[0].mxu0 %v1408
      %v1629 = vpop.f32.mrb[0].mxu0
      %v1630 = vadd.f32 0.0, %v1629
      %v1631 = vpop.f32.mrb[0].mxu0
      %1632 = vmatprep.mubr.f32.mxu0 0.0
      %1633 = vmatmul.mubr.f32.gmra.mrb[0].mxu0 %v1411
      %v1634 = vpop.f32.mrb[0].mxu0
      %v1635 = vadd.f32 0.0, %v1634
      %v1636 = vpop.f32.mrb[0].mxu0
      %1637 = vdwg.mxu0
      %v1638 = vadd.f32 %v1375, %v1480
      %v1639 = vadd.f32 %v1376, %v1485
      %v1640 = vadd.f32 %v1377, %v1490
      %v1641 = vadd.f32 %v1378, %v1495
      %v1642 = vadd.f32 %v1379, %v1500
      %v1643 = vadd.f32 %v1380, %v1505
      %v1644 = vadd.f32 %v1381, %v1510
      %v1645 = vadd.f32 %v1382, %v1515
      %v1646 = vadd.f32 %v1383, %v1520
      %v1647 = vadd.f32 %v1384, %v1525
      %v1648 = vadd.f32 %v1385, %v1530
      %v1649 = vadd.f32 %v1386, %v1535
      %v1650 = vadd.f32 %v1387, %v1540
      %v1651 = vadd.f32 %v1388, %v1545
      %v1652 = vadd.f32 %v1389, %v1550
      %v1653 = vadd.f32 %v1390, %v1555
      %v1654 = vadd.f32 %v1391, %v1560
      %v1655 = vadd.f32 %v1392, %v1565
      %v1656 = vadd.f32 %v1393, %v1570
      %v1657 = vadd.f32 %v1394, %v1575
      %v1658 = vadd.f32 %v1395, %v1580
      %v1659 = vadd.f32 %v1396, %v1585
      %v1660 = vadd.f32 %v1397, %v1590
      %v1661 = vadd.f32 %v1398, %v1595
      %v1662 = vadd.f32 %v1399, %v1600
      %v1663 = vadd.f32 %v1400, %v1605
      %v1664 = vadd.f32 %v1401, %v1610
      %v1665 = vadd.f32 %v1402, %v1615
      %v1666 = vadd.f32 %v1403, %v1620
      %v1667 = vadd.f32 %v1404, %v1625
      %v1668 = vadd.f32 %v1405, %v1630
      %v1669 = vadd.f32 %v1406, %v1635
      %v1671 = vrot.slane %v273, 1
      %v1672 = vrot.slane %v274, 1
      %v1673 = vsel %vm345, %v1671, %v1672
      %v1674 = vrot.slane %v275, 1
      %v1675 = vsel %vm345, %v1672, %v1674
      %v1676 = vsel %vm426, %v1673, 0
      %v1678 = vsel %vm426, %v1675, 0
      %1680 = vmatprep.subr.mxu0 0.0
      %1681 = vmatpush1.msra.mxu0 %v292
      %1682 = vmatprep.subr.mxu0 0.0
      %1683 = vmatpush1.msra.mxu0 0.0
      %1684 = vmatprep.subr.mxu0 0.0
      %1685 = vmatpush1.msra.mxu0 0.0
      %1686 = vmatprep.subr.mxu0 0.0
      %1687 = vmatpush1.msra.mxu0 0.0
      %1688 = vmatprep.subr.mxu0 0.0
      %1689 = vmatpush1.msra.mxu0 0.0
      %1690 = vmatprep.subr.mxu0 0.0
      %1691 = vmatpush1.msra.mxu0 0.0
      %1692 = vmatprep.subr.mxu0 0.0
      %1693 = vmatpush1.msra.mxu0 0.0
      %1694 = vmatprep.subr.mxu0 0.0
      %1695 = vmatpush1.msra.mxu0 0.0
      %1696 = vmatprep.subr.mxu0 0.0
      %1697 = vmatpush1.msra.mxu0 0.0
      %1698 = vmatprep.subr.mxu0 0.0
      %1699 = vmatpush1.msra.mxu0 0.0
      %1700 = vmatprep.subr.mxu0 0.0
      %1701 = vmatpush1.msra.mxu0 0.0
      %1702 = vmatprep.subr.mxu0 0.0
      %1703 = vmatpush1.msra.mxu0 0.0
      %1704 = vmatprep.subr.mxu0 0.0
      %1705 = vmatpush1.msra.mxu0 0.0
      %1706 = vmatprep.subr.mxu0 0.0
      %1707 = vmatpush1.msra.mxu0 0.0
      %1708 = vmatprep.subr.mxu0 0.0
      %1709 = vmatpush1.msra.mxu0 0.0
      %1710 = vmatprep.subr.mxu0 0.0
      %1711 = vmatpush1.msra.mxu0 0.0
      %1712 = vmatprep.subr.mxu0 0.0
      %1713 = vmatpush1.msra.mxu0 0.0
      %1714 = vmatprep.subr.mxu0 0.0
      %1715 = vmatpush1.msra.mxu0 0.0
      %1716 = vmatprep.subr.mxu0 0.0
      %1717 = vmatpush1.msra.mxu0 0.0
      %1718 = vmatprep.subr.mxu0 0.0
      %1719 = vmatpush1.msra.mxu0 0.0
      %1720 = vmatprep.subr.mxu0 0.0
      %1721 = vmatpush1.msra.mxu0 0.0
      %1722 = vmatprep.subr.mxu0 0.0
      %1723 = vmatpush1.msra.mxu0 0.0
      %1724 = vmatprep.subr.mxu0 0.0
      %1725 = vmatpush1.msra.mxu0 0.0
      %1726 = vmatprep.subr.mxu0 0.0
      %1727 = vmatpush1.msra.mxu0 0.0
      %1728 = vmatprep.subr.mxu0 0.0
      %1729 = vmatpush1.msra.mxu0 0.0
      %1730 = vmatprep.subr.mxu0 0.0
      %1731 = vmatpush1.msra.mxu0 0.0
      %1732 = vmatprep.subr.mxu0 0.0
      %1733 = vmatpush1.msra.mxu0 0.0
      %1734 = vmatprep.subr.mxu0 0.0
      %1735 = vmatpush1.msra.mxu0 0.0
      %1736 = vmatprep.subr.mxu0 0.0
      %1737 = vmatpush1.msra.mxu0 0.0
      %1738 = vmatprep.subr.mxu0 0.0
      %1739 = vmatpush1.msra.mxu0 0.0
      %1740 = vmatprep.subr.mxu0 0.0
      %1741 = vmatpush1.msra.mxu0 0.0
      %1742 = vmatprep.subr.mxu0 0.0
      %1743 = vmatpush1.msra.mxu0 0.0
      %1744 = vmatprep.mubr.f32.mxu0 0.0
      %1745 = vmatmul.mubr.f32.gmra.mrb[0].mxu0 %v431
      %v1746 = vpop.f32.mrb[0].mxu0
      %v1747 = vadd.f32 0.0, %v1746
      %v1748 = vpop.f32.mrb[0].mxu0
      %1749 = vmatprep.mubr.f32.mxu0 0.0
      %1750 = vmatmul.mubr.f32.gmra.mrb[0].mxu0 %v433
      %v1751 = vpop.f32.mrb[0].mxu0
      %v1752 = vadd.f32 0.0, %v1751
      %v1753 = vpop.f32.mrb[0].mxu0
      %1754 = vmatprep.mubr.f32.mxu0 0.0
      %1755 = vmatmul.mubr.f32.gmra.mrb[0].mxu0 %v435
      %v1756 = vpop.f32.mrb[0].mxu0
      %v1757 = vadd.f32 0.0, %v1756
      %v1758 = vpop.f32.mrb[0].mxu0
      %1759 = vmatprep.mubr.f32.mxu0 0.0
      %1760 = vmatmul.mubr.f32.gmra.mrb[0].mxu0 %v437
      %v1761 = vpop.f32.mrb[0].mxu0
      %v1762 = vadd.f32 0.0, %v1761
      %v1763 = vpop.f32.mrb[0].mxu0
      %1764 = vmatprep.mubr.f32.mxu0 0.0
      %1765 = vmatmul.mubr.f32.gmra.mrb[0].mxu0 %v439
      %v1766 = vpop.f32.mrb[0].mxu0
      %v1767 = vadd.f32 0.0, %v1766
      %v1768 = vpop.f32.mrb[0].mxu0
      %1769 = vmatprep.mubr.f32.mxu0 0.0
      %1770 = vmatmul.mubr.f32.gmra.mrb[0].mxu0 %v441
      %v1771 = vpop.f32.mrb[0].mxu0
      %v1772 = vadd.f32 0.0, %v1771
      %v1773 = vpop.f32.mrb[0].mxu0
      %1774 = vmatprep.mubr.f32.mxu0 0.0
      %1775 = vmatmul.mubr.f32.gmra.mrb[0].mxu0 %v443
      %v1776 = vpop.f32.mrb[0].mxu0
      %v1777 = vadd.f32 0.0, %v1776
      %v1778 = vpop.f32.mrb[0].mxu0
      %1779 = vmatprep.mubr.f32.mxu0 0.0
      %1780 = vmatmul.mubr.f32.gmra.mrb[0].mxu0 %v445
      %v1781 = vpop.f32.mrb[0].mxu0
      %v1782 = vadd.f32 0.0, %v1781
      %v1783 = vpop.f32.mrb[0].mxu0
      %1784 = vmatprep.mubr.f32.mxu0 0.0
      %1785 = vmatmul.mubr.f32.gmra.mrb[0].mxu0 %v447
      %v1786 = vpop.f32.mrb[0].mxu0
      %v1787 = vadd.f32 0.0, %v1786
      %v1788 = vpop.f32.mrb[0].mxu0
      %1789 = vmatprep.mubr.f32.mxu0 0.0
      %1790 = vmatmul.mubr.f32.gmra.mrb[0].mxu0 %v449
      %v1791 = vpop.f32.mrb[0].mxu0
      %v1792 = vadd.f32 0.0, %v1791
      %v1793 = vpop.f32.mrb[0].mxu0
      %1794 = vmatprep.mubr.f32.mxu0 0.0
      %1795 = vmatmul.mubr.f32.gmra.mrb[0].mxu0 %v451
      %v1796 = vpop.f32.mrb[0].mxu0
      %v1797 = vadd.f32 0.0, %v1796
      %v1798 = vpop.f32.mrb[0].mxu0
      %1799 = vmatprep.mubr.f32.mxu0 0.0
      %1800 = vmatmul.mubr.f32.gmra.mrb[0].mxu0 %v453
      %v1801 = vpop.f32.mrb[0].mxu0
      %v1802 = vadd.f32 0.0, %v1801
      %v1803 = vpop.f32.mrb[0].mxu0
      %1804 = vmatprep.mubr.f32.mxu0 0.0
      %1805 = vmatmul.mubr.f32.gmra.mrb[0].mxu0 %v455
      %v1806 = vpop.f32.mrb[0].mxu0
      %v1807 = vadd.f32 0.0, %v1806
      %v1808 = vpop.f32.mrb[0].mxu0
      %1809 = vmatprep.mubr.f32.mxu0 0.0
      %1810 = vmatmul.mubr.f32.gmra.mrb[0].mxu0 %v457
      %v1811 = vpop.f32.mrb[0].mxu0
      %v1812 = vadd.f32 0.0, %v1811
      %v1813 = vpop.f32.mrb[0].mxu0
      %1814 = vmatprep.mubr.f32.mxu0 0.0
      %1815 = vmatmul.mubr.f32.gmra.mrb[0].mxu0 %v459
      %v1816 = vpop.f32.mrb[0].mxu0
      %v1817 = vadd.f32 0.0, %v1816
      %v1818 = vpop.f32.mrb[0].mxu0
      %1819 = vmatprep.mubr.f32.mxu0 0.0
      %1820 = vmatmul.mubr.f32.gmra.mrb[0].mxu0 %v461
      %v1821 = vpop.f32.mrb[0].mxu0
      %v1822 = vadd.f32 0.0, %v1821
      %v1823 = vpop.f32.mrb[0].mxu0
      %1824 = vmatprep.mubr.f32.mxu0 0.0
      %1825 = vmatmul.mubr.f32.gmra.mrb[0].mxu0 %v463
      %v1826 = vpop.f32.mrb[0].mxu0
      %v1827 = vadd.f32 0.0, %v1826
      %v1828 = vpop.f32.mrb[0].mxu0
      %1829 = vmatprep.mubr.f32.mxu0 0.0
      %1830 = vmatmul.mubr.f32.gmra.mrb[0].mxu0 %v465
      %v1831 = vpop.f32.mrb[0].mxu0
      %v1832 = vadd.f32 0.0, %v1831
      %v1833 = vpop.f32.mrb[0].mxu0
      %1834 = vmatprep.mubr.f32.mxu0 0.0
      %1835 = vmatmul.mubr.f32.gmra.mrb[0].mxu0 %v467
      %v1836 = vpop.f32.mrb[0].mxu0
      %v1837 = vadd.f32 0.0, %v1836
      %v1838 = vpop.f32.mrb[0].mxu0
      %1839 = vmatprep.mubr.f32.mxu0 0.0
      %1840 = vmatmul.mubr.f32.gmra.mrb[0].mxu0 %v469
      %v1841 = vpop.f32.mrb[0].mxu0
      %v1842 = vadd.f32 0.0, %v1841
      %v1843 = vpop.f32.mrb[0].mxu0
      %1844 = vmatprep.mubr.f32.mxu0 0.0
      %1845 = vmatmul.mubr.f32.gmra.mrb[0].mxu0 %v471
      %v1846 = vpop.f32.mrb[0].mxu0
      %v1847 = vadd.f32 0.0, %v1846
      %v1848 = vpop.f32.mrb[0].mxu0
      %1849 = vmatprep.mubr.f32.mxu0 0.0
      %1850 = vmatmul.mubr.f32.gmra.mrb[0].mxu0 %v473
      %v1851 = vpop.f32.mrb[0].mxu0
      %v1852 = vadd.f32 0.0, %v1851
      %v1853 = vpop.f32.mrb[0].mxu0
      %1854 = vmatprep.mubr.f32.mxu0 0.0
      %1855 = vmatmul.mubr.f32.gmra.mrb[0].mxu0 %v475
      %v1856 = vpop.f32.mrb[0].mxu0
      %v1857 = vadd.f32 0.0, %v1856
      %v1858 = vpop.f32.mrb[0].mxu0
      %1859 = vmatprep.mubr.f32.mxu0 0.0
      %1860 = vmatmul.mubr.f32.gmra.mrb[0].mxu0 %v477
      %v1861 = vpop.f32.mrb[0].mxu0
      %v1862 = vadd.f32 0.0, %v1861
      %v1863 = vpop.f32.mrb[0].mxu0
      %1864 = vmatprep.mubr.f32.mxu0 0.0
      %1865 = vmatmul.mubr.f32.gmra.mrb[0].mxu0 %v479
      %v1866 = vpop.f32.mrb[0].mxu0
      %v1867 = vadd.f32 0.0, %v1866
      %v1868 = vpop.f32.mrb[0].mxu0
      %1869 = vmatprep.mubr.f32.mxu0 0.0
      %1870 = vmatmul.mubr.f32.gmra.mrb[0].mxu0 %v481
      %v1871 = vpop.f32.mrb[0].mxu0
      %v1872 = vadd.f32 0.0, %v1871
      %v1873 = vpop.f32.mrb[0].mxu0
      %1874 = vmatprep.mubr.f32.mxu0 0.0
      %1875 = vmatmul.mubr.f32.gmra.mrb[0].mxu0 %v483
      %v1876 = vpop.f32.mrb[0].mxu0
      %v1877 = vadd.f32 0.0, %v1876
      %v1878 = vpop.f32.mrb[0].mxu0
      %1879 = vmatprep.mubr.f32.mxu0 0.0
      %1880 = vmatmul.mubr.f32.gmra.mrb[0].mxu0 %v485
      %v1881 = vpop.f32.mrb[0].mxu0
      %v1882 = vadd.f32 0.0, %v1881
      %v1883 = vpop.f32.mrb[0].mxu0
      %1884 = vmatprep.mubr.f32.mxu0 0.0
      %1885 = vmatmul.mubr.f32.gmra.mrb[0].mxu0 %v487
      %v1886 = vpop.f32.mrb[0].mxu0
      %v1887 = vadd.f32 0.0, %v1886
      %v1888 = vpop.f32.mrb[0].mxu0
      %1889 = vmatprep.mubr.f32.mxu0 0.0
      %1890 = vmatmul.mubr.f32.gmra.mrb[0].mxu0 %v489
      %v1891 = vpop.f32.mrb[0].mxu0
      %v1892 = vadd.f32 0.0, %v1891
      %v1893 = vpop.f32.mrb[0].mxu0
      %1894 = vmatprep.mubr.f32.mxu0 0.0
      %1895 = vmatmul.mubr.f32.gmra.mrb[0].mxu0 %v1676
      %v1896 = vpop.f32.mrb[0].mxu0
      %v1897 = vadd.f32 0.0, %v1896
      %v1898 = vpop.f32.mrb[0].mxu0
      %1899 = vmatprep.mubr.f32.mxu0 0.0
      %1900 = vmatmul.mubr.f32.gmra.mrb[0].mxu0 %v1678
      %v1901 = vpop.f32.mrb[0].mxu0
      %v1902 = vadd.f32 0.0, %v1901
      %v1903 = vpop.f32.mrb[0].mxu0
      %1904 = vdwg.mxu0
      %v1905 = vadd.f32 %v1638, %v1747
      %v1906 = vadd.f32 %v1639, %v1752
      %v1907 = vadd.f32 %v1640, %v1757
      %v1908 = vadd.f32 %v1641, %v1762
      %v1909 = vadd.f32 %v1642, %v1767
      %v1910 = vadd.f32 %v1643, %v1772
      %v1911 = vadd.f32 %v1644, %v1777
      %v1912 = vadd.f32 %v1645, %v1782
      %v1913 = vadd.f32 %v1646, %v1787
      %v1914 = vadd.f32 %v1647, %v1792
      %v1915 = vadd.f32 %v1648, %v1797
      %v1916 = vadd.f32 %v1649, %v1802
      %v1917 = vadd.f32 %v1650, %v1807
      %v1918 = vadd.f32 %v1651, %v1812
      %v1919 = vadd.f32 %v1652, %v1817
      %v1920 = vadd.f32 %v1653, %v1822
      %v1921 = vadd.f32 %v1654, %v1827
      %v1922 = vadd.f32 %v1655, %v1832
      %v1923 = vadd.f32 %v1656, %v1837
      %v1924 = vadd.f32 %v1657, %v1842
      %v1925 = vadd.f32 %v1658, %v1847
      %v1926 = vadd.f32 %v1659, %v1852
      %v1927 = vadd.f32 %v1660, %v1857
      %v1928 = vadd.f32 %v1661, %v1862
      %v1929 = vadd.f32 %v1662, %v1867
      %v1930 = vadd.f32 %v1663, %v1872
      %v1931 = vadd.f32 %v1664, %v1877
      %v1932 = vadd.f32 %v1665, %v1882
      %v1933 = vadd.f32 %v1666, %v1887
      %v1934 = vadd.f32 %v1667, %v1892
      %v1935 = vadd.f32 %v1668, %v1897
      %v1936 = vadd.f32 %v1669, %v1902
      %v1937 = vrot.slane %v273, 2
      %v1938 = vrot.slane %v274, 2
      %v1939 = vsel %vm1005, %v1937, %v1938
      %v1940 = vrot.slane %v275, 2
      %v1941 = vsel %vm1005, %v1938, %v1940
      %v1942 = vsel %vm426, %v1939, 0
      %v1944 = vsel %vm426, %v1941, 0
      %1946 = vmatprep.subr.mxu0 0.0
      %1947 = vmatpush1.msra.mxu0 %v293
      %1948 = vmatprep.subr.mxu0 0.0
      %1949 = vmatpush1.msra.mxu0 0.0
      %1950 = vmatprep.subr.mxu0 0.0
      %1951 = vmatpush1.msra.mxu0 0.0
      %1952 = vmatprep.subr.mxu0 0.0
      %1953 = vmatpush1.msra.mxu0 0.0
      %1954 = vmatprep.subr.mxu0 0.0
      %1955 = vmatpush1.msra.mxu0 0.0
      %1956 = vmatprep.subr.mxu0 0.0
      %1957 = vmatpush1.msra.mxu0 0.0
      %1958 = vmatprep.subr.mxu0 0.0
      %1959 = vmatpush1.msra.mxu0 0.0
      %1960 = vmatprep.subr.mxu0 0.0
      %1961 = vmatpush1.msra.mxu0 0.0
      %1962 = vmatprep.subr.mxu0 0.0
      %1963 = vmatpush1.msra.mxu0 0.0
      %1964 = vmatprep.subr.mxu0 0.0
      %1965 = vmatpush1.msra.mxu0 0.0
      %1966 = vmatprep.subr.mxu0 0.0
      %1967 = vmatpush1.msra.mxu0 0.0
      %1968 = vmatprep.subr.mxu0 0.0
      %1969 = vmatpush1.msra.mxu0 0.0
      %1970 = vmatprep.subr.mxu0 0.0
      %1971 = vmatpush1.msra.mxu0 0.0
      %1972 = vmatprep.subr.mxu0 0.0
      %1973 = vmatpush1.msra.mxu0 0.0
      %1974 = vmatprep.subr.mxu0 0.0
      %1975 = vmatpush1.msra.mxu0 0.0
      %1976 = vmatprep.subr.mxu0 0.0
      %1977 = vmatpush1.msra.mxu0 0.0
      %1978 = vmatprep.subr.mxu0 0.0
      %1979 = vmatpush1.msra.mxu0 0.0
      %1980 = vmatprep.subr.mxu0 0.0
      %1981 = vmatpush1.msra.mxu0 0.0
      %1982 = vmatprep.subr.mxu0 0.0
      %1983 = vmatpush1.msra.mxu0 0.0
      %1984 = vmatprep.subr.mxu0 0.0
      %1985 = vmatpush1.msra.mxu0 0.0
      %1986 = vmatprep.subr.mxu0 0.0
      %1987 = vmatpush1.msra.mxu0 0.0
      %1988 = vmatprep.subr.mxu0 0.0
      %1989 = vmatpush1.msra.mxu0 0.0
      %1990 = vmatprep.subr.mxu0 0.0
      %1991 = vmatpush1.msra.mxu0 0.0
      %1992 = vmatprep.subr.mxu0 0.0
      %1993 = vmatpush1.msra.mxu0 0.0
      %1994 = vmatprep.subr.mxu0 0.0
      %1995 = vmatpush1.msra.mxu0 0.0
      %1996 = vmatprep.subr.mxu0 0.0
      %1997 = vmatpush1.msra.mxu0 0.0
      %1998 = vmatprep.subr.mxu0 0.0
      %1999 = vmatpush1.msra.mxu0 0.0
      %2000 = vmatprep.subr.mxu0 0.0
      %2001 = vmatpush1.msra.mxu0 0.0
      %2002 = vmatprep.subr.mxu0 0.0
      %2003 = vmatpush1.msra.mxu0 0.0
      %2004 = vmatprep.subr.mxu0 0.0
      %2005 = vmatpush1.msra.mxu0 0.0
      %2006 = vmatprep.subr.mxu0 0.0
      %2007 = vmatpush1.msra.mxu0 0.0
      %2008 = vmatprep.subr.mxu0 0.0
      %2009 = vmatpush1.msra.mxu0 0.0
      %2010 = vmatprep.mubr.f32.mxu0 0.0
      %2011 = vmatmul.mubr.f32.gmra.mrb[0].mxu0 %v1090
      %v2012 = vpop.f32.mrb[0].mxu0
      %v2013 = vadd.f32 0.0, %v2012
      %v2014 = vpop.f32.mrb[0].mxu0
      %2015 = vmatprep.mubr.f32.mxu0 0.0
      %2016 = vmatmul.mubr.f32.gmra.mrb[0].mxu0 %v1092
      %v2017 = vpop.f32.mrb[0].mxu0
      %v2018 = vadd.f32 0.0, %v2017
      %v2019 = vpop.f32.mrb[0].mxu0
      %2020 = vmatprep.mubr.f32.mxu0 0.0
      %2021 = vmatmul.mubr.f32.gmra.mrb[0].mxu0 %v1094
      %v2022 = vpop.f32.mrb[0].mxu0
      %v2023 = vadd.f32 0.0, %v2022
      %v2024 = vpop.f32.mrb[0].mxu0
      %2025 = vmatprep.mubr.f32.mxu0 0.0
      %2026 = vmatmul.mubr.f32.gmra.mrb[0].mxu0 %v1096
      %v2027 = vpop.f32.mrb[0].mxu0
      %v2028 = vadd.f32 0.0, %v2027
      %v2029 = vpop.f32.mrb[0].mxu0
      %2030 = vmatprep.mubr.f32.mxu0 0.0
      %2031 = vmatmul.mubr.f32.gmra.mrb[0].mxu0 %v1098
      %v2032 = vpop.f32.mrb[0].mxu0
      %v2033 = vadd.f32 0.0, %v2032
      %v2034 = vpop.f32.mrb[0].mxu0
      %2035 = vmatprep.mubr.f32.mxu0 0.0
      %2036 = vmatmul.mubr.f32.gmra.mrb[0].mxu0 %v1100
      %v2037 = vpop.f32.mrb[0].mxu0
      %v2038 = vadd.f32 0.0, %v2037
      %v2039 = vpop.f32.mrb[0].mxu0
      %2040 = vmatprep.mubr.f32.mxu0 0.0
      %2041 = vmatmul.mubr.f32.gmra.mrb[0].mxu0 %v1102
      %v2042 = vpop.f32.mrb[0].mxu0
      %v2043 = vadd.f32 0.0, %v2042
      %v2044 = vpop.f32.mrb[0].mxu0
      %2045 = vmatprep.mubr.f32.mxu0 0.0
      %2046 = vmatmul.mubr.f32.gmra.mrb[0].mxu0 %v1104
      %v2047 = vpop.f32.mrb[0].mxu0
      %v2048 = vadd.f32 0.0, %v2047
      %v2049 = vpop.f32.mrb[0].mxu0
      %2050 = vmatprep.mubr.f32.mxu0 0.0
      %2051 = vmatmul.mubr.f32.gmra.mrb[0].mxu0 %v1106
      %v2052 = vpop.f32.mrb[0].mxu0
      %v2053 = vadd.f32 0.0, %v2052
      %v2054 = vpop.f32.mrb[0].mxu0
      %2055 = vmatprep.mubr.f32.mxu0 0.0
      %2056 = vmatmul.mubr.f32.gmra.mrb[0].mxu0 %v1108
      %v2057 = vpop.f32.mrb[0].mxu0
      %v2058 = vadd.f32 0.0, %v2057
      %v2059 = vpop.f32.mrb[0].mxu0
      %2060 = vmatprep.mubr.f32.mxu0 0.0
      %2061 = vmatmul.mubr.f32.gmra.mrb[0].mxu0 %v1110
      %v2062 = vpop.f32.mrb[0].mxu0
      %v2063 = vadd.f32 0.0, %v2062
      %v2064 = vpop.f32.mrb[0].mxu0
      %2065 = vmatprep.mubr.f32.mxu0 0.0
      %2066 = vmatmul.mubr.f32.gmra.mrb[0].mxu0 %v1112
      %v2067 = vpop.f32.mrb[0].mxu0
      %v2068 = vadd.f32 0.0, %v2067
      %v2069 = vpop.f32.mrb[0].mxu0
      %2070 = vmatprep.mubr.f32.mxu0 0.0
      %2071 = vmatmul.mubr.f32.gmra.mrb[0].mxu0 %v1114
      %v2072 = vpop.f32.mrb[0].mxu0
      %v2073 = vadd.f32 0.0, %v2072
      %v2074 = vpop.f32.mrb[0].mxu0
      %2075 = vmatprep.mubr.f32.mxu0 0.0
      %2076 = vmatmul.mubr.f32.gmra.mrb[0].mxu0 %v1116
      %v2077 = vpop.f32.mrb[0].mxu0
      %v2078 = vadd.f32 0.0, %v2077
      %v2079 = vpop.f32.mrb[0].mxu0
      %2080 = vmatprep.mubr.f32.mxu0 0.0
      %2081 = vmatmul.mubr.f32.gmra.mrb[0].mxu0 %v1118
      %v2082 = vpop.f32.mrb[0].mxu0
      %v2083 = vadd.f32 0.0, %v2082
      %v2084 = vpop.f32.mrb[0].mxu0
      %2085 = vmatprep.mubr.f32.mxu0 0.0
      %2086 = vmatmul.mubr.f32.gmra.mrb[0].mxu0 %v1120
      %v2087 = vpop.f32.mrb[0].mxu0
      %v2088 = vadd.f32 0.0, %v2087
      %v2089 = vpop.f32.mrb[0].mxu0
      %2090 = vmatprep.mubr.f32.mxu0 0.0
      %2091 = vmatmul.mubr.f32.gmra.mrb[0].mxu0 %v1122
      %v2092 = vpop.f32.mrb[0].mxu0
      %v2093 = vadd.f32 0.0, %v2092
      %v2094 = vpop.f32.mrb[0].mxu0
      %2095 = vmatprep.mubr.f32.mxu0 0.0
      %2096 = vmatmul.mubr.f32.gmra.mrb[0].mxu0 %v1124
      %v2097 = vpop.f32.mrb[0].mxu0
      %v2098 = vadd.f32 0.0, %v2097
      %v2099 = vpop.f32.mrb[0].mxu0
      %2100 = vmatprep.mubr.f32.mxu0 0.0
      %2101 = vmatmul.mubr.f32.gmra.mrb[0].mxu0 %v1126
      %v2102 = vpop.f32.mrb[0].mxu0
      %v2103 = vadd.f32 0.0, %v2102
      %v2104 = vpop.f32.mrb[0].mxu0
      %2105 = vmatprep.mubr.f32.mxu0 0.0
      %2106 = vmatmul.mubr.f32.gmra.mrb[0].mxu0 %v1128
      %v2107 = vpop.f32.mrb[0].mxu0
      %v2108 = vadd.f32 0.0, %v2107
      %v2109 = vpop.f32.mrb[0].mxu0
      %2110 = vmatprep.mubr.f32.mxu0 0.0
      %2111 = vmatmul.mubr.f32.gmra.mrb[0].mxu0 %v1130
      %v2112 = vpop.f32.mrb[0].mxu0
      %v2113 = vadd.f32 0.0, %v2112
      %v2114 = vpop.f32.mrb[0].mxu0
      %2115 = vmatprep.mubr.f32.mxu0 0.0
      %2116 = vmatmul.mubr.f32.gmra.mrb[0].mxu0 %v1132
      %v2117 = vpop.f32.mrb[0].mxu0
      %v2118 = vadd.f32 0.0, %v2117
      %v2119 = vpop.f32.mrb[0].mxu0
      %2120 = vmatprep.mubr.f32.mxu0 0.0
      %2121 = vmatmul.mubr.f32.gmra.mrb[0].mxu0 %v1134
      %v2122 = vpop.f32.mrb[0].mxu0
      %v2123 = vadd.f32 0.0, %v2122
      %v2124 = vpop.f32.mrb[0].mxu0
      %2125 = vmatprep.mubr.f32.mxu0 0.0
      %2126 = vmatmul.mubr.f32.gmra.mrb[0].mxu0 %v1136
      %v2127 = vpop.f32.mrb[0].mxu0
      %v2128 = vadd.f32 0.0, %v2127
      %v2129 = vpop.f32.mrb[0].mxu0
      %2130 = vmatprep.mubr.f32.mxu0 0.0
      %2131 = vmatmul.mubr.f32.gmra.mrb[0].mxu0 %v1138
      %v2132 = vpop.f32.mrb[0].mxu0
      %v2133 = vadd.f32 0.0, %v2132
      %v2134 = vpop.f32.mrb[0].mxu0
      %2135 = vmatprep.mubr.f32.mxu0 0.0
      %2136 = vmatmul.mubr.f32.gmra.mrb[0].mxu0 %v1140
      %v2137 = vpop.f32.mrb[0].mxu0
      %v2138 = vadd.f32 0.0, %v2137
      %v2139 = vpop.f32.mrb[0].mxu0
      %2140 = vmatprep.mubr.f32.mxu0 0.0
      %2141 = vmatmul.mubr.f32.gmra.mrb[0].mxu0 %v1142
      %v2142 = vpop.f32.mrb[0].mxu0
      %v2143 = vadd.f32 0.0, %v2142
      %v2144 = vpop.f32.mrb[0].mxu0
      %2145 = vmatprep.mubr.f32.mxu0 0.0
      %2146 = vmatmul.mubr.f32.gmra.mrb[0].mxu0 %v1144
      %v2147 = vpop.f32.mrb[0].mxu0
      %v2148 = vadd.f32 0.0, %v2147
      %v2149 = vpop.f32.mrb[0].mxu0
      %2150 = vmatprep.mubr.f32.mxu0 0.0
      %2151 = vmatmul.mubr.f32.gmra.mrb[0].mxu0 %v1146
      %v2152 = vpop.f32.mrb[0].mxu0
      %v2153 = vadd.f32 0.0, %v2152
      %v2154 = vpop.f32.mrb[0].mxu0
      %2155 = vmatprep.mubr.f32.mxu0 0.0
      %2156 = vmatmul.mubr.f32.gmra.mrb[0].mxu0 %v1148
      %v2157 = vpop.f32.mrb[0].mxu0
      %v2158 = vadd.f32 0.0, %v2157
      %v2159 = vpop.f32.mrb[0].mxu0
      %2160 = vmatprep.mubr.f32.mxu0 0.0
      %2161 = vmatmul.mubr.f32.gmra.mrb[0].mxu0 %v1942
      %v2162 = vpop.f32.mrb[0].mxu0
      %v2163 = vadd.f32 0.0, %v2162
      %v2164 = vpop.f32.mrb[0].mxu0
      %2165 = vmatprep.mubr.f32.mxu0 0.0
      %2166 = vmatmul.mubr.f32.gmra.mrb[0].mxu0 %v1944
      %v2167 = vpop.f32.mrb[0].mxu0
      %v2168 = vadd.f32 0.0, %v2167
      %v2169 = vpop.f32.mrb[0].mxu0
      %2170 = vdwg.mxu0
      %v2171 = vadd.f32 %v1905, %v2013
      %v2172 = vadd.f32 %v1906, %v2018
      %v2173 = vadd.f32 %v1907, %v2023
      %v2174 = vadd.f32 %v1908, %v2028
      %v2175 = vadd.f32 %v1909, %v2033
      %v2176 = vadd.f32 %v1910, %v2038
      %v2177 = vadd.f32 %v1911, %v2043
      %v2178 = vadd.f32 %v1912, %v2048
      %v2179 = vadd.f32 %v1913, %v2053
      %v2180 = vadd.f32 %v1914, %v2058
      %v2181 = vadd.f32 %v1915, %v2063
      %v2182 = vadd.f32 %v1916, %v2068
      %v2183 = vadd.f32 %v1917, %v2073
      %v2184 = vadd.f32 %v1918, %v2078
      %v2185 = vadd.f32 %v1919, %v2083
      %v2186 = vadd.f32 %v1920, %v2088
      %v2187 = vadd.f32 %v1921, %v2093
      %v2188 = vadd.f32 %v1922, %v2098
      %v2189 = vadd.f32 %v1923, %v2103
      %v2190 = vadd.f32 %v1924, %v2108
      %v2191 = vadd.f32 %v1925, %v2113
      %v2192 = vadd.f32 %v1926, %v2118
      %v2193 = vadd.f32 %v1927, %v2123
      %v2194 = vadd.f32 %v1928, %v2128
      %v2195 = vadd.f32 %v1929, %v2133
      %v2196 = vadd.f32 %v1930, %v2138
      %v2197 = vadd.f32 %v1931, %v2143
      %v2198 = vadd.f32 %v1932, %v2148
      %v2199 = vadd.f32 %v1933, %v2153
      %v2200 = vadd.f32 %v1934, %v2158
      %v2201 = vadd.f32 %v1935, %v2163
      %v2202 = vadd.f32 %v1936, %v2168
      %v2204 = vsel %vm426, %v276, 0
      %v2207 = vsel %vm426, %v277, 0
      %2209 = vmatprep.subr.mxu0 0.0
      %2210 = vmatpush1.msra.mxu0 %v294
      %2211 = vmatprep.subr.mxu0 0.0
      %2212 = vmatpush1.msra.mxu0 0.0
      %2213 = vmatprep.subr.mxu0 0.0
      %2214 = vmatpush1.msra.mxu0 0.0
      %2215 = vmatprep.subr.mxu0 0.0
      %2216 = vmatpush1.msra.mxu0 0.0
      %2217 = vmatprep.subr.mxu0 0.0
      %2218 = vmatpush1.msra.mxu0 0.0
      %2219 = vmatprep.subr.mxu0 0.0
      %2220 = vmatpush1.msra.mxu0 0.0
      %2221 = vmatprep.subr.mxu0 0.0
      %2222 = vmatpush1.msra.mxu0 0.0
      %2223 = vmatprep.subr.mxu0 0.0
      %2224 = vmatpush1.msra.mxu0 0.0
      %2225 = vmatprep.subr.mxu0 0.0
      %2226 = vmatpush1.msra.mxu0 0.0
      %2227 = vmatprep.subr.mxu0 0.0
      %2228 = vmatpush1.msra.mxu0 0.0
      %2229 = vmatprep.subr.mxu0 0.0
      %2230 = vmatpush1.msra.mxu0 0.0
      %2231 = vmatprep.subr.mxu0 0.0
      %2232 = vmatpush1.msra.mxu0 0.0
      %2233 = vmatprep.subr.mxu0 0.0
      %2234 = vmatpush1.msra.mxu0 0.0
      %2235 = vmatprep.subr.mxu0 0.0
      %2236 = vmatpush1.msra.mxu0 0.0
      %2237 = vmatprep.subr.mxu0 0.0
      %2238 = vmatpush1.msra.mxu0 0.0
      %2239 = vmatprep.subr.mxu0 0.0
      %2240 = vmatpush1.msra.mxu0 0.0
      %2241 = vmatprep.subr.mxu0 0.0
      %2242 = vmatpush1.msra.mxu0 0.0
      %2243 = vmatprep.subr.mxu0 0.0
      %2244 = vmatpush1.msra.mxu0 0.0
      %2245 = vmatprep.subr.mxu0 0.0
      %2246 = vmatpush1.msra.mxu0 0.0
      %2247 = vmatprep.subr.mxu0 0.0
      %2248 = vmatpush1.msra.mxu0 0.0
      %2249 = vmatprep.subr.mxu0 0.0
      %2250 = vmatpush1.msra.mxu0 0.0
      %2251 = vmatprep.subr.mxu0 0.0
      %2252 = vmatpush1.msra.mxu0 0.0
      %2253 = vmatprep.subr.mxu0 0.0
      %2254 = vmatpush1.msra.mxu0 0.0
      %2255 = vmatprep.subr.mxu0 0.0
      %2256 = vmatpush1.msra.mxu0 0.0
      %2257 = vmatprep.subr.mxu0 0.0
      %2258 = vmatpush1.msra.mxu0 0.0
      %2259 = vmatprep.subr.mxu0 0.0
      %2260 = vmatpush1.msra.mxu0 0.0
      %2261 = vmatprep.subr.mxu0 0.0
      %2262 = vmatpush1.msra.mxu0 0.0
      %2263 = vmatprep.subr.mxu0 0.0
      %2264 = vmatpush1.msra.mxu0 0.0
      %2265 = vmatprep.subr.mxu0 0.0
      %2266 = vmatpush1.msra.mxu0 0.0
      %2267 = vmatprep.subr.mxu0 0.0
      %2268 = vmatpush1.msra.mxu0 0.0
      %2269 = vmatprep.subr.mxu0 0.0
      %2270 = vmatpush1.msra.mxu0 0.0
      %2271 = vmatprep.subr.mxu0 0.0
      %2272 = vmatpush1.msra.mxu0 0.0
      %2273 = vmatprep.mubr.f32.mxu0 0.0
      %2274 = vmatmul.mubr.f32.gmra.mrb[0].mxu0 %v724
      %v2275 = vpop.f32.mrb[0].mxu0
      %v2276 = vadd.f32 0.0, %v2275
      %v2277 = vpop.f32.mrb[0].mxu0
      %2278 = vmatprep.mubr.f32.mxu0 0.0
      %2279 = vmatmul.mubr.f32.gmra.mrb[0].mxu0 %v726
      %v2280 = vpop.f32.mrb[0].mxu0
      %v2281 = vadd.f32 0.0, %v2280
      %v2282 = vpop.f32.mrb[0].mxu0
      %2283 = vmatprep.mubr.f32.mxu0 0.0
      %2284 = vmatmul.mubr.f32.gmra.mrb[0].mxu0 %v728
      %v2285 = vpop.f32.mrb[0].mxu0
      %v2286 = vadd.f32 0.0, %v2285
      %v2287 = vpop.f32.mrb[0].mxu0
      %2288 = vmatprep.mubr.f32.mxu0 0.0
      %2289 = vmatmul.mubr.f32.gmra.mrb[0].mxu0 %v730
      %v2290 = vpop.f32.mrb[0].mxu0
      %v2291 = vadd.f32 0.0, %v2290
      %v2292 = vpop.f32.mrb[0].mxu0
      %2293 = vmatprep.mubr.f32.mxu0 0.0
      %2294 = vmatmul.mubr.f32.gmra.mrb[0].mxu0 %v732
      %v2295 = vpop.f32.mrb[0].mxu0
      %v2296 = vadd.f32 0.0, %v2295
      %v2297 = vpop.f32.mrb[0].mxu0
      %2298 = vmatprep.mubr.f32.mxu0 0.0
      %2299 = vmatmul.mubr.f32.gmra.mrb[0].mxu0 %v734
      %v2300 = vpop.f32.mrb[0].mxu0
      %v2301 = vadd.f32 0.0, %v2300
      %v2302 = vpop.f32.mrb[0].mxu0
      %2303 = vmatprep.mubr.f32.mxu0 0.0
      %2304 = vmatmul.mubr.f32.gmra.mrb[0].mxu0 %v736
      %v2305 = vpop.f32.mrb[0].mxu0
      %v2306 = vadd.f32 0.0, %v2305
      %v2307 = vpop.f32.mrb[0].mxu0
      %2308 = vmatprep.mubr.f32.mxu0 0.0
      %2309 = vmatmul.mubr.f32.gmra.mrb[0].mxu0 %v738
      %v2310 = vpop.f32.mrb[0].mxu0
      %v2311 = vadd.f32 0.0, %v2310
      %v2312 = vpop.f32.mrb[0].mxu0
      %2313 = vmatprep.mubr.f32.mxu0 0.0
      %2314 = vmatmul.mubr.f32.gmra.mrb[0].mxu0 %v740
      %v2315 = vpop.f32.mrb[0].mxu0
      %v2316 = vadd.f32 0.0, %v2315
      %v2317 = vpop.f32.mrb[0].mxu0
      %2318 = vmatprep.mubr.f32.mxu0 0.0
      %2319 = vmatmul.mubr.f32.gmra.mrb[0].mxu0 %v742
      %v2320 = vpop.f32.mrb[0].mxu0
      %v2321 = vadd.f32 0.0, %v2320
      %v2322 = vpop.f32.mrb[0].mxu0
      %2323 = vmatprep.mubr.f32.mxu0 0.0
      %2324 = vmatmul.mubr.f32.gmra.mrb[0].mxu0 %v744
      %v2325 = vpop.f32.mrb[0].mxu0
      %v2326 = vadd.f32 0.0, %v2325
      %v2327 = vpop.f32.mrb[0].mxu0
      %2328 = vmatprep.mubr.f32.mxu0 0.0
      %2329 = vmatmul.mubr.f32.gmra.mrb[0].mxu0 %v746
      %v2330 = vpop.f32.mrb[0].mxu0
      %v2331 = vadd.f32 0.0, %v2330
      %v2332 = vpop.f32.mrb[0].mxu0
      %2333 = vmatprep.mubr.f32.mxu0 0.0
      %2334 = vmatmul.mubr.f32.gmra.mrb[0].mxu0 %v748
      %v2335 = vpop.f32.mrb[0].mxu0
      %v2336 = vadd.f32 0.0, %v2335
      %v2337 = vpop.f32.mrb[0].mxu0
      %2338 = vmatprep.mubr.f32.mxu0 0.0
      %2339 = vmatmul.mubr.f32.gmra.mrb[0].mxu0 %v750
      %v2340 = vpop.f32.mrb[0].mxu0
      %v2341 = vadd.f32 0.0, %v2340
      %v2342 = vpop.f32.mrb[0].mxu0
      %2343 = vmatprep.mubr.f32.mxu0 0.0
      %2344 = vmatmul.mubr.f32.gmra.mrb[0].mxu0 %v752
      %v2345 = vpop.f32.mrb[0].mxu0
      %v2346 = vadd.f32 0.0, %v2345
      %v2347 = vpop.f32.mrb[0].mxu0
      %2348 = vmatprep.mubr.f32.mxu0 0.0
      %2349 = vmatmul.mubr.f32.gmra.mrb[0].mxu0 %v754
      %v2350 = vpop.f32.mrb[0].mxu0
      %v2351 = vadd.f32 0.0, %v2350
      %v2352 = vpop.f32.mrb[0].mxu0
      %2353 = vmatprep.mubr.f32.mxu0 0.0
      %2354 = vmatmul.mubr.f32.gmra.mrb[0].mxu0 %v756
      %v2355 = vpop.f32.mrb[0].mxu0
      %v2356 = vadd.f32 0.0, %v2355
      %v2357 = vpop.f32.mrb[0].mxu0
      %2358 = vmatprep.mubr.f32.mxu0 0.0
      %2359 = vmatmul.mubr.f32.gmra.mrb[0].mxu0 %v758
      %v2360 = vpop.f32.mrb[0].mxu0
      %v2361 = vadd.f32 0.0, %v2360
      %v2362 = vpop.f32.mrb[0].mxu0
      %2363 = vmatprep.mubr.f32.mxu0 0.0
      %2364 = vmatmul.mubr.f32.gmra.mrb[0].mxu0 %v760
      %v2365 = vpop.f32.mrb[0].mxu0
      %v2366 = vadd.f32 0.0, %v2365
      %v2367 = vpop.f32.mrb[0].mxu0
      %2368 = vmatprep.mubr.f32.mxu0 0.0
      %2369 = vmatmul.mubr.f32.gmra.mrb[0].mxu0 %v762
      %v2370 = vpop.f32.mrb[0].mxu0
      %v2371 = vadd.f32 0.0, %v2370
      %v2372 = vpop.f32.mrb[0].mxu0
      %2373 = vmatprep.mubr.f32.mxu0 0.0
      %2374 = vmatmul.mubr.f32.gmra.mrb[0].mxu0 %v764
      %v2375 = vpop.f32.mrb[0].mxu0
      %v2376 = vadd.f32 0.0, %v2375
      %v2377 = vpop.f32.mrb[0].mxu0
      %2378 = vmatprep.mubr.f32.mxu0 0.0
      %2379 = vmatmul.mubr.f32.gmra.mrb[0].mxu0 %v766
      %v2380 = vpop.f32.mrb[0].mxu0
      %v2381 = vadd.f32 0.0, %v2380
      %v2382 = vpop.f32.mrb[0].mxu0
      %2383 = vmatprep.mubr.f32.mxu0 0.0
      %2384 = vmatmul.mubr.f32.gmra.mrb[0].mxu0 %v768
      %v2385 = vpop.f32.mrb[0].mxu0
      %v2386 = vadd.f32 0.0, %v2385
      %v2387 = vpop.f32.mrb[0].mxu0
      %2388 = vmatprep.mubr.f32.mxu0 0.0
      %2389 = vmatmul.mubr.f32.gmra.mrb[0].mxu0 %v770
      %v2390 = vpop.f32.mrb[0].mxu0
      %v2391 = vadd.f32 0.0, %v2390
      %v2392 = vpop.f32.mrb[0].mxu0
      %2393 = vmatprep.mubr.f32.mxu0 0.0
      %2394 = vmatmul.mubr.f32.gmra.mrb[0].mxu0 %v772
      %v2395 = vpop.f32.mrb[0].mxu0
      %v2396 = vadd.f32 0.0, %v2395
      %v2397 = vpop.f32.mrb[0].mxu0
      %2398 = vmatprep.mubr.f32.mxu0 0.0
      %2399 = vmatmul.mubr.f32.gmra.mrb[0].mxu0 %v774
      %v2400 = vpop.f32.mrb[0].mxu0
      %v2401 = vadd.f32 0.0, %v2400
      %v2402 = vpop.f32.mrb[0].mxu0
      %2403 = vmatprep.mubr.f32.mxu0 0.0
      %2404 = vmatmul.mubr.f32.gmra.mrb[0].mxu0 %v776
      %v2405 = vpop.f32.mrb[0].mxu0
      %v2406 = vadd.f32 0.0, %v2405
      %v2407 = vpop.f32.mrb[0].mxu0
      %2408 = vmatprep.mubr.f32.mxu0 0.0
      %2409 = vmatmul.mubr.f32.gmra.mrb[0].mxu0 %v778
      %v2410 = vpop.f32.mrb[0].mxu0
      %v2411 = vadd.f32 0.0, %v2410
      %v2412 = vpop.f32.mrb[0].mxu0
      %2413 = vmatprep.mubr.f32.mxu0 0.0
      %2414 = vmatmul.mubr.f32.gmra.mrb[0].mxu0 %v1408
      %v2415 = vpop.f32.mrb[0].mxu0
      %v2416 = vadd.f32 0.0, %v2415
      %v2417 = vpop.f32.mrb[0].mxu0
      %2418 = vmatprep.mubr.f32.mxu0 0.0
      %2419 = vmatmul.mubr.f32.gmra.mrb[0].mxu0 %v1411
      %v2420 = vpop.f32.mrb[0].mxu0
      %v2421 = vadd.f32 0.0, %v2420
      %v2422 = vpop.f32.mrb[0].mxu0
      %2423 = vmatprep.mubr.f32.mxu0 0.0
      %2424 = vmatmul.mubr.f32.gmra.mrb[0].mxu0 %v2204
      %v2425 = vpop.f32.mrb[0].mxu0
      %v2426 = vadd.f32 0.0, %v2425
      %v2427 = vpop.f32.mrb[0].mxu0
      %2428 = vmatprep.mubr.f32.mxu0 0.0
      %2429 = vmatmul.mubr.f32.gmra.mrb[0].mxu0 %v2207
      %v2430 = vpop.f32.mrb[0].mxu0
      %v2431 = vadd.f32 0.0, %v2430
      %v2432 = vpop.f32.mrb[0].mxu0
      %2433 = vdwg.mxu0
      %v2434 = vadd.f32 %v2171, %v2276
      %v2435 = vadd.f32 %v2172, %v2281
      %v2436 = vadd.f32 %v2173, %v2286
      %v2437 = vadd.f32 %v2174, %v2291
      %v2438 = vadd.f32 %v2175, %v2296
      %v2439 = vadd.f32 %v2176, %v2301
      %v2440 = vadd.f32 %v2177, %v2306
      %v2441 = vadd.f32 %v2178, %v2311
      %v2442 = vadd.f32 %v2179, %v2316
      %v2443 = vadd.f32 %v2180, %v2321
      %v2444 = vadd.f32 %v2181, %v2326
      %v2445 = vadd.f32 %v2182, %v2331
      %v2446 = vadd.f32 %v2183, %v2336
      %v2447 = vadd.f32 %v2184, %v2341
      %v2448 = vadd.f32 %v2185, %v2346
      %v2449 = vadd.f32 %v2186, %v2351
      %v2450 = vadd.f32 %v2187, %v2356
      %v2451 = vadd.f32 %v2188, %v2361
      %v2452 = vadd.f32 %v2189, %v2366
      %v2453 = vadd.f32 %v2190, %v2371
      %v2454 = vadd.f32 %v2191, %v2376
      %v2455 = vadd.f32 %v2192, %v2381
      %v2456 = vadd.f32 %v2193, %v2386
      %v2457 = vadd.f32 %v2194, %v2391
      %v2458 = vadd.f32 %v2195, %v2396
      %v2459 = vadd.f32 %v2196, %v2401
      %v2460 = vadd.f32 %v2197, %v2406
      %v2461 = vadd.f32 %v2198, %v2411
      %v2462 = vadd.f32 %v2199, %v2416
      %v2463 = vadd.f32 %v2200, %v2421
      %v2464 = vadd.f32 %v2201, %v2426
      %v2465 = vadd.f32 %v2202, %v2431
      %v2467 = vrot.slane %v276, 1
      %v2468 = vrot.slane %v277, 1
      %v2469 = vsel %vm345, %v2467, %v2468
      %v2470 = vrot.slane %v278, 1
      %v2471 = vsel %vm345, %v2468, %v2470
      %v2472 = vsel %vm426, %v2469, 0
      %v2474 = vsel %vm426, %v2471, 0
      %2476 = vmatprep.subr.mxu0 0.0
      %2477 = vmatpush1.msra.mxu0 %v295
      %2478 = vmatprep.subr.mxu0 0.0
      %2479 = vmatpush1.msra.mxu0 0.0
      %2480 = vmatprep.subr.mxu0 0.0
      %2481 = vmatpush1.msra.mxu0 0.0
      %2482 = vmatprep.subr.mxu0 0.0
      %2483 = vmatpush1.msra.mxu0 0.0
      %2484 = vmatprep.subr.mxu0 0.0
      %2485 = vmatpush1.msra.mxu0 0.0
      %2486 = vmatprep.subr.mxu0 0.0
      %2487 = vmatpush1.msra.mxu0 0.0
      %2488 = vmatprep.subr.mxu0 0.0
      %2489 = vmatpush1.msra.mxu0 0.0
      %2490 = vmatprep.subr.mxu0 0.0
      %2491 = vmatpush1.msra.mxu0 0.0
      %2492 = vmatprep.subr.mxu0 0.0
      %2493 = vmatpush1.msra.mxu0 0.0
      %2494 = vmatprep.subr.mxu0 0.0
      %2495 = vmatpush1.msra.mxu0 0.0
      %2496 = vmatprep.subr.mxu0 0.0
      %2497 = vmatpush1.msra.mxu0 0.0
      %2498 = vmatprep.subr.mxu0 0.0
      %2499 = vmatpush1.msra.mxu0 0.0
      %2500 = vmatprep.subr.mxu0 0.0
      %2501 = vmatpush1.msra.mxu0 0.0
      %2502 = vmatprep.subr.mxu0 0.0
      %2503 = vmatpush1.msra.mxu0 0.0
      %2504 = vmatprep.subr.mxu0 0.0
      %2505 = vmatpush1.msra.mxu0 0.0
      %2506 = vmatprep.subr.mxu0 0.0
      %2507 = vmatpush1.msra.mxu0 0.0
      %2508 = vmatprep.subr.mxu0 0.0
      %2509 = vmatpush1.msra.mxu0 0.0
      %2510 = vmatprep.subr.mxu0 0.0
      %2511 = vmatpush1.msra.mxu0 0.0
      %2512 = vmatprep.subr.mxu0 0.0
      %2513 = vmatpush1.msra.mxu0 0.0
      %2514 = vmatprep.subr.mxu0 0.0
      %2515 = vmatpush1.msra.mxu0 0.0
      %2516 = vmatprep.subr.mxu0 0.0
      %2517 = vmatpush1.msra.mxu0 0.0
      %2518 = vmatprep.subr.mxu0 0.0
      %2519 = vmatpush1.msra.mxu0 0.0
      %2520 = vmatprep.subr.mxu0 0.0
      %2521 = vmatpush1.msra.mxu0 0.0
      %2522 = vmatprep.subr.mxu0 0.0
      %2523 = vmatpush1.msra.mxu0 0.0
      %2524 = vmatprep.subr.mxu0 0.0
      %2525 = vmatpush1.msra.mxu0 0.0
      %2526 = vmatprep.subr.mxu0 0.0
      %2527 = vmatpush1.msra.mxu0 0.0
      %2528 = vmatprep.subr.mxu0 0.0
      %2529 = vmatpush1.msra.mxu0 0.0
      %2530 = vmatprep.subr.mxu0 0.0
      %2531 = vmatpush1.msra.mxu0 0.0
      %2532 = vmatprep.subr.mxu0 0.0
      %2533 = vmatpush1.msra.mxu0 0.0
      %2534 = vmatprep.subr.mxu0 0.0
      %2535 = vmatpush1.msra.mxu0 0.0
      %2536 = vmatprep.subr.mxu0 0.0
      %2537 = vmatpush1.msra.mxu0 0.0
      %2538 = vmatprep.subr.mxu0 0.0
      %2539 = vmatpush1.msra.mxu0 0.0
      %2540 = vmatprep.mubr.f32.mxu0 0.0
      %2541 = vmatmul.mubr.f32.gmra.mrb[0].mxu0 %v435
      %v2542 = vpop.f32.mrb[0].mxu0
      %v2543 = vadd.f32 0.0, %v2542
      %v2544 = vpop.f32.mrb[0].mxu0
      %2545 = vmatprep.mubr.f32.mxu0 0.0
      %2546 = vmatmul.mubr.f32.gmra.mrb[0].mxu0 %v437
      %v2547 = vpop.f32.mrb[0].mxu0
      %v2548 = vadd.f32 0.0, %v2547
      %v2549 = vpop.f32.mrb[0].mxu0
      %2550 = vmatprep.mubr.f32.mxu0 0.0
      %2551 = vmatmul.mubr.f32.gmra.mrb[0].mxu0 %v439
      %v2552 = vpop.f32.mrb[0].mxu0
      %v2553 = vadd.f32 0.0, %v2552
      %v2554 = vpop.f32.mrb[0].mxu0
      %2555 = vmatprep.mubr.f32.mxu0 0.0
      %2556 = vmatmul.mubr.f32.gmra.mrb[0].mxu0 %v441
      %v2557 = vpop.f32.mrb[0].mxu0
      %v2558 = vadd.f32 0.0, %v2557
      %v2559 = vpop.f32.mrb[0].mxu0
      %2560 = vmatprep.mubr.f32.mxu0 0.0
      %2561 = vmatmul.mubr.f32.gmra.mrb[0].mxu0 %v443
      %v2562 = vpop.f32.mrb[0].mxu0
      %v2563 = vadd.f32 0.0, %v2562
      %v2564 = vpop.f32.mrb[0].mxu0
      %2565 = vmatprep.mubr.f32.mxu0 0.0
      %2566 = vmatmul.mubr.f32.gmra.mrb[0].mxu0 %v445
      %v2567 = vpop.f32.mrb[0].mxu0
      %v2568 = vadd.f32 0.0, %v2567
      %v2569 = vpop.f32.mrb[0].mxu0
      %2570 = vmatprep.mubr.f32.mxu0 0.0
      %2571 = vmatmul.mubr.f32.gmra.mrb[0].mxu0 %v447
      %v2572 = vpop.f32.mrb[0].mxu0
      %v2573 = vadd.f32 0.0, %v2572
      %v2574 = vpop.f32.mrb[0].mxu0
      %2575 = vmatprep.mubr.f32.mxu0 0.0
      %2576 = vmatmul.mubr.f32.gmra.mrb[0].mxu0 %v449
      %v2577 = vpop.f32.mrb[0].mxu0
      %v2578 = vadd.f32 0.0, %v2577
      %v2579 = vpop.f32.mrb[0].mxu0
      %2580 = vmatprep.mubr.f32.mxu0 0.0
      %2581 = vmatmul.mubr.f32.gmra.mrb[0].mxu0 %v451
      %v2582 = vpop.f32.mrb[0].mxu0
      %v2583 = vadd.f32 0.0, %v2582
      %v2584 = vpop.f32.mrb[0].mxu0
      %2585 = vmatprep.mubr.f32.mxu0 0.0
      %2586 = vmatmul.mubr.f32.gmra.mrb[0].mxu0 %v453
      %v2587 = vpop.f32.mrb[0].mxu0
      %v2588 = vadd.f32 0.0, %v2587
      %v2589 = vpop.f32.mrb[0].mxu0
      %2590 = vmatprep.mubr.f32.mxu0 0.0
      %2591 = vmatmul.mubr.f32.gmra.mrb[0].mxu0 %v455
      %v2592 = vpop.f32.mrb[0].mxu0
      %v2593 = vadd.f32 0.0, %v2592
      %v2594 = vpop.f32.mrb[0].mxu0
      %2595 = vmatprep.mubr.f32.mxu0 0.0
      %2596 = vmatmul.mubr.f32.gmra.mrb[0].mxu0 %v457
      %v2597 = vpop.f32.mrb[0].mxu0
      %v2598 = vadd.f32 0.0, %v2597
      %v2599 = vpop.f32.mrb[0].mxu0
      %2600 = vmatprep.mubr.f32.mxu0 0.0
      %2601 = vmatmul.mubr.f32.gmra.mrb[0].mxu0 %v459
      %v2602 = vpop.f32.mrb[0].mxu0
      %v2603 = vadd.f32 0.0, %v2602
      %v2604 = vpop.f32.mrb[0].mxu0
      %2605 = vmatprep.mubr.f32.mxu0 0.0
      %2606 = vmatmul.mubr.f32.gmra.mrb[0].mxu0 %v461
      %v2607 = vpop.f32.mrb[0].mxu0
      %v2608 = vadd.f32 0.0, %v2607
      %v2609 = vpop.f32.mrb[0].mxu0
      %2610 = vmatprep.mubr.f32.mxu0 0.0
      %2611 = vmatmul.mubr.f32.gmra.mrb[0].mxu0 %v463
      %v2612 = vpop.f32.mrb[0].mxu0
      %v2613 = vadd.f32 0.0, %v2612
      %v2614 = vpop.f32.mrb[0].mxu0
      %2615 = vmatprep.mubr.f32.mxu0 0.0
      %2616 = vmatmul.mubr.f32.gmra.mrb[0].mxu0 %v465
      %v2617 = vpop.f32.mrb[0].mxu0
      %v2618 = vadd.f32 0.0, %v2617
      %v2619 = vpop.f32.mrb[0].mxu0
      %2620 = vmatprep.mubr.f32.mxu0 0.0
      %2621 = vmatmul.mubr.f32.gmra.mrb[0].mxu0 %v467
      %v2622 = vpop.f32.mrb[0].mxu0
      %v2623 = vadd.f32 0.0, %v2622
      %v2624 = vpop.f32.mrb[0].mxu0
      %2625 = vmatprep.mubr.f32.mxu0 0.0
      %2626 = vmatmul.mubr.f32.gmra.mrb[0].mxu0 %v469
      %v2627 = vpop.f32.mrb[0].mxu0
      %v2628 = vadd.f32 0.0, %v2627
      %v2629 = vpop.f32.mrb[0].mxu0
      %2630 = vmatprep.mubr.f32.mxu0 0.0
      %2631 = vmatmul.mubr.f32.gmra.mrb[0].mxu0 %v471
      %v2632 = vpop.f32.mrb[0].mxu0
      %v2633 = vadd.f32 0.0, %v2632
      %v2634 = vpop.f32.mrb[0].mxu0
      %2635 = vmatprep.mubr.f32.mxu0 0.0
      %2636 = vmatmul.mubr.f32.gmra.mrb[0].mxu0 %v473
      %v2637 = vpop.f32.mrb[0].mxu0
      %v2638 = vadd.f32 0.0, %v2637
      %v2639 = vpop.f32.mrb[0].mxu0
      %2640 = vmatprep.mubr.f32.mxu0 0.0
      %2641 = vmatmul.mubr.f32.gmra.mrb[0].mxu0 %v475
      %v2642 = vpop.f32.mrb[0].mxu0
      %v2643 = vadd.f32 0.0, %v2642
      %v2644 = vpop.f32.mrb[0].mxu0
      %2645 = vmatprep.mubr.f32.mxu0 0.0
      %2646 = vmatmul.mubr.f32.gmra.mrb[0].mxu0 %v477
      %v2647 = vpop.f32.mrb[0].mxu0
      %v2648 = vadd.f32 0.0, %v2647
      %v2649 = vpop.f32.mrb[0].mxu0
      %2650 = vmatprep.mubr.f32.mxu0 0.0
      %2651 = vmatmul.mubr.f32.gmra.mrb[0].mxu0 %v479
      %v2652 = vpop.f32.mrb[0].mxu0
      %v2653 = vadd.f32 0.0, %v2652
      %v2654 = vpop.f32.mrb[0].mxu0
      %2655 = vmatprep.mubr.f32.mxu0 0.0
      %2656 = vmatmul.mubr.f32.gmra.mrb[0].mxu0 %v481
      %v2657 = vpop.f32.mrb[0].mxu0
      %v2658 = vadd.f32 0.0, %v2657
      %v2659 = vpop.f32.mrb[0].mxu0
      %2660 = vmatprep.mubr.f32.mxu0 0.0
      %2661 = vmatmul.mubr.f32.gmra.mrb[0].mxu0 %v483
      %v2662 = vpop.f32.mrb[0].mxu0
      %v2663 = vadd.f32 0.0, %v2662
      %v2664 = vpop.f32.mrb[0].mxu0
      %2665 = vmatprep.mubr.f32.mxu0 0.0
      %2666 = vmatmul.mubr.f32.gmra.mrb[0].mxu0 %v485
      %v2667 = vpop.f32.mrb[0].mxu0
      %v2668 = vadd.f32 0.0, %v2667
      %v2669 = vpop.f32.mrb[0].mxu0
      %2670 = vmatprep.mubr.f32.mxu0 0.0
      %2671 = vmatmul.mubr.f32.gmra.mrb[0].mxu0 %v487
      %v2672 = vpop.f32.mrb[0].mxu0
      %v2673 = vadd.f32 0.0, %v2672
      %v2674 = vpop.f32.mrb[0].mxu0
      %2675 = vmatprep.mubr.f32.mxu0 0.0
      %2676 = vmatmul.mubr.f32.gmra.mrb[0].mxu0 %v489
      %v2677 = vpop.f32.mrb[0].mxu0
      %v2678 = vadd.f32 0.0, %v2677
      %v2679 = vpop.f32.mrb[0].mxu0
      %2680 = vmatprep.mubr.f32.mxu0 0.0
      %2681 = vmatmul.mubr.f32.gmra.mrb[0].mxu0 %v1676
      %v2682 = vpop.f32.mrb[0].mxu0
      %v2683 = vadd.f32 0.0, %v2682
      %v2684 = vpop.f32.mrb[0].mxu0
      %2685 = vmatprep.mubr.f32.mxu0 0.0
      %2686 = vmatmul.mubr.f32.gmra.mrb[0].mxu0 %v1678
      %v2687 = vpop.f32.mrb[0].mxu0
      %v2688 = vadd.f32 0.0, %v2687
      %v2689 = vpop.f32.mrb[0].mxu0
      %2690 = vmatprep.mubr.f32.mxu0 0.0
      %2691 = vmatmul.mubr.f32.gmra.mrb[0].mxu0 %v2472
      %v2692 = vpop.f32.mrb[0].mxu0
      %v2693 = vadd.f32 0.0, %v2692
      %v2694 = vpop.f32.mrb[0].mxu0
      %2695 = vmatprep.mubr.f32.mxu0 0.0
      %2696 = vmatmul.mubr.f32.gmra.mrb[0].mxu0 %v2474
      %v2697 = vpop.f32.mrb[0].mxu0
      %v2698 = vadd.f32 0.0, %v2697
      %v2699 = vpop.f32.mrb[0].mxu0
      %2700 = vdwg.mxu0
      %v2701 = vadd.f32 %v2434, %v2543
      %v2702 = vadd.f32 %v2435, %v2548
      %v2703 = vadd.f32 %v2436, %v2553
      %v2704 = vadd.f32 %v2437, %v2558
      %v2705 = vadd.f32 %v2438, %v2563
      %v2706 = vadd.f32 %v2439, %v2568
      %v2707 = vadd.f32 %v2440, %v2573
      %v2708 = vadd.f32 %v2441, %v2578
      %v2709 = vadd.f32 %v2442, %v2583
      %v2710 = vadd.f32 %v2443, %v2588
      %v2711 = vadd.f32 %v2444, %v2593
      %v2712 = vadd.f32 %v2445, %v2598
      %v2713 = vadd.f32 %v2446, %v2603
      %v2714 = vadd.f32 %v2447, %v2608
      %v2715 = vadd.f32 %v2448, %v2613
      %v2716 = vadd.f32 %v2449, %v2618
      %v2717 = vadd.f32 %v2450, %v2623
      %v2718 = vadd.f32 %v2451, %v2628
      %v2719 = vadd.f32 %v2452, %v2633
      %v2720 = vadd.f32 %v2453, %v2638
      %v2721 = vadd.f32 %v2454, %v2643
      %v2722 = vadd.f32 %v2455, %v2648
      %v2723 = vadd.f32 %v2456, %v2653
      %v2724 = vadd.f32 %v2457, %v2658
      %v2725 = vadd.f32 %v2458, %v2663
      %v2726 = vadd.f32 %v2459, %v2668
      %v2727 = vadd.f32 %v2460, %v2673
      %v2728 = vadd.f32 %v2461, %v2678
      %v2729 = vadd.f32 %v2462, %v2683
      %v2730 = vadd.f32 %v2463, %v2688
      %v2731 = vadd.f32 %v2464, %v2693
      %v2732 = vadd.f32 %v2465, %v2698
      %v2733 = vrot.slane %v276, 2
      %v2734 = vrot.slane %v277, 2
      %v2735 = vsel %vm1005, %v2733, %v2734
      %v2736 = vrot.slane %v278, 2
      %v2737 = vsel %vm1005, %v2734, %v2736
      %v2738 = vsel %vm426, %v2735, 0
      %v2740 = vsel %vm426, %v2737, 0
      %2742 = vmatprep.subr.mxu0 0.0
      %2743 = vmatpush1.msra.mxu0 %v296
      %2744 = vmatprep.subr.mxu0 0.0
      %2745 = vmatpush1.msra.mxu0 0.0
      %2746 = vmatprep.subr.mxu0 0.0
      %2747 = vmatpush1.msra.mxu0 0.0
      %2748 = vmatprep.subr.mxu0 0.0
      %2749 = vmatpush1.msra.mxu0 0.0
      %2750 = vmatprep.subr.mxu0 0.0
      %2751 = vmatpush1.msra.mxu0 0.0
      %2752 = vmatprep.subr.mxu0 0.0
      %2753 = vmatpush1.msra.mxu0 0.0
      %2754 = vmatprep.subr.mxu0 0.0
      %2755 = vmatpush1.msra.mxu0 0.0
      %2756 = vmatprep.subr.mxu0 0.0
      %2757 = vmatpush1.msra.mxu0 0.0
      %2758 = vmatprep.subr.mxu0 0.0
      %2759 = vmatpush1.msra.mxu0 0.0
      %2760 = vmatprep.subr.mxu0 0.0
      %2761 = vmatpush1.msra.mxu0 0.0
      %2762 = vmatprep.subr.mxu0 0.0
      %2763 = vmatpush1.msra.mxu0 0.0
      %2764 = vmatprep.subr.mxu0 0.0
      %2765 = vmatpush1.msra.mxu0 0.0
      %2766 = vmatprep.subr.mxu0 0.0
      %2767 = vmatpush1.msra.mxu0 0.0
      %2768 = vmatprep.subr.mxu0 0.0
      %2769 = vmatpush1.msra.mxu0 0.0
      %2770 = vmatprep.subr.mxu0 0.0
      %2771 = vmatpush1.msra.mxu0 0.0
      %2772 = vmatprep.subr.mxu0 0.0
      %2773 = vmatpush1.msra.mxu0 0.0
      %2774 = vmatprep.subr.mxu0 0.0
      %2775 = vmatpush1.msra.mxu0 0.0
      %2776 = vmatprep.subr.mxu0 0.0
      %2777 = vmatpush1.msra.mxu0 0.0
      %2778 = vmatprep.subr.mxu0 0.0
      %2779 = vmatpush1.msra.mxu0 0.0
      %2780 = vmatprep.subr.mxu0 0.0
      %2781 = vmatpush1.msra.mxu0 0.0
      %2782 = vmatprep.subr.mxu0 0.0
      %2783 = vmatpush1.msra.mxu0 0.0
      %2784 = vmatprep.subr.mxu0 0.0
      %2785 = vmatpush1.msra.mxu0 0.0
      %2786 = vmatprep.subr.mxu0 0.0
      %2787 = vmatpush1.msra.mxu0 0.0
      %2788 = vmatprep.subr.mxu0 0.0
      %2789 = vmatpush1.msra.mxu0 0.0
      %2790 = vmatprep.subr.mxu0 0.0
      %2791 = vmatpush1.msra.mxu0 0.0
      %2792 = vmatprep.subr.mxu0 0.0
      %2793 = vmatpush1.msra.mxu0 0.0
      %2794 = vmatprep.subr.mxu0 0.0
      %2795 = vmatpush1.msra.mxu0 0.0
      %2796 = vmatprep.subr.mxu0 0.0
      %2797 = vmatpush1.msra.mxu0 0.0
      %2798 = vmatprep.subr.mxu0 0.0
      %2799 = vmatpush1.msra.mxu0 0.0
      %2800 = vmatprep.subr.mxu0 0.0
      %2801 = vmatpush1.msra.mxu0 0.0
      %2802 = vmatprep.subr.mxu0 0.0
      %2803 = vmatpush1.msra.mxu0 0.0
      %2804 = vmatprep.subr.mxu0 0.0
      %2805 = vmatpush1.msra.mxu0 0.0
      %2806 = vmatprep.mubr.f32.mxu0 0.0
      %2807 = vmatmul.mubr.f32.gmra.mrb[0].mxu0 %v1094
      %v2808 = vpop.f32.mrb[0].mxu0
      %v2809 = vadd.f32 0.0, %v2808
      %v2810 = vpop.f32.mrb[0].mxu0
      %2811 = vmatprep.mubr.f32.mxu0 0.0
      %2812 = vmatmul.mubr.f32.gmra.mrb[0].mxu0 %v1096
      %v2813 = vpop.f32.mrb[0].mxu0
      %v2814 = vadd.f32 0.0, %v2813
      %v2815 = vpop.f32.mrb[0].mxu0
      %2816 = vmatprep.mubr.f32.mxu0 0.0
      %2817 = vmatmul.mubr.f32.gmra.mrb[0].mxu0 %v1098
      %v2818 = vpop.f32.mrb[0].mxu0
      %v2819 = vadd.f32 0.0, %v2818
      %v2820 = vpop.f32.mrb[0].mxu0
      %2821 = vmatprep.mubr.f32.mxu0 0.0
      %2822 = vmatmul.mubr.f32.gmra.mrb[0].mxu0 %v1100
      %v2823 = vpop.f32.mrb[0].mxu0
      %v2824 = vadd.f32 0.0, %v2823
      %v2825 = vpop.f32.mrb[0].mxu0
      %2826 = vmatprep.mubr.f32.mxu0 0.0
      %2827 = vmatmul.mubr.f32.gmra.mrb[0].mxu0 %v1102
      %v2828 = vpop.f32.mrb[0].mxu0
      %v2829 = vadd.f32 0.0, %v2828
      %v2830 = vpop.f32.mrb[0].mxu0
      %2831 = vmatprep.mubr.f32.mxu0 0.0
      %2832 = vmatmul.mubr.f32.gmra.mrb[0].mxu0 %v1104
      %v2833 = vpop.f32.mrb[0].mxu0
      %v2834 = vadd.f32 0.0, %v2833
      %v2835 = vpop.f32.mrb[0].mxu0
      %2836 = vmatprep.mubr.f32.mxu0 0.0
      %2837 = vmatmul.mubr.f32.gmra.mrb[0].mxu0 %v1106
      %v2838 = vpop.f32.mrb[0].mxu0
      %v2839 = vadd.f32 0.0, %v2838
      %v2840 = vpop.f32.mrb[0].mxu0
      %2841 = vmatprep.mubr.f32.mxu0 0.0
      %2842 = vmatmul.mubr.f32.gmra.mrb[0].mxu0 %v1108
      %v2843 = vpop.f32.mrb[0].mxu0
      %v2844 = vadd.f32 0.0, %v2843
      %v2845 = vpop.f32.mrb[0].mxu0
      %2846 = vmatprep.mubr.f32.mxu0 0.0
      %2847 = vmatmul.mubr.f32.gmra.mrb[0].mxu0 %v1110
      %v2848 = vpop.f32.mrb[0].mxu0
      %v2849 = vadd.f32 0.0, %v2848
      %v2850 = vpop.f32.mrb[0].mxu0
      %2851 = vmatprep.mubr.f32.mxu0 0.0
      %2852 = vmatmul.mubr.f32.gmra.mrb[0].mxu0 %v1112
      %v2853 = vpop.f32.mrb[0].mxu0
      %v2854 = vadd.f32 0.0, %v2853
      %v2855 = vpop.f32.mrb[0].mxu0
      %2856 = vmatprep.mubr.f32.mxu0 0.0
      %2857 = vmatmul.mubr.f32.gmra.mrb[0].mxu0 %v1114
      %v2858 = vpop.f32.mrb[0].mxu0
      %v2859 = vadd.f32 0.0, %v2858
      %v2860 = vpop.f32.mrb[0].mxu0
      %2861 = vmatprep.mubr.f32.mxu0 0.0
      %2862 = vmatmul.mubr.f32.gmra.mrb[0].mxu0 %v1116
      %v2863 = vpop.f32.mrb[0].mxu0
      %v2864 = vadd.f32 0.0, %v2863
      %v2865 = vpop.f32.mrb[0].mxu0
      %2866 = vmatprep.mubr.f32.mxu0 0.0
      %2867 = vmatmul.mubr.f32.gmra.mrb[0].mxu0 %v1118
      %v2868 = vpop.f32.mrb[0].mxu0
      %v2869 = vadd.f32 0.0, %v2868
      %v2870 = vpop.f32.mrb[0].mxu0
      %2871 = vmatprep.mubr.f32.mxu0 0.0
      %2872 = vmatmul.mubr.f32.gmra.mrb[0].mxu0 %v1120
      %v2873 = vpop.f32.mrb[0].mxu0
      %v2874 = vadd.f32 0.0, %v2873
      %v2875 = vpop.f32.mrb[0].mxu0
      %2876 = vmatprep.mubr.f32.mxu0 0.0
      %2877 = vmatmul.mubr.f32.gmra.mrb[0].mxu0 %v1122
      %v2878 = vpop.f32.mrb[0].mxu0
      %v2879 = vadd.f32 0.0, %v2878
      %v2880 = vpop.f32.mrb[0].mxu0
      %2881 = vmatprep.mubr.f32.mxu0 0.0
      %2882 = vmatmul.mubr.f32.gmra.mrb[0].mxu0 %v1124
      %v2883 = vpop.f32.mrb[0].mxu0
      %v2884 = vadd.f32 0.0, %v2883
      %v2885 = vpop.f32.mrb[0].mxu0
      %2886 = vmatprep.mubr.f32.mxu0 0.0
      %2887 = vmatmul.mubr.f32.gmra.mrb[0].mxu0 %v1126
      %v2888 = vpop.f32.mrb[0].mxu0
      %v2889 = vadd.f32 0.0, %v2888
      %v2890 = vpop.f32.mrb[0].mxu0
      %2891 = vmatprep.mubr.f32.mxu0 0.0
      %2892 = vmatmul.mubr.f32.gmra.mrb[0].mxu0 %v1128
      %v2893 = vpop.f32.mrb[0].mxu0
      %v2894 = vadd.f32 0.0, %v2893
      %v2895 = vpop.f32.mrb[0].mxu0
      %2896 = vmatprep.mubr.f32.mxu0 0.0
      %2897 = vmatmul.mubr.f32.gmra.mrb[0].mxu0 %v1130
      %v2898 = vpop.f32.mrb[0].mxu0
      %v2899 = vadd.f32 0.0, %v2898
      %v2900 = vpop.f32.mrb[0].mxu0
      %2901 = vmatprep.mubr.f32.mxu0 0.0
      %2902 = vmatmul.mubr.f32.gmra.mrb[0].mxu0 %v1132
      %v2903 = vpop.f32.mrb[0].mxu0
      %v2904 = vadd.f32 0.0, %v2903
      %v2905 = vpop.f32.mrb[0].mxu0
      %2906 = vmatprep.mubr.f32.mxu0 0.0
      %2907 = vmatmul.mubr.f32.gmra.mrb[0].mxu0 %v1134
      %v2908 = vpop.f32.mrb[0].mxu0
      %v2909 = vadd.f32 0.0, %v2908
      %v2910 = vpop.f32.mrb[0].mxu0
      %2911 = vmatprep.mubr.f32.mxu0 0.0
      %2912 = vmatmul.mubr.f32.gmra.mrb[0].mxu0 %v1136
      %v2913 = vpop.f32.mrb[0].mxu0
      %v2914 = vadd.f32 0.0, %v2913
      %v2915 = vpop.f32.mrb[0].mxu0
      %2916 = vmatprep.mubr.f32.mxu0 0.0
      %2917 = vmatmul.mubr.f32.gmra.mrb[0].mxu0 %v1138
      %v2918 = vpop.f32.mrb[0].mxu0
      %v2919 = vadd.f32 0.0, %v2918
      %v2920 = vpop.f32.mrb[0].mxu0
      %2921 = vmatprep.mubr.f32.mxu0 0.0
      %2922 = vmatmul.mubr.f32.gmra.mrb[0].mxu0 %v1140
      %v2923 = vpop.f32.mrb[0].mxu0
      %v2924 = vadd.f32 0.0, %v2923
      %v2925 = vpop.f32.mrb[0].mxu0
      %2926 = vmatprep.mubr.f32.mxu0 0.0
      %2927 = vmatmul.mubr.f32.gmra.mrb[0].mxu0 %v1142
      %v2928 = vpop.f32.mrb[0].mxu0
      %v2929 = vadd.f32 0.0, %v2928
      %v2930 = vpop.f32.mrb[0].mxu0
      %2931 = vmatprep.mubr.f32.mxu0 0.0
      %2932 = vmatmul.mubr.f32.gmra.mrb[0].mxu0 %v1144
      %v2933 = vpop.f32.mrb[0].mxu0
      %v2934 = vadd.f32 0.0, %v2933
      %v2935 = vpop.f32.mrb[0].mxu0
      %2936 = vmatprep.mubr.f32.mxu0 0.0
      %2937 = vmatmul.mubr.f32.gmra.mrb[0].mxu0 %v1146
      %v2938 = vpop.f32.mrb[0].mxu0
      %v2939 = vadd.f32 0.0, %v2938
      %v2940 = vpop.f32.mrb[0].mxu0
      %2941 = vmatprep.mubr.f32.mxu0 0.0
      %2942 = vmatmul.mubr.f32.gmra.mrb[0].mxu0 %v1148
      %v2943 = vpop.f32.mrb[0].mxu0
      %v2944 = vadd.f32 0.0, %v2943
      %v2945 = vpop.f32.mrb[0].mxu0
      %2946 = vmatprep.mubr.f32.mxu0 0.0
      %2947 = vmatmul.mubr.f32.gmra.mrb[0].mxu0 %v1942
      %v2948 = vpop.f32.mrb[0].mxu0
      %v2949 = vadd.f32 0.0, %v2948
      %v2950 = vpop.f32.mrb[0].mxu0
      %2951 = vmatprep.mubr.f32.mxu0 0.0
      %2952 = vmatmul.mubr.f32.gmra.mrb[0].mxu0 %v1944
      %v2953 = vpop.f32.mrb[0].mxu0
      %v2954 = vadd.f32 0.0, %v2953
      %v2955 = vpop.f32.mrb[0].mxu0
      %2956 = vmatprep.mubr.f32.mxu0 0.0
      %2957 = vmatmul.mubr.f32.gmra.mrb[0].mxu0 %v2738
      %v2958 = vpop.f32.mrb[0].mxu0
      %v2959 = vadd.f32 0.0, %v2958
      %v2960 = vpop.f32.mrb[0].mxu0
      %2961 = vmatprep.mubr.f32.mxu0 0.0
      %2962 = vmatmul.mubr.f32.gmra.mrb[0].mxu0 %v2740
      %v2963 = vpop.f32.mrb[0].mxu0
      %v2964 = vadd.f32 0.0, %v2963
      %v2965 = vpop.f32.mrb[0].mxu0
      %2966 = vdwg.mxu0
      %v2967 = vadd.f32 %v2701, %v2809
      %v2968 = vadd.f32 %v2702, %v2814
      %v2969 = vadd.f32 %v2703, %v2819
      %v2970 = vadd.f32 %v2704, %v2824
      %v2971 = vadd.f32 %v2705, %v2829
      %v2972 = vadd.f32 %v2706, %v2834
      %v2973 = vadd.f32 %v2707, %v2839
      %v2974 = vadd.f32 %v2708, %v2844
      %v2975 = vadd.f32 %v2709, %v2849
      %v2976 = vadd.f32 %v2710, %v2854
      %v2977 = vadd.f32 %v2711, %v2859
      %v2978 = vadd.f32 %v2712, %v2864
      %v2979 = vadd.f32 %v2713, %v2869
      %v2980 = vadd.f32 %v2714, %v2874
      %v2981 = vadd.f32 %v2715, %v2879
      %v2982 = vadd.f32 %v2716, %v2884
      %v2983 = vadd.f32 %v2717, %v2889
      %v2984 = vadd.f32 %v2718, %v2894
      %v2985 = vadd.f32 %v2719, %v2899
      %v2986 = vadd.f32 %v2720, %v2904
      %v2987 = vadd.f32 %v2721, %v2909
      %v2988 = vadd.f32 %v2722, %v2914
      %v2989 = vadd.f32 %v2723, %v2919
      %v2990 = vadd.f32 %v2724, %v2924
      %v2991 = vadd.f32 %v2725, %v2929
      %v2992 = vadd.f32 %v2726, %v2934
      %v2993 = vadd.f32 %v2727, %v2939
      %v2994 = vadd.f32 %v2728, %v2944
      %v2995 = vadd.f32 %v2729, %v2949
      %v2996 = vadd.f32 %v2730, %v2954
      %v2997 = vadd.f32 %v2731, %v2959
      %v2998 = vadd.f32 %v2732, %v2964
      %v2999 = vld [vmem:[%s2] sm:$0x1]
      %v3001 = vlaneseq
      %v3002 = vshrl.u32 %v3001, 7
      %v3003 = vsub.s32 0, %v3002
      %v3004 = vrot.slane %v2999, %v3003
      %v3006 = vadd.f32 %v2967, %v3004
      %v3007 = vadd.f32 %v2968, %v3004
      %v3008 = vadd.f32 %v2969, %v3004
      %v3009 = vadd.f32 %v2970, %v3004
      %v3010 = vadd.f32 %v2971, %v3004
      %v3011 = vadd.f32 %v2972, %v3004
      %v3012 = vadd.f32 %v2973, %v3004
      %v3013 = vadd.f32 %v2974, %v3004
      %v3014 = vadd.f32 %v2975, %v3004
      %v3015 = vadd.f32 %v2976, %v3004
      %v3016 = vadd.f32 %v2977, %v3004
      %v3017 = vadd.f32 %v2978, %v3004
      %v3018 = vadd.f32 %v2979, %v3004
      %v3019 = vadd.f32 %v2980, %v3004
      %v3020 = vadd.f32 %v2981, %v3004
      %v3021 = vadd.f32 %v2982, %v3004
      %v3022 = vadd.f32 %v2983, %v3004
      %v3023 = vadd.f32 %v2984, %v3004
      %v3024 = vadd.f32 %v2985, %v3004
      %v3025 = vadd.f32 %v2986, %v3004
      %v3026 = vadd.f32 %v2987, %v3004
      %v3027 = vadd.f32 %v2988, %v3004
      %v3028 = vadd.f32 %v2989, %v3004
      %v3029 = vadd.f32 %v2990, %v3004
      %v3030 = vadd.f32 %v2991, %v3004
      %v3031 = vadd.f32 %v2992, %v3004
      %v3032 = vadd.f32 %v2993, %v3004
      %v3033 = vadd.f32 %v2994, %v3004
      %v3034 = vadd.f32 %v2995, %v3004
      %v3035 = vadd.f32 %v2996, %v3004
      %v3036 = vadd.f32 %v2997, %v3004
      %v3037 = vadd.f32 %v2998, %v3004
      %v3038 = vmax.f32 %v3006, 0.0
      %v3039 = vmax.f32 %v3007, 0.0
      %v3040 = vmax.f32 %v3008, 0.0
      %v3041 = vmax.f32 %v3009, 0.0
      %v3042 = vmax.f32 %v3010, 0.0
      %v3043 = vmax.f32 %v3011, 0.0
      %v3044 = vmax.f32 %v3012, 0.0
      %v3045 = vmax.f32 %v3013, 0.0
      %v3046 = vmax.f32 %v3014, 0.0
      %v3047 = vmax.f32 %v3015, 0.0
      %v3048 = vmax.f32 %v3016, 0.0
      %v3049 = vmax.f32 %v3017, 0.0
      %v3050 = vmax.f32 %v3018, 0.0
      %v3051 = vmax.f32 %v3019, 0.0
      %v3052 = vmax.f32 %v3020, 0.0
      %v3053 = vmax.f32 %v3021, 0.0
      %v3054 = vmax.f32 %v3022, 0.0
      %v3055 = vmax.f32 %v3023, 0.0
      %v3056 = vmax.f32 %v3024, 0.0
      %v3057 = vmax.f32 %v3025, 0.0
      %v3058 = vmax.f32 %v3026, 0.0
      %v3059 = vmax.f32 %v3027, 0.0
      %v3060 = vmax.f32 %v3028, 0.0
      %v3061 = vmax.f32 %v3029, 0.0
      %v3062 = vmax.f32 %v3030, 0.0
      %v3063 = vmax.f32 %v3031, 0.0
      %v3064 = vmax.f32 %v3032, 0.0
      %v3065 = vmax.f32 %v3033, 0.0
      %v3066 = vmax.f32 %v3034, 0.0
      %v3067 = vmax.f32 %v3035, 0.0
      %v3068 = vmax.f32 %v3036, 0.0
      %v3069 = vmax.f32 %v3037, 0.0
      %3102 = vrot.lane.b32.xlu0 %v3038, 120
      %v3103 = vpop.permute.xlu0 %3102
      %3104 = vrot.lane.b32.xlu0 %v3039, 120
      %v3105 = vpop.permute.xlu0 %3104
      %3106 = vrot.lane.b32.xlu0 %v3040, 120
      %v3107 = vpop.permute.xlu0 %3106
      %3108 = vrot.lane.b32.xlu0 %v3041, 120
      %v3109 = vpop.permute.xlu0 %3108
      %3110 = vrot.lane.b32.xlu0 %v3042, 120
      %v3111 = vpop.permute.xlu0 %3110
      %3112 = vrot.lane.b32.xlu0 %v3043, 120
      %v3113 = vpop.permute.xlu0 %3112
      %3114 = vrot.lane.b32.xlu0 %v3044, 120
      %v3115 = vpop.permute.xlu0 %3114
      %3116 = vrot.lane.b32.xlu0 %v3045, 120
      %v3117 = vpop.permute.xlu0 %3116
      %3118 = vrot.lane.b32.xlu0 %v3046, 120
      %v3119 = vpop.permute.xlu0 %3118
      %3120 = vrot.lane.b32.xlu0 %v3047, 120
      %v3121 = vpop.permute.xlu0 %3120
      %3122 = vrot.lane.b32.xlu0 %v3048, 120
      %v3123 = vpop.permute.xlu0 %3122
      %3124 = vrot.lane.b32.xlu0 %v3049, 120
      %v3125 = vpop.permute.xlu0 %3124
      %3126 = vrot.lane.b32.xlu0 %v3050, 120
      %v3127 = vpop.permute.xlu0 %3126
      %3128 = vrot.lane.b32.xlu0 %v3051, 120
      %v3129 = vpop.permute.xlu0 %3128
      %3130 = vrot.lane.b32.xlu0 %v3052, 120
      %v3131 = vpop.permute.xlu0 %3130
      %3132 = vrot.lane.b32.xlu0 %v3053, 120
      %v3133 = vpop.permute.xlu0 %3132
      %3134 = vrot.lane.b32.xlu0 %v3054, 120
      %v3135 = vpop.permute.xlu0 %3134
      %3136 = vrot.lane.b32.xlu0 %v3055, 120
      %v3137 = vpop.permute.xlu0 %3136
      %3138 = vrot.lane.b32.xlu0 %v3056, 120
      %v3139 = vpop.permute.xlu0 %3138
      %3140 = vrot.lane.b32.xlu0 %v3057, 120
      %v3141 = vpop.permute.xlu0 %3140
      %3142 = vrot.lane.b32.xlu0 %v3058, 120
      %v3143 = vpop.permute.xlu0 %3142
      %3144 = vrot.lane.b32.xlu0 %v3059, 120
      %v3145 = vpop.permute.xlu0 %3144
      %3146 = vrot.lane.b32.xlu0 %v3060, 120
      %v3147 = vpop.permute.xlu0 %3146
      %3148 = vrot.lane.b32.xlu0 %v3061, 120
      %v3149 = vpop.permute.xlu0 %3148
      %3150 = vrot.lane.b32.xlu0 %v3062, 120
      %v3151 = vpop.permute.xlu0 %3150
      %3152 = vrot.lane.b32.xlu0 %v3063, 120
      %v3153 = vpop.permute.xlu0 %3152
      %3154 = vrot.lane.b32.xlu0 %v3064, 120
      %v3155 = vpop.permute.xlu0 %3154
      %3156 = vrot.lane.b32.xlu0 %v3065, 120
      %v3157 = vpop.permute.xlu0 %3156
      %3158 = vrot.lane.b32.xlu0 %v3066, 120
      %v3159 = vpop.permute.xlu0 %3158
      %3160 = vrot.lane.b32.xlu0 %v3067, 120
      %v3161 = vpop.permute.xlu0 %3160
      %3162 = vrot.lane.b32.xlu0 %v3068, 120
      %v3163 = vpop.permute.xlu0 %3162
      %3164 = vrot.lane.b32.xlu0 %v3069, 120
      %v3165 = vpop.permute.xlu0 %3164
      %v3198 = vmul.f32 %v3038, %v3103
      %v3199 = vmul.f32 %v3039, %v3105
      %v3200 = vmul.f32 %v3040, %v3107
      %v3201 = vmul.f32 %v3041, %v3109
      %v3202 = vmul.f32 %v3042, %v3111
      %v3203 = vmul.f32 %v3043, %v3113
      %v3204 = vmul.f32 %v3044, %v3115
      %v3205 = vmul.f32 %v3045, %v3117
      %v3206 = vmul.f32 %v3046, %v3119
      %v3207 = vmul.f32 %v3047, %v3121
      %v3208 = vmul.f32 %v3048, %v3123
      %v3209 = vmul.f32 %v3049, %v3125
      %v3210 = vmul.f32 %v3050, %v3127
      %v3211 = vmul.f32 %v3051, %v3129
      %v3212 = vmul.f32 %v3052, %v3131
      %v3213 = vmul.f32 %v3053, %v3133
      %v3214 = vmul.f32 %v3054, %v3135
      %v3215 = vmul.f32 %v3055, %v3137
      %v3216 = vmul.f32 %v3056, %v3139
      %v3217 = vmul.f32 %v3057, %v3141
      %v3218 = vmul.f32 %v3058, %v3143
      %v3219 = vmul.f32 %v3059, %v3145
      %v3220 = vmul.f32 %v3060, %v3147
      %v3221 = vmul.f32 %v3061, %v3149
      %v3222 = vmul.f32 %v3062, %v3151
      %v3223 = vmul.f32 %v3063, %v3153
      %v3224 = vmul.f32 %v3064, %v3155
      %v3225 = vmul.f32 %v3065, %v3157
      %v3226 = vmul.f32 %v3066, %v3159
      %v3227 = vmul.f32 %v3067, %v3161
      %v3228 = vmul.f32 %v3068, %v3163
      %v3229 = vmul.f32 %v3069, %v3165
      %3230 = vst.msk [vmem:[%s170] sm:$0xff] %vm426, %v3198
      %3231 = vst.msk [vmem:[%s170 + $0x8] sm:$0xff] %vm426, %v3199
      %3232 = vst.msk [vmem:[%s170 + $0x10] sm:$0xff] %vm426, %v3200
      %3233 = vst.msk [vmem:[%s170 + $0x18] sm:$0xff] %vm426, %v3201
      %3234 = vst.msk [vmem:[%s170 + $0x20] sm:$0xff] %vm426, %v3202
      %3235 = vst.msk [vmem:[%s170 + $0x28] sm:$0xff] %vm426, %v3203
      %3236 = vst.msk [vmem:[%s170 + $0x30] sm:$0xff] %vm426, %v3204
      %3237 = vst.msk [vmem:[%s170 + $0x38] sm:$0xff] %vm426, %v3205
      %3238 = vst.msk [vmem:[%s170 + $0x40] sm:$0xff] %vm426, %v3206
      %3239 = vst.msk [vmem:[%s170 + $0x48] sm:$0xff] %vm426, %v3207
      %3240 = vst.msk [vmem:[%s170 + $0x50] sm:$0xff] %vm426, %v3208
      %3241 = vst.msk [vmem:[%s170 + $0x58] sm:$0xff] %vm426, %v3209
      %3242 = vst.msk [vmem:[%s170 + $0x60] sm:$0xff] %vm426, %v3210
      %3243 = vst.msk [vmem:[%s170 + $0x68] sm:$0xff] %vm426, %v3211
      %3244 = vst.msk [vmem:[%s170 + $0x70] sm:$0xff] %vm426, %v3212
      %3245 = vst.msk [vmem:[%s170 + $0x78] sm:$0xff] %vm426, %v3213
      %3246 = vst.msk [vmem:[%s170 + $0x80] sm:$0xff] %vm426, %v3214
      %3247 = vst.msk [vmem:[%s170 + $0x88] sm:$0xff] %vm426, %v3215
      %3248 = vst.msk [vmem:[%s170 + $0x90] sm:$0xff] %vm426, %v3216
      %3249 = vst.msk [vmem:[%s170 + $0x98] sm:$0xff] %vm426, %v3217
      %3250 = vst.msk [vmem:[%s170 + $0xa0] sm:$0xff] %vm426, %v3218
      %3251 = vst.msk [vmem:[%s170 + $0xa8] sm:$0xff] %vm426, %v3219
      %3252 = vst.msk [vmem:[%s170 + $0xb0] sm:$0xff] %vm426, %v3220
      %3253 = vst.msk [vmem:[%s170 + $0xb8] sm:$0xff] %vm426, %v3221
      %3254 = vst.msk [vmem:[%s170 + $0xc0] sm:$0xff] %vm426, %v3222
      %3255 = vst.msk [vmem:[%s170 + $0xc8] sm:$0xff] %vm426, %v3223
      %3256 = vst.msk [vmem:[%s170 + $0xd0] sm:$0xff] %vm426, %v3224
      %3257 = vst.msk [vmem:[%s170 + $0xd8] sm:$0xff] %vm426, %v3225
      %3258 = vst.msk [vmem:[%s170 + $0xe0] sm:$0xff] %vm426, %v3226
      %3259 = vst.msk [vmem:[%s170 + $0xe8] sm:$0xff] %vm426, %v3227
      %3260 = vst.msk [vmem:[%s170 + $0xf0] sm:$0xff] %vm426, %v3228
      %3261 = vst.msk [vmem:[%s170 + $0xf8] sm:$0xff] %vm426, %v3229
      %p3262 = scmp.lt.s32.totalorder %s14, 1
      %s3263 = scalar_select %p3262, %s14, 1
      %s3264 = smul.addr %s3263, 32
      %s3265 = smul.addr %s3264, 8
      %s3266 = scalar_lea.vmem %s3, %s3265
      // Predicated region
      $region33: #{tpu_custom_call.1} parent=31 // pred_check
        %p3267 = pneg %p100
      $region34: #{tpu_custom_call.1} parent=31 // pred_check_branch
        %3269 = sbr.rel (%p3267) target = $region36
      $region35: #{tpu_custom_call.1} parent=31 // pred_region
        _
      $region36: #{tpu_custom_call.1} parent=31 // pred_fallthru
        _
    $region32: #{tpu_custom_call.1} parent=5 // pred_fallthru
      _
    %p3270 = scmp.le.s32.totalorder 2, %s9
    // Predicated region
    $region37: #{tpu_custom_call.1} parent=5 // pred_check
      %p3271 = pneg %p3270
    $region38: #{tpu_custom_call.1} parent=5 // pred_check_branch
      %3273 = sbr.rel (%p3271) target = $region40
    $region39: #{tpu_custom_call.1} parent=5 // pred_region
      %s3274 = ssub.s32 %s9, 2
      // Predicated region
      $region41: #{tpu_custom_call.1} parent=39 // pred_check
        %p3275 = pneg %p106
      $region42: #{tpu_custom_call.1} parent=39 // pred_check_branch
        %3277 = sbr.rel (%p3275) target = $region44
      $region43: #{tpu_custom_call.1} parent=39 // pred_region
        %p3278 = scmp.lt.s32.totalorder %s15, 1
        %s3279 = scalar_select %p3278, %s15, 1
        %s3280 = smul.addr %s3279, 32
        %s3281 = smul.addr %s3280, 8
        %s3282 = scalar_lea.vmem %s3, %s3281
      $region44: #{tpu_custom_call.1} parent=39 // pred_fallthru
        _
    $region40: #{tpu_custom_call.1} parent=5 // pred_fallthru
      _
  $region6: #{tpu_custom_call.1} parent=0 // loop_footer
    %s13 = sadd.s32 1, %s9
  $region7: #{tpu_custom_call.1} parent=0 // loop_footer_branch
    %8 = sbr.rel target = $region3
  $region8: #{tpu_custom_call.1} parent=0 // loop_exit
    _

</llo_original>
